<compile_context>
chip_gen: v5e
topology: v5e:2x2
jax: 0.10.0
libtpu: 0.0.40
codegen_flags: <defaults>
</compile_context>

<pallas_src>
import math

import jax
import jax.numpy as jnp
from jax.experimental import pallas as pl
from jax.experimental.pallas import tpu as pltpu

NUM_HEADS = 8


def _fused_mha_kernel(x_ref, wqkv_ref, bqkv_ref, wo_ref, bo_ref, mask_ref,
                      o_ref, head_scratch):
    # x_ref       : (B, S, E)
    # wqkv_ref    : (E, 3E)  pre-transposed packed q/k/v weights (q cols pre-scaled)
    # bqkv_ref    : (1, 3E)  packed q/k/v bias (q part pre-scaled)
    # wo_ref      : (E, E)   pre-transposed output-projection weight
    # bo_ref      : (1, E)   output-projection bias
    # mask_ref    : (T, T)   additive mask: 0 where tokens share a seq position, -1e30 else
    # o_ref       : (B, S, E)
    # head_scratch: (T, E)   VMEM scratch concatenating the per-head outputs
    B, S, E = x_ref.shape
    H = NUM_HEADS
    hd = E // H
    T = B * S

    # Flatten tokens (row r = b*S + s): leading-dim merge, layout-preserving.
    x2 = x_ref[...].reshape(T, E)

    # Fused q/k/v projection: one (T,E)@(E,3E) MXU matmul (scale already folded).
    qkv = jnp.dot(x2, wqkv_ref[...],
                  preferred_element_type=jnp.float32) + bqkv_ref[0]   # (T, 3E)

    mask_bias = mask_ref[...]                                         # (T, T)

    for h in range(H):
        q_h = qkv[:, h * hd:(h + 1) * hd]                             # (T, hd)
        k_h = qkv[:, E + h * hd:E + (h + 1) * hd]                     # (T, hd)
        v_h = qkv[:, 2 * E + h * hd:2 * E + (h + 1) * hd]             # (T, hd)

        s = jnp.dot(q_h, k_h.T, preferred_element_type=jnp.float32)   # (T, T)
        s = s + mask_bias
        s = s - jnp.max(s, axis=-1, keepdims=True)
        p = jnp.exp(s)                                                # masked -> exactly 0
        # exact reciprocal (approx=True could exceed the 1e-4 test tolerance)
        inv_l = pl.reciprocal(jnp.sum(p, axis=-1, keepdims=True), approx=False)
        o_h = jnp.dot(p, v_h, preferred_element_type=jnp.float32) * inv_l   # (T, hd)
        head_scratch[:, h * hd:(h + 1) * hd] = o_h

    # Single output projection over the concatenated heads.
    y = jnp.dot(head_scratch[...], wo_ref[...],
                preferred_element_type=jnp.float32) + bo_ref[0]       # (T, E)
    o_ref[...] = y.reshape(B, S, E).astype(o_ref.dtype)


def sliding_window_attention(x, window_size, params):
    """x: (batch, seq, hidden) float32 -> (batch, seq, hidden)."""
    # window_size has no numerical effect given the module's actual semantics
    # (attention is over the batch axis per sequence position); kept for API
    # fidelity only.
    del window_size
    B, S, E = x.shape
    T = B * S
    w_in, b_in, w_out, b_out = params
    hd = E // NUM_HEADS
    scale = jnp.float32(1.0 / math.sqrt(hd))

    # One-time parameter prep (tiny XLA ops, outside the kernel):
    #   - transpose so the kernel computes x @ W (no in-kernel weight transposes)
    #   - fold the 1/sqrt(hd) softmax scale into the q columns / q bias.
    col_scale = jnp.concatenate([jnp.full((E,), scale, jnp.float32),
                                 jnp.ones((2 * E,), jnp.float32)])[None, :]
    w_qkv = jnp.transpose(w_in) * col_scale            # (E, 3E)
    b_qkv = b_in * col_scale                           # (1, 3E)
    w_o = jnp.transpose(w_out)                         # (E, E)

    # Additive attention mask: token r = b*S + s may only attend to tokens with
    # the same sequence position s.  Built once here (one-time constant prep).
    pos = jnp.arange(T, dtype=jnp.int32) % S
    mask_bias = jnp.where(pos[:, None] == pos[None, :],
                          jnp.float32(0.0), jnp.float32(-1e30))       # (T, T)

    return pl.pallas_call(
        _fused_mha_kernel,
        out_shape=jax.ShapeDtypeStruct((B, S, E), x.dtype),
        grid=(1,),
        in_specs=[
            pl.BlockSpec((B, S, E), lambda i: (0, 0, 0)),
            pl.BlockSpec((E, 3 * E), lambda i: (0, 0)),
            pl.BlockSpec((1, 3 * E), lambda i: (0, 0)),
            pl.BlockSpec((E, E), lambda i: (0, 0)),
            pl.BlockSpec((1, E), lambda i: (0, 0)),
            pl.BlockSpec((T, T), lambda i: (0, 0)),
        ],
        out_specs=pl.BlockSpec((B, S, E), lambda i: (0, 0, 0)),
        scratch_shapes=[pltpu.VMEM((T, E), jnp.float32)],
        # Single tiny program: keep it on one TensorCore (relevant on v7x).
        compiler_params=pltpu.CompilerParams(
            dimension_semantics=("arbitrary",)),
    )(x, w_qkv, b_qkv, w_o, b_out, mask_bias)


def _reference(x, params):
    """Pure-JAX replica of the (mis-batched) PyTorch forward for verification."""
    w_in, b_in, w_out, b_out = params
    B, S, E = x.shape
    hd = E // NUM_HEADS
    qkv = jnp.einsum('bse,fe->bsf', x, w_in) + b_in[0]
    q, k, v = qkv[..., :E], qkv[..., E:2 * E], qkv[..., 2 * E:]
    qh = q.reshape(B, S, NUM_HEADS, hd)
    kh = k.reshape(B, S, NUM_HEADS, hd)
    vh = v.reshape(B, S, NUM_HEADS, hd)
    scores = jnp.einsum('bshd,cshd->shbc', qh, kh) / math.sqrt(hd)
    p = jax.nn.softmax(scores, axis=-1)
    o = jnp.einsum('shbc,cshd->bshd', p, vh).reshape(B, S, E)
    return jnp.einsum('bse,fe->bsf', o, w_out) + b_out[0]


if __name__ == "__main__":
    hidden_size = 32
    batch = 8
    seq = 8
    window_size = 4

    key = jax.random.PRNGKey(0)
    kx, k1, k2, k3, k4 = jax.random.split(key, 5)

    x = jax.random.normal(kx, (batch, seq, hidden_size), dtype=jnp.float32)

    # Deterministic synthetic parameters (shapes match nn.MultiheadAttention):
    #   in_proj_weight (3E, E), in_proj_bias (3E,), out_proj.weight (E, E),
    #   out_proj.bias (E,).  Biases kept 2D for TPU-friendly layouts.
    w_in = 0.1 * jax.random.normal(k1, (3 * hidden_size, hidden_size), jnp.float32)
    b_in = 0.1 * jax.random.normal(k2, (1, 3 * hidden_size), jnp.float32)
    w_out = 0.1 * jax.random.normal(k3, (hidden_size, hidden_size), jnp.float32)
    b_out = 0.1 * jax.random.normal(k4, (1, hidden_size), jnp.float32)
    params = (w_in, b_in, w_out, b_out)

    out = sliding_window_attention(x, window_size, params)
    out = jax.block_until_ready(out)

    ref = _reference(x, params)
    assert out.shape == (batch, seq, hidden_size)
    assert jnp.allclose(out, ref, atol=1e-4, rtol=1e-4), "mismatch vs reference"

    print("KERNEL_OK")
</pallas_src>

<mosaic_0001>
module attributes {stable_mosaic.version = 11 : i64} {
  func.func @_fused_mha_kernel(%arg0: i32, %arg1: memref<8x8x32xf32, #tpu.memory_space<vmem>>, %arg2: memref<32x96xf32, #tpu.memory_space<vmem>>, %arg3: memref<1x96xf32, #tpu.memory_space<vmem>>, %arg4: memref<32x32xf32, #tpu.memory_space<vmem>>, %arg5: memref<1x32xf32, #tpu.memory_space<vmem>>, %arg6: memref<64x64xf32, #tpu.memory_space<vmem>>, %arg7: memref<8x8x32xf32, #tpu.memory_space<vmem>>, %arg8: memref<64x32xf32, #tpu.memory_space<vmem>>) attributes {dimension_semantics = [#tpu.dimension_semantics<arbitrary>], iteration_bounds = array<i64: 1>, scalar_prefetch = 0 : i64, scratch_operands = 1 : i64, tpu.core_type = #tpu.core_type<tc>, window_params = [{pipeline_mode = #tpu.pipeline_mode<synchronous>, transform_indices = @transform_0, window_bounds = array<i64: 8, 8, 32>}, {pipeline_mode = #tpu.pipeline_mode<synchronous>, transform_indices = @transform_1, window_bounds = array<i64: 32, 96>}, {pipeline_mode = #tpu.pipeline_mode<synchronous>, transform_indices = @transform_2, window_bounds = array<i64: 1, 96>}, {pipeline_mode = #tpu.pipeline_mode<synchronous>, transform_indices = @transform_3, window_bounds = array<i64: 32, 32>}, {pipeline_mode = #tpu.pipeline_mode<synchronous>, transform_indices = @transform_4, window_bounds = array<i64: 1, 32>}, {pipeline_mode = #tpu.pipeline_mode<synchronous>, transform_indices = @transform_5, window_bounds = array<i64: 64, 64>}, {pipeline_mode = #tpu.pipeline_mode<synchronous>, transform_indices = @transform_6, window_bounds = array<i64: 8, 8, 32>}]} {
    %c0 = arith.constant 0 : index
    %c0_0 = arith.constant 0 : index
    %c0_1 = arith.constant 0 : index
    %0 = vector.load %arg1[%c0, %c0_0, %c0_1] : memref<8x8x32xf32, #tpu.memory_space<vmem>>, vector<8x8x32xf32>
    %1 = vector.shape_cast %0 : vector<8x8x32xf32> to vector<64x32xf32>
    %c0_2 = arith.constant 0 : index
    %c0_3 = arith.constant 0 : index
    %2 = vector.load %arg2[%c0_2, %c0_3] : memref<32x96xf32, #tpu.memory_space<vmem>>, vector<32x96xf32>
    %cst = arith.constant dense<0.000000e+00> : vector<64x96xf32>
    %3 = tpu.matmul %1, %2, %cst {dimension_numbers = #tpu.dot_dimension_numbers<[1], [0], [0], [1], [0, 0, 1, 1], [], []>} : vector<64x32xf32>, vector<32x96xf32>, vector<64x96xf32> -> vector<64x96xf32>
    %c0_4 = arith.constant 0 : index
    %c0_5 = arith.constant 0 : index
    %4 = vector.load %arg3[%c0_4, %c0_5] : memref<1x96xf32, #tpu.memory_space<vmem>>, vector<1x96xf32>
    %5 = vector.shape_cast %4 : vector<1x96xf32> to vector<96xf32>
    %6 = vector.shape_cast %5 : vector<96xf32> to vector<1x96xf32>
    %7 = vector.broadcast %6 : vector<1x96xf32> to vector<64x96xf32>
    %8 = arith.addf %3, %7 : vector<64x96xf32>
    %c0_6 = arith.constant 0 : index
    %c0_7 = arith.constant 0 : index
    %9 = vector.load %arg6[%c0_6, %c0_7] : memref<64x64xf32, #tpu.memory_space<vmem>>, vector<64x64xf32>
    %10 = vector.extract_strided_slice %8 {offsets = [0, 0], sizes = [64, 4], strides = [1, 1]} : vector<64x96xf32> to vector<64x4xf32>
    %11 = vector.extract_strided_slice %8 {offsets = [0, 32], sizes = [64, 4], strides = [1, 1]} : vector<64x96xf32> to vector<64x4xf32>
    %12 = vector.extract_strided_slice %8 {offsets = [0, 64], sizes = [64, 4], strides = [1, 1]} : vector<64x96xf32> to vector<64x4xf32>
    %13 = tpu.transpose %11, [1, 0] : vector<64x4xf32> -> vector<4x64xf32>
    %cst_8 = arith.constant dense<0.000000e+00> : vector<64x64xf32>
    %14 = tpu.matmul %10, %13, %cst_8 {dimension_numbers = #tpu.dot_dimension_numbers<[1], [0], [0], [1], [0, 0, 1, 1], [], []>} : vector<64x4xf32>, vector<4x64xf32>, vector<64x64xf32> -> vector<64x64xf32>
    %15 = arith.addf %14, %9 : vector<64x64xf32>
    %cst_9 = arith.constant dense<0xFF800000> : vector<64xf32>
    %16 = vector.multi_reduction <maximumf>, %15, %cst_9 [1] : vector<64x64xf32> to vector<64xf32>
    %17 = vector.shape_cast %16 : vector<64xf32> to vector<64x1xf32>
    %18 = vector.broadcast %17 : vector<64x1xf32> to vector<64x64xf32>
    %19 = arith.subf %15, %18 : vector<64x64xf32>
    %20 = math.exp %19 : vector<64x64xf32>
    %cst_10 = arith.constant dense<0.000000e+00> : vector<64xf32>
    %21 = vector.multi_reduction <add>, %20, %cst_10 [1] : vector<64x64xf32> to vector<64xf32>
    %22 = vector.shape_cast %21 : vector<64xf32> to vector<64x1xf32>
    %23 = tpu.reciprocal %22 : vector<64x1xf32> -> vector<64x1xf32>
    %cst_11 = arith.constant dense<0.000000e+00> : vector<64x4xf32>
    %24 = tpu.matmul %20, %12, %cst_11 {dimension_numbers = #tpu.dot_dimension_numbers<[1], [0], [0], [1], [0, 0, 1, 1], [], []>} : vector<64x64xf32>, vector<64x4xf32>, vector<64x4xf32> -> vector<64x4xf32>
    %25 = vector.broadcast %23 : vector<64x1xf32> to vector<64x4xf32>
    %26 = arith.mulf %24, %25 : vector<64x4xf32>
    %c0_12 = arith.constant 0 : index
    %c0_13 = arith.constant 0 : index
    %27 = vector.load %arg8[%c0_12, %c0_13] : memref<64x32xf32, #tpu.memory_space<vmem>>, vector<64x4xf32>
    tpu.vector_store %arg8[%c0_12, %c0_13], %26 {strides = array<i32>} : memref<64x32xf32, #tpu.memory_space<vmem>>, vector<64x4xf32>,
    %28 = vector.extract_strided_slice %8 {offsets = [0, 4], sizes = [64, 4], strides = [1, 1]} : vector<64x96xf32> to vector<64x4xf32>
    %29 = vector.extract_strided_slice %8 {offsets = [0, 36], sizes = [64, 4], strides = [1, 1]} : vector<64x96xf32> to vector<64x4xf32>
    %30 = vector.extract_strided_slice %8 {offsets = [0, 68], sizes = [64, 4], strides = [1, 1]} : vector<64x96xf32> to vector<64x4xf32>
    %31 = tpu.transpose %29, [1, 0] : vector<64x4xf32> -> vector<4x64xf32>
    %cst_14 = arith.constant dense<0.000000e+00> : vector<64x64xf32>
    %32 = tpu.matmul %28, %31, %cst_14 {dimension_numbers = #tpu.dot_dimension_numbers<[1], [0], [0], [1], [0, 0, 1, 1], [], []>} : vector<64x4xf32>, vector<4x64xf32>, vector<64x64xf32> -> vector<64x64xf32>
    %33 = arith.addf %32, %9 : vector<64x64xf32>
    %cst_15 = arith.constant dense<0xFF800000> : vector<64xf32>
    %34 = vector.multi_reduction <maximumf>, %33, %cst_15 [1] : vector<64x64xf32> to vector<64xf32>
    %35 = vector.shape_cast %34 : vector<64xf32> to vector<64x1xf32>
    %36 = vector.broadcast %35 : vector<64x1xf32> to vector<64x64xf32>
    %37 = arith.subf %33, %36 : vector<64x64xf32>
    %38 = math.exp %37 : vector<64x64xf32>
    %cst_16 = arith.constant dense<0.000000e+00> : vector<64xf32>
    %39 = vector.multi_reduction <add>, %38, %cst_16 [1] : vector<64x64xf32> to vector<64xf32>
    %40 = vector.shape_cast %39 : vector<64xf32> to vector<64x1xf32>
    %41 = tpu.reciprocal %40 : vector<64x1xf32> -> vector<64x1xf32>
    %cst_17 = arith.constant dense<0.000000e+00> : vector<64x4xf32>
    %42 = tpu.matmul %38, %30, %cst_17 {dimension_numbers = #tpu.dot_dimension_numbers<[1], [0], [0], [1], [0, 0, 1, 1], [], []>} : vector<64x64xf32>, vector<64x4xf32>, vector<64x4xf32> -> vector<64x4xf32>
    %43 = vector.broadcast %41 : vector<64x1xf32> to vector<64x4xf32>
    %44 = arith.mulf %42, %43 : vector<64x4xf32>
    %c0_18 = arith.constant 0 : index
    %c4 = arith.constant 4 : index
    %45 = vector.load %arg8[%c0_18, %c4] : memref<64x32xf32, #tpu.memory_space<vmem>>, vector<64x4xf32>
    tpu.vector_store %arg8[%c0_18, %c4], %44 {strides = array<i32>} : memref<64x32xf32, #tpu.memory_space<vmem>>, vector<64x4xf32>,
    %46 = vector.extract_strided_slice %8 {offsets = [0, 8], sizes = [64, 4], strides = [1, 1]} : vector<64x96xf32> to vector<64x4xf32>
    %47 = vector.extract_strided_slice %8 {offsets = [0, 40], sizes = [64, 4], strides = [1, 1]} : vector<64x96xf32> to vector<64x4xf32>
    %48 = vector.extract_strided_slice %8 {offsets = [0, 72], sizes = [64, 4], strides = [1, 1]} : vector<64x96xf32> to vector<64x4xf32>
    %49 = tpu.transpose %47, [1, 0] : vector<64x4xf32> -> vector<4x64xf32>
    %cst_19 = arith.constant dense<0.000000e+00> : vector<64x64xf32>
    %50 = tpu.matmul %46, %49, %cst_19 {dimension_numbers = #tpu.dot_dimension_numbers<[1], [0], [0], [1], [0, 0, 1, 1], [], []>} : vector<64x4xf32>, vector<4x64xf32>, vector<64x64xf32> -> vector<64x64xf32>
    %51 = arith.addf %50, %9 : vector<64x64xf32>
    %cst_20 = arith.constant dense<0xFF800000> : vector<64xf32>
    %52 = vector.multi_reduction <maximumf>, %51, %cst_20 [1] : vector<64x64xf32> to vector<64xf32>
    %53 = vector.shape_cast %52 : vector<64xf32> to vector<64x1xf32>
    %54 = vector.broadcast %53 : vector<64x1xf32> to vector<64x64xf32>
    %55 = arith.subf %51, %54 : vector<64x64xf32>
    %56 = math.exp %55 : vector<64x64xf32>
    %cst_21 = arith.constant dense<0.000000e+00> : vector<64xf32>
    %57 = vector.multi_reduction <add>, %56, %cst_21 [1] : vector<64x64xf32> to vector<64xf32>
    %58 = vector.shape_cast %57 : vector<64xf32> to vector<64x1xf32>
    %59 = tpu.reciprocal %58 : vector<64x1xf32> -> vector<64x1xf32>
    %cst_22 = arith.constant dense<0.000000e+00> : vector<64x4xf32>
    %60 = tpu.matmul %56, %48, %cst_22 {dimension_numbers = #tpu.dot_dimension_numbers<[1], [0], [0], [1], [0, 0, 1, 1], [], []>} : vector<64x64xf32>, vector<64x4xf32>, vector<64x4xf32> -> vector<64x4xf32>
    %61 = vector.broadcast %59 : vector<64x1xf32> to vector<64x4xf32>
    %62 = arith.mulf %60, %61 : vector<64x4xf32>
    %c0_23 = arith.constant 0 : index
    %c8 = arith.constant 8 : index
    %63 = vector.load %arg8[%c0_23, %c8] : memref<64x32xf32, #tpu.memory_space<vmem>>, vector<64x4xf32>
    tpu.vector_store %arg8[%c0_23, %c8], %62 {strides = array<i32>} : memref<64x32xf32, #tpu.memory_space<vmem>>, vector<64x4xf32>,
    %64 = vector.extract_strided_slice %8 {offsets = [0, 12], sizes = [64, 4], strides = [1, 1]} : vector<64x96xf32> to vector<64x4xf32>
    %65 = vector.extract_strided_slice %8 {offsets = [0, 44], sizes = [64, 4], strides = [1, 1]} : vector<64x96xf32> to vector<64x4xf32>
    %66 = vector.extract_strided_slice %8 {offsets = [0, 76], sizes = [64, 4], strides = [1, 1]} : vector<64x96xf32> to vector<64x4xf32>
    %67 = tpu.transpose %65, [1, 0] : vector<64x4xf32> -> vector<4x64xf32>
    %cst_24 = arith.constant dense<0.000000e+00> : vector<64x64xf32>
    %68 = tpu.matmul %64, %67, %cst_24 {dimension_numbers = #tpu.dot_dimension_numbers<[1], [0], [0], [1], [0, 0, 1, 1], [], []>} : vector<64x4xf32>, vector<4x64xf32>, vector<64x64xf32> -> vector<64x64xf32>
    %69 = arith.addf %68, %9 : vector<64x64xf32>
    %cst_25 = arith.constant dense<0xFF800000> : vector<64xf32>
    %70 = vector.multi_reduction <maximumf>, %69, %cst_25 [1] : vector<64x64xf32> to vector<64xf32>
    %71 = vector.shape_cast %70 : vector<64xf32> to vector<64x1xf32>
    %72 = vector.broadcast %71 : vector<64x1xf32> to vector<64x64xf32>
    %73 = arith.subf %69, %72 : vector<64x64xf32>
    %74 = math.exp %73 : vector<64x64xf32>
    %cst_26 = arith.constant dense<0.000000e+00> : vector<64xf32>
    %75 = vector.multi_reduction <add>, %74, %cst_26 [1] : vector<64x64xf32> to vector<64xf32>
    %76 = vector.shape_cast %75 : vector<64xf32> to vector<64x1xf32>
    %77 = tpu.reciprocal %76 : vector<64x1xf32> -> vector<64x1xf32>
    %cst_27 = arith.constant dense<0.000000e+00> : vector<64x4xf32>
    %78 = tpu.matmul %74, %66, %cst_27 {dimension_numbers = #tpu.dot_dimension_numbers<[1], [0], [0], [1], [0, 0, 1, 1], [], []>} : vector<64x64xf32>, vector<64x4xf32>, vector<64x4xf32> -> vector<64x4xf32>
    %79 = vector.broadcast %77 : vector<64x1xf32> to vector<64x4xf32>
    %80 = arith.mulf %78, %79 : vector<64x4xf32>
    %c0_28 = arith.constant 0 : index
    %c12 = arith.constant 12 : index
    %81 = vector.load %arg8[%c0_28, %c12] : memref<64x32xf32, #tpu.memory_space<vmem>>, vector<64x4xf32>
    tpu.vector_store %arg8[%c0_28, %c12], %80 {strides = array<i32>} : memref<64x32xf32, #tpu.memory_space<vmem>>, vector<64x4xf32>,
    %82 = vector.extract_strided_slice %8 {offsets = [0, 16], sizes = [64, 4], strides = [1, 1]} : vector<64x96xf32> to vector<64x4xf32>
    %83 = vector.extract_strided_slice %8 {offsets = [0, 48], sizes = [64, 4], strides = [1, 1]} : vector<64x96xf32> to vector<64x4xf32>
    %84 = vector.extract_strided_slice %8 {offsets = [0, 80], sizes = [64, 4], strides = [1, 1]} : vector<64x96xf32> to vector<64x4xf32>
    %85 = tpu.transpose %83, [1, 0] : vector<64x4xf32> -> vector<4x64xf32>
    %cst_29 = arith.constant dense<0.000000e+00> : vector<64x64xf32>
    %86 = tpu.matmul %82, %85, %cst_29 {dimension_numbers = #tpu.dot_dimension_numbers<[1], [0], [0], [1], [0, 0, 1, 1], [], []>} : vector<64x4xf32>, vector<4x64xf32>, vector<64x64xf32> -> vector<64x64xf32>
    %87 = arith.addf %86, %9 : vector<64x64xf32>
    %cst_30 = arith.constant dense<0xFF800000> : vector<64xf32>
    %88 = vector.multi_reduction <maximumf>, %87, %cst_30 [1] : vector<64x64xf32> to vector<64xf32>
    %89 = vector.shape_cast %88 : vector<64xf32> to vector<64x1xf32>
    %90 = vector.broadcast %89 : vector<64x1xf32> to vector<64x64xf32>
    %91 = arith.subf %87, %90 : vector<64x64xf32>
    %92 = math.exp %91 : vector<64x64xf32>
    %cst_31 = arith.constant dense<0.000000e+00> : vector<64xf32>
    %93 = vector.multi_reduction <add>, %92, %cst_31 [1] : vector<64x64xf32> to vector<64xf32>
    %94 = vector.shape_cast %93 : vector<64xf32> to vector<64x1xf32>
    %95 = tpu.reciprocal %94 : vector<64x1xf32> -> vector<64x1xf32>
    %cst_32 = arith.constant dense<0.000000e+00> : vector<64x4xf32>
    %96 = tpu.matmul %92, %84, %cst_32 {dimension_numbers = #tpu.dot_dimension_numbers<[1], [0], [0], [1], [0, 0, 1, 1], [], []>} : vector<64x64xf32>, vector<64x4xf32>, vector<64x4xf32> -> vector<64x4xf32>
    %97 = vector.broadcast %95 : vector<64x1xf32> to vector<64x4xf32>
    %98 = arith.mulf %96, %97 : vector<64x4xf32>
    %c0_33 = arith.constant 0 : index
    %c16 = arith.constant 16 : index
    %99 = vector.load %arg8[%c0_33, %c16] : memref<64x32xf32, #tpu.memory_space<vmem>>, vector<64x4xf32>
    tpu.vector_store %arg8[%c0_33, %c16], %98 {strides = array<i32>} : memref<64x32xf32, #tpu.memory_space<vmem>>, vector<64x4xf32>,
    %100 = vector.extract_strided_slice %8 {offsets = [0, 20], sizes = [64, 4], strides = [1, 1]} : vector<64x96xf32> to vector<64x4xf32>
    %101 = vector.extract_strided_slice %8 {offsets = [0, 52], sizes = [64, 4], strides = [1, 1]} : vector<64x96xf32> to vector<64x4xf32>
    %102 = vector.extract_strided_slice %8 {offsets = [0, 84], sizes = [64, 4], strides = [1, 1]} : vector<64x96xf32> to vector<64x4xf32>
    %103 = tpu.transpose %101, [1, 0] : vector<64x4xf32> -> vector<4x64xf32>
    %cst_34 = arith.constant dense<0.000000e+00> : vector<64x64xf32>
    %104 = tpu.matmul %100, %103, %cst_34 {dimension_numbers = #tpu.dot_dimension_numbers<[1], [0], [0], [1], [0, 0, 1, 1], [], []>} : vector<64x4xf32>, vector<4x64xf32>, vector<64x64xf32> -> vector<64x64xf32>
    %105 = arith.addf %104, %9 : vector<64x64xf32>
    %cst_35 = arith.constant dense<0xFF800000> : vector<64xf32>
    %106 = vector.multi_reduction <maximumf>, %105, %cst_35 [1] : vector<64x64xf32> to vector<64xf32>
    %107 = vector.shape_cast %106 : vector<64xf32> to vector<64x1xf32>
    %108 = vector.broadcast %107 : vector<64x1xf32> to vector<64x64xf32>
    %109 = arith.subf %105, %108 : vector<64x64xf32>
    %110 = math.exp %109 : vector<64x64xf32>
    %cst_36 = arith.constant dense<0.000000e+00> : vector<64xf32>
    %111 = vector.multi_reduction <add>, %110, %cst_36 [1] : vector<64x64xf32> to vector<64xf32>
    %112 = vector.shape_cast %111 : vector<64xf32> to vector<64x1xf32>
    %113 = tpu.reciprocal %112 : vector<64x1xf32> -> vector<64x1xf32>
    %cst_37 = arith.constant dense<0.000000e+00> : vector<64x4xf32>
    %114 = tpu.matmul %110, %102, %cst_37 {dimension_numbers = #tpu.dot_dimension_numbers<[1], [0], [0], [1], [0, 0, 1, 1], [], []>} : vector<64x64xf32>, vector<64x4xf32>, vector<64x4xf32> -> vector<64x4xf32>
    %115 = vector.broadcast %113 : vector<64x1xf32> to vector<64x4xf32>
    %116 = arith.mulf %114, %115 : vector<64x4xf32>
    %c0_38 = arith.constant 0 : index
    %c20 = arith.constant 20 : index
    %117 = vector.load %arg8[%c0_38, %c20] : memref<64x32xf32, #tpu.memory_space<vmem>>, vector<64x4xf32>
    tpu.vector_store %arg8[%c0_38, %c20], %116 {strides = array<i32>} : memref<64x32xf32, #tpu.memory_space<vmem>>, vector<64x4xf32>,
    %118 = vector.extract_strided_slice %8 {offsets = [0, 24], sizes = [64, 4], strides = [1, 1]} : vector<64x96xf32> to vector<64x4xf32>
    %119 = vector.extract_strided_slice %8 {offsets = [0, 56], sizes = [64, 4], strides = [1, 1]} : vector<64x96xf32> to vector<64x4xf32>
    %120 = vector.extract_strided_slice %8 {offsets = [0, 88], sizes = [64, 4], strides = [1, 1]} : vector<64x96xf32> to vector<64x4xf32>
    %121 = tpu.transpose %119, [1, 0] : vector<64x4xf32> -> vector<4x64xf32>
    %cst_39 = arith.constant dense<0.000000e+00> : vector<64x64xf32>
    %122 = tpu.matmul %118, %121, %cst_39 {dimension_numbers = #tpu.dot_dimension_numbers<[1], [0], [0], [1], [0, 0, 1, 1], [], []>} : vector<64x4xf32>, vector<4x64xf32>, vector<64x64xf32> -> vector<64x64xf32>
    %123 = arith.addf %122, %9 : vector<64x64xf32>
    %cst_40 = arith.constant dense<0xFF800000> : vector<64xf32>
    %124 = vector.multi_reduction <maximumf>, %123, %cst_40 [1] : vector<64x64xf32> to vector<64xf32>
    %125 = vector.shape_cast %124 : vector<64xf32> to vector<64x1xf32>
    %126 = vector.broadcast %125 : vector<64x1xf32> to vector<64x64xf32>
    %127 = arith.subf %123, %126 : vector<64x64xf32>
    %128 = math.exp %127 : vector<64x64xf32>
    %cst_41 = arith.constant dense<0.000000e+00> : vector<64xf32>
    %129 = vector.multi_reduction <add>, %128, %cst_41 [1] : vector<64x64xf32> to vector<64xf32>
    %130 = vector.shape_cast %129 : vector<64xf32> to vector<64x1xf32>
    %131 = tpu.reciprocal %130 : vector<64x1xf32> -> vector<64x1xf32>
    %cst_42 = arith.constant dense<0.000000e+00> : vector<64x4xf32>
    %132 = tpu.matmul %128, %120, %cst_42 {dimension_numbers = #tpu.dot_dimension_numbers<[1], [0], [0], [1], [0, 0, 1, 1], [], []>} : vector<64x64xf32>, vector<64x4xf32>, vector<64x4xf32> -> vector<64x4xf32>
    %133 = vector.broadcast %131 : vector<64x1xf32> to vector<64x4xf32>
    %134 = arith.mulf %132, %133 : vector<64x4xf32>
    %c0_43 = arith.constant 0 : index
    %c24 = arith.constant 24 : index
    %135 = vector.load %arg8[%c0_43, %c24] : memref<64x32xf32, #tpu.memory_space<vmem>>, vector<64x4xf32>
    tpu.vector_store %arg8[%c0_43, %c24], %134 {strides = array<i32>} : memref<64x32xf32, #tpu.memory_space<vmem>>, vector<64x4xf32>,
    %136 = vector.extract_strided_slice %8 {offsets = [0, 28], sizes = [64, 4], strides = [1, 1]} : vector<64x96xf32> to vector<64x4xf32>
    %137 = vector.extract_strided_slice %8 {offsets = [0, 60], sizes = [64, 4], strides = [1, 1]} : vector<64x96xf32> to vector<64x4xf32>
    %138 = vector.extract_strided_slice %8 {offsets = [0, 92], sizes = [64, 4], strides = [1, 1]} : vector<64x96xf32> to vector<64x4xf32>
    %139 = tpu.transpose %137, [1, 0] : vector<64x4xf32> -> vector<4x64xf32>
    %cst_44 = arith.constant dense<0.000000e+00> : vector<64x64xf32>
    %140 = tpu.matmul %136, %139, %cst_44 {dimension_numbers = #tpu.dot_dimension_numbers<[1], [0], [0], [1], [0, 0, 1, 1], [], []>} : vector<64x4xf32>, vector<4x64xf32>, vector<64x64xf32> -> vector<64x64xf32>
    %141 = arith.addf %140, %9 : vector<64x64xf32>
    %cst_45 = arith.constant dense<0xFF800000> : vector<64xf32>
    %142 = vector.multi_reduction <maximumf>, %141, %cst_45 [1] : vector<64x64xf32> to vector<64xf32>
    %143 = vector.shape_cast %142 : vector<64xf32> to vector<64x1xf32>
    %144 = vector.broadcast %143 : vector<64x1xf32> to vector<64x64xf32>
    %145 = arith.subf %141, %144 : vector<64x64xf32>
    %146 = math.exp %145 : vector<64x64xf32>
    %cst_46 = arith.constant dense<0.000000e+00> : vector<64xf32>
    %147 = vector.multi_reduction <add>, %146, %cst_46 [1] : vector<64x64xf32> to vector<64xf32>
    %148 = vector.shape_cast %147 : vector<64xf32> to vector<64x1xf32>
    %149 = tpu.reciprocal %148 : vector<64x1xf32> -> vector<64x1xf32>
    %cst_47 = arith.constant dense<0.000000e+00> : vector<64x4xf32>
    %150 = tpu.matmul %146, %138, %cst_47 {dimension_numbers = #tpu.dot_dimension_numbers<[1], [0], [0], [1], [0, 0, 1, 1], [], []>} : vector<64x64xf32>, vector<64x4xf32>, vector<64x4xf32> -> vector<64x4xf32>
    %151 = vector.broadcast %149 : vector<64x1xf32> to vector<64x4xf32>
    %152 = arith.mulf %150, %151 : vector<64x4xf32>
    %c0_48 = arith.constant 0 : index
    %c28 = arith.constant 28 : index
    %153 = vector.load %arg8[%c0_48, %c28] : memref<64x32xf32, #tpu.memory_space<vmem>>, vector<64x4xf32>
    tpu.vector_store %arg8[%c0_48, %c28], %152 {strides = array<i32>} : memref<64x32xf32, #tpu.memory_space<vmem>>, vector<64x4xf32>,
    %c0_49 = arith.constant 0 : index
    %c0_50 = arith.constant 0 : index
    %154 = vector.load %arg8[%c0_49, %c0_50] : memref<64x32xf32, #tpu.memory_space<vmem>>, vector<64x32xf32>
    %c0_51 = arith.constant 0 : index
    %c0_52 = arith.constant 0 : index
    %155 = vector.load %arg4[%c0_51, %c0_52] : memref<32x32xf32, #tpu.memory_space<vmem>>, vector<32x32xf32>
    %cst_53 = arith.constant dense<0.000000e+00> : vector<64x32xf32>
    %156 = tpu.matmul %154, %155, %cst_53 {dimension_numbers = #tpu.dot_dimension_numbers<[1], [0], [0], [1], [0, 0, 1, 1], [], []>} : vector<64x32xf32>, vector<32x32xf32>, vector<64x32xf32> -> vector<64x32xf32>
    %c0_54 = arith.constant 0 : index
    %c0_55 = arith.constant 0 : index
    %157 = vector.load %arg5[%c0_54, %c0_55] : memref<1x32xf32, #tpu.memory_space<vmem>>, vector<1x32xf32>
    %158 = vector.shape_cast %157 : vector<1x32xf32> to vector<32xf32>
    %159 = vector.shape_cast %158 : vector<32xf32> to vector<1x32xf32>
    %160 = vector.broadcast %159 : vector<1x32xf32> to vector<64x32xf32>
    %161 = arith.addf %156, %160 : vector<64x32xf32>
    %162 = vector.shape_cast %161 : vector<64x32xf32> to vector<8x8x32xf32>
    %c0_56 = arith.constant 0 : index
    %c0_57 = arith.constant 0 : index
    %c0_58 = arith.constant 0 : index
    %163 = vector.load %arg7[%c0_56, %c0_57, %c0_58] : memref<8x8x32xf32, #tpu.memory_space<vmem>>, vector<8x8x32xf32>
    tpu.vector_store %arg7[%c0_56, %c0_57, %c0_58], %162 {strides = array<i32>} : memref<8x8x32xf32, #tpu.memory_space<vmem>>, vector<8x8x32xf32>,
    return
  }
  func.func @transform_0(%arg0: i32) -> (i32, i32, i32) {
    %c0_i32 = arith.constant 0 : i32
    %c0_i32_0 = arith.constant 0 : i32
    %c0_i32_1 = arith.constant 0 : i32
    %c0_i32_2 = arith.constant 0 : i32
    return %c0_i32, %c0_i32_0, %c0_i32_1 : i32, i32, i32
  }
  func.func @transform_1(%arg0: i32) -> (i32, i32) {
    %c0_i32 = arith.constant 0 : i32
    %c0_i32_0 = arith.constant 0 : i32
    %c0_i32_1 = arith.constant 0 : i32
    return %c0_i32, %c0_i32_0 : i32, i32
  }
  func.func @transform_2(%arg0: i32) -> (i32, i32) {
    %c0_i32 = arith.constant 0 : i32
    %c0_i32_0 = arith.constant 0 : i32
    %c0_i32_1 = arith.constant 0 : i32
    return %c0_i32, %c0_i32_0 : i32, i32
  }
  func.func @transform_3(%arg0: i32) -> (i32, i32) {
    %c0_i32 = arith.constant 0 : i32
    %c0_i32_0 = arith.constant 0 : i32
    %c0_i32_1 = arith.constant 0 : i32
    return %c0_i32, %c0_i32_0 : i32, i32
  }
  func.func @transform_4(%arg0: i32) -> (i32, i32) {
    %c0_i32 = arith.constant 0 : i32
    %c0_i32_0 = arith.constant 0 : i32
    %c0_i32_1 = arith.constant 0 : i32
    return %c0_i32, %c0_i32_0 : i32, i32
  }
  func.func @transform_5(%arg0: i32) -> (i32, i32) {
    %c0_i32 = arith.constant 0 : i32
    %c0_i32_0 = arith.constant 0 : i32
    %c0_i32_1 = arith.constant 0 : i32
    return %c0_i32, %c0_i32_0 : i32, i32
  }
  func.func @transform_6(%arg0: i32) -> (i32, i32, i32) {
    %c0_i32 = arith.constant 0 : i32
    %c0_i32_0 = arith.constant 0 : i32
    %c0_i32_1 = arith.constant 0 : i32
    %c0_i32_2 = arith.constant 0 : i32
    return %c0_i32, %c0_i32_0, %c0_i32_1 : i32, i32, i32
  }
}

</mosaic_0001>

<llo_original>
// kernel: tpu_custom_call.1
$region0: #{tpu_custom_call.1}
  #allocation0 [shape = 'u32[]', space=smem, size = 0x4, offset = 0x4, fixed_abs, tag = 'smem constant byte address 0x4 - core index']
  #allocation1 [shape = 'u32[72,128]{1,0:T(1,128)}', space=vmem, size = 0x9000, scoped, tag = 'internal scratch']
  #allocation2 [shape = 'f32[64,32]{1,0:T(8,128)}', space=vmem, size = 0x8000, scoped, tag = 'scratch operand']
  %s0 = inlined_call_operand.hbm [shape: f32[8,8,32], index: 0, kind: input, shape index: {}]
  %s1 = inlined_call_operand.hbm [shape: f32[32,96], index: 1, kind: input, shape index: {}]
  %s2 = inlined_call_operand.vmem [shape: f32[1,96], index: 2, kind: input, shape index: {}]
  %s3 = inlined_call_operand.hbm [shape: f32[32,32], index: 3, kind: input, shape index: {}]
  %s4 = inlined_call_operand.vmem [shape: f32[1,32], index: 4, kind: input, shape index: {}]
  %s5 = inlined_call_operand.hbm [shape: f32[64,64], index: 5, kind: input, shape index: {}]
  %s6 = inlined_call_operand.hbm [shape: f32[8,8,32], index: 6, kind: output, shape index: {}]
  %s7 = sld [smem:[#allocation0]]
  $region50: #{tpu_custom_call.1} parent=0
    _
  %s9 = ssub.s32 1, %s7
  %s10 = scalar_select 0, %s9, %s7
  $region1: #{tpu_custom_call.1} parent=0
    #allocation3 [shape = 'u8[32768]{0}', space=vmem, size = 0x8000, scoped, tag = 'input window, operand 0, single buffered']
    #allocation4 [shape = 's32[1]{0}', space=sflag, size = 0x4, scoped, tag = 'scoped memory for tpu_custom_call.1']
    #allocation5 [shape = 's32[1]{0}', space=sflag, size = 0x4, scoped, tag = 'scoped memory for tpu_custom_call.1']
    #allocation6 [shape = 'u8[16384]{0}', space=vmem, size = 0x4000, scoped, tag = 'input window, operand 1, single buffered']
    #allocation7 [shape = 's32[1]{0}', space=sflag, size = 0x4, scoped, tag = 'scoped memory for tpu_custom_call.1']
    #allocation8 [shape = 'u8[16384]{0}', space=vmem, size = 0x4000, scoped, tag = 'input window, operand 3, single buffered']
    #allocation9 [shape = 'u8[32768]{0}', space=vmem, size = 0x8000, scoped, tag = 'input window, operand 5, single buffered']
    #allocation10 [shape = 's32[1]{0}', space=sflag, size = 0x4, scoped, tag = 'scoped memory for tpu_custom_call.1']
    #allocation11 [shape = 'u8[32768]{0}', space=vmem, size = 0x8000, scoped, tag = 'output window, operand 0, single buffered']
    %11 = vsyncpa [#allocation4], 0
    %12 = vsyncpa [#allocation7], 0
    %13 = vsyncpa [#allocation10], 0
    %14 = vsyncpa [#allocation5], 0
    // Predicated region
    $region2: #{tpu_custom_call.1} parent=1 // pred_check
      _
    $region3: #{tpu_custom_call.1} parent=1 // pred_check_branch
      %16 = sbr.rel (0) target = $region5
    $region4: #{tpu_custom_call.1} parent=1 // pred_region
      %18 = vsyncadd [#allocation4], 0
      %s19 = sshll.u32 %s0, 4
      %s20 = int_to_ptr.hbm [resolvable:$true] %s19
      %s21 = sshll.u32 [#allocation3], 4
      %s22 = int_to_ptr.vmem [resolvable:$true] %s21
      %27 = dma.hbm_to_vmem [thread:$0]  %s20, 1024, %s22, [#allocation4], 128, 128, 8
    $region5: #{tpu_custom_call.1} parent=1 // pred_fallthru
      _
    // Predicated region
    $region6: #{tpu_custom_call.1} parent=1 // pred_check
      _
    $region7: #{tpu_custom_call.1} parent=1 // pred_check_branch
      %29 = sbr.rel (0) target = $region9
    $region8: #{tpu_custom_call.1} parent=1 // pred_region
      %31 = vsyncadd [#allocation7], 0
      %s32 = sshll.u32 %s1, 4
      %s33 = int_to_ptr.hbm [resolvable:$true] %s32
      %s34 = sshll.u32 [#allocation6], 4
      %s35 = int_to_ptr.vmem [resolvable:$true] %s34
      %40 = dma.hbm_to_vmem [thread:$0]  %s33, 512, %s35, [#allocation7], 128, 128, 8
    $region9: #{tpu_custom_call.1} parent=1 // pred_fallthru
      _
    // Predicated region
    $region10: #{tpu_custom_call.1} parent=1 // pred_check
      _
    $region11: #{tpu_custom_call.1} parent=1 // pred_check_branch
      %42 = sbr.rel (0) target = $region13
    $region12: #{tpu_custom_call.1} parent=1 // pred_region
      _
    $region13: #{tpu_custom_call.1} parent=1 // pred_fallthru
      _
    // Predicated region
    $region14: #{tpu_custom_call.1} parent=1 // pred_check
      _
    $region15: #{tpu_custom_call.1} parent=1 // pred_check_branch
      %44 = sbr.rel (0) target = $region17
    $region16: #{tpu_custom_call.1} parent=1 // pred_region
      %46 = vsyncadd [#allocation7], 0
      %s47 = sshll.u32 %s3, 4
      %s48 = int_to_ptr.hbm [resolvable:$true] %s47
      %s49 = sshll.u32 [#allocation8], 4
      %s50 = int_to_ptr.vmem [resolvable:$true] %s49
      %55 = dma.hbm_to_vmem [thread:$0]  %s48, 512, %s50, [#allocation7], 128, 128, 8
    $region17: #{tpu_custom_call.1} parent=1 // pred_fallthru
      _
    // Predicated region
    $region18: #{tpu_custom_call.1} parent=1 // pred_check
      _
    $region19: #{tpu_custom_call.1} parent=1 // pred_check_branch
      %57 = sbr.rel (0) target = $region21
    $region20: #{tpu_custom_call.1} parent=1 // pred_region
      _
    $region21: #{tpu_custom_call.1} parent=1 // pred_fallthru
      _
    // Predicated region
    $region22: #{tpu_custom_call.1} parent=1 // pred_check
      _
    $region23: #{tpu_custom_call.1} parent=1 // pred_check_branch
      %59 = sbr.rel (0) target = $region25
    $region24: #{tpu_custom_call.1} parent=1 // pred_region
      %61 = vsyncadd [#allocation10], 0
      %s62 = sshll.u32 %s5, 4
      %s63 = int_to_ptr.hbm [resolvable:$true] %s62
      %s64 = sshll.u32 [#allocation9], 4
      %s65 = int_to_ptr.vmem [resolvable:$true] %s64
      %70 = dma.hbm_to_vmem [thread:$0]  %s63, 1024, %s65, [#allocation10], 128, 128, 8
    $region25: #{tpu_custom_call.1} parent=1 // pred_fallthru
      _
    // Predicated region
    $region26: #{tpu_custom_call.1} parent=1 // pred_check
      _
    $region27: #{tpu_custom_call.1} parent=1 // pred_check_branch
      %72 = sbr.rel (0) target = $region29
    $region28: #{tpu_custom_call.1} parent=1 // pred_region
      %74 = dma.done [#allocation4], 1024
    $region29: #{tpu_custom_call.1} parent=1 // pred_fallthru
      _
    // Predicated region
    $region30: #{tpu_custom_call.1} parent=1 // pred_check
      _
    $region31: #{tpu_custom_call.1} parent=1 // pred_check_branch
      %76 = sbr.rel (0) target = $region33
    $region32: #{tpu_custom_call.1} parent=1 // pred_region
      %78 = dma.done [#allocation7], 512
    $region33: #{tpu_custom_call.1} parent=1 // pred_fallthru
      _
    // Predicated region
    $region34: #{tpu_custom_call.1} parent=1 // pred_check
      _
    $region35: #{tpu_custom_call.1} parent=1 // pred_check_branch
      %80 = sbr.rel (0) target = $region37
    $region36: #{tpu_custom_call.1} parent=1 // pred_region
      %82 = dma.done [#allocation7], 512
    $region37: #{tpu_custom_call.1} parent=1 // pred_fallthru
      _
    // Predicated region
    $region38: #{tpu_custom_call.1} parent=1 // pred_check
      _
    $region39: #{tpu_custom_call.1} parent=1 // pred_check_branch
      %84 = sbr.rel (0) target = $region41
    $region40: #{tpu_custom_call.1} parent=1 // pred_region
      %86 = dma.done [#allocation10], 1024
    $region41: #{tpu_custom_call.1} parent=1 // pred_fallthru
      _
    %v87 = vld [vmem:[#allocation3] sm:$0xff]
    %v88 = vld [vmem:[#allocation3 + $0x8] sm:$0xff]
    %v89 = vld [vmem:[#allocation3 + $0x10] sm:$0xff]
    %v90 = vld [vmem:[#allocation3 + $0x18] sm:$0xff]
    %v91 = vld [vmem:[#allocation3 + $0x20] sm:$0xff]
    %v92 = vld [vmem:[#allocation3 + $0x28] sm:$0xff]
    %v93 = vld [vmem:[#allocation3 + $0x30] sm:$0xff]
    %v94 = vld [vmem:[#allocation3 + $0x38] sm:$0xff]
    %v95 = vld [vmem:[#allocation6] sm:$0xff]
    %v96 = vld [vmem:[#allocation6 + $0x8] sm:$0xff]
    %v97 = vld [vmem:[#allocation6 + $0x10] sm:$0xff]
    %v98 = vld [vmem:[#allocation6 + $0x18] sm:$0xff]
    %v99 = vld [vmem:[%s2] sm:$0x1]
    %v101 = vperm.slane %v99, 0
    %vm103 = vcmask 261120
    %v105 = vsel %vm103, %v87, 0
    %v108 = vsel %vm103, %v88, 0
    %v111 = vsel %vm103, %v89, 0
    %v114 = vsel %vm103, %v90, 0
    %v117 = vsel %vm103, %v91, 0
    %v120 = vsel %vm103, %v92, 0
    %v123 = vsel %vm103, %v93, 0
    %v126 = vsel %vm103, %v94, 0
    %128 = vmatpush.msra.mxu0 0.0
    %129 = vmatpush.msra.mxu0 0.0
    %130 = vmatpush.msra.mxu0 0.0
    %131 = vmatpush.msra.mxu0 0.0
    %132 = vmatpush.msra.mxu0 0.0
    %133 = vmatpush.msra.mxu0 0.0
    %134 = vmatpush.msra.mxu0 0.0
    %135 = vmatpush.msra.mxu0 0.0
    %136 = vmatpush.msra.mxu0 0.0
    %137 = vmatpush.msra.mxu0 0.0
    %138 = vmatpush.msra.mxu0 0.0
    %139 = vmatpush.msra.mxu0 0.0
    %140 = vmatpush.msra.mxu0 %v98
    %141 = vmatpush.msra.mxu0 %v97
    %142 = vmatpush.msra.mxu0 %v96
    %143 = vmatpush.msra.mxu0 %v95
    %144 = vmatmul.f32.gmra.mxu0 %v105
    %v145 = vpop.f32.mrf.mxu0
    %v146 = vadd.f32 %v101, %v145
    %147 = vmatmul.f32.gmra.mxu0 %v108
    %v148 = vpop.f32.mrf.mxu0
    %v149 = vadd.f32 %v101, %v148
    %150 = vmatmul.f32.gmra.mxu0 %v111
    %v151 = vpop.f32.mrf.mxu0
    %v152 = vadd.f32 %v101, %v151
    %153 = vmatmul.f32.gmra.mxu0 %v114
    %v154 = vpop.f32.mrf.mxu0
    %v155 = vadd.f32 %v101, %v154
    %156 = vmatmul.f32.gmra.mxu0 %v117
    %v157 = vpop.f32.mrf.mxu0
    %v158 = vadd.f32 %v101, %v157
    %159 = vmatmul.f32.gmra.mxu0 %v120
    %v160 = vpop.f32.mrf.mxu0
    %v161 = vadd.f32 %v101, %v160
    %162 = vmatmul.f32.gmra.mxu0 %v123
    %v163 = vpop.f32.mrf.mxu0
    %v164 = vadd.f32 %v101, %v163
    %165 = vmatmul.f32.gmra.mxu0 %v126
    %v166 = vpop.f32.mrf.mxu0
    %v167 = vadd.f32 %v101, %v166
    %168 = vdwg.mxu0
    %v169 = vld [vmem:[#allocation9] sm:$0xff]
    %v170 = vld [vmem:[#allocation9 + $0x8] sm:$0xff]
    %v171 = vld [vmem:[#allocation9 + $0x10] sm:$0xff]
    %v172 = vld [vmem:[#allocation9 + $0x18] sm:$0xff]
    %v173 = vld [vmem:[#allocation9 + $0x20] sm:$0xff]
    %v174 = vld [vmem:[#allocation9 + $0x28] sm:$0xff]
    %v175 = vld [vmem:[#allocation9 + $0x30] sm:$0xff]
    %v176 = vld [vmem:[#allocation9 + $0x38] sm:$0xff]
    %185 = vrot.lane.b32.xlu0 %v146, 96
    %v186 = vpop.permute.xlu0 %185
    %187 = vrot.lane.b32.xlu0 %v149, 96
    %v188 = vpop.permute.xlu0 %187
    %189 = vrot.lane.b32.xlu0 %v152, 96
    %v190 = vpop.permute.xlu0 %189
    %191 = vrot.lane.b32.xlu0 %v155, 96
    %v192 = vpop.permute.xlu0 %191
    %193 = vrot.lane.b32.xlu0 %v158, 96
    %v194 = vpop.permute.xlu0 %193
    %195 = vrot.lane.b32.xlu0 %v161, 96
    %v196 = vpop.permute.xlu0 %195
    %197 = vrot.lane.b32.xlu0 %v164, 96
    %v198 = vpop.permute.xlu0 %197
    %199 = vrot.lane.b32.xlu0 %v167, 96
    %v200 = vpop.permute.xlu0 %199
    %vm201 = vcmask 31744
    %v202 = vsel %vm201, %v146, 0
    %v204 = vsel %vm201, %v149, 0
    %v206 = vsel %vm201, %v152, 0
    %v208 = vsel %vm201, %v155, 0
    %v210 = vsel %vm201, %v158, 0
    %v212 = vsel %vm201, %v161, 0
    %v214 = vsel %vm201, %v164, 0
    %v216 = vsel %vm201, %v167, 0
    %v218 = vsel %vm201, %v186, 0
    %v220 = vsel %vm201, %v188, 0
    %v222 = vsel %vm201, %v190, 0
    %v224 = vsel %vm201, %v192, 0
    %v226 = vsel %vm201, %v194, 0
    %v228 = vsel %vm201, %v196, 0
    %v230 = vsel %vm201, %v198, 0
    %v232 = vsel %vm201, %v200, 0
    %234 = vmatpush.xpose.msra.mxu0 0.0
    %235 = vmatpush.xpose.msra.mxu0 0.0
    %236 = vmatpush.xpose.msra.mxu0 0.0
    %237 = vmatpush.xpose.msra.mxu0 0.0
    %238 = vmatpush.xpose.msra.mxu0 0.0
    %239 = vmatpush.xpose.msra.mxu0 0.0
    %240 = vmatpush.xpose.msra.mxu0 0.0
    %241 = vmatpush.xpose.msra.mxu0 0.0
    %242 = vmatpush.xpose.msra.mxu0 %v232
    %243 = vmatpush.xpose.msra.mxu0 %v230
    %244 = vmatpush.xpose.msra.mxu0 %v228
    %245 = vmatpush.xpose.msra.mxu0 %v226
    %246 = vmatpush.xpose.msra.mxu0 %v224
    %247 = vmatpush.xpose.msra.mxu0 %v222
    %248 = vmatpush.xpose.msra.mxu0 %v220
    %249 = vmatpush.xpose.msra.mxu0 %v218
    %250 = vmatmul.f32.gmra.mxu0 %v202
    %v251 = vpop.f32.mrf.mxu0
    %v252 = vadd.f32 %v169, %v251
    %253 = vmatmul.f32.gmra.mxu0 %v204
    %v254 = vpop.f32.mrf.mxu0
    %v255 = vadd.f32 %v170, %v254
    %256 = vmatmul.f32.gmra.mxu0 %v206
    %v257 = vpop.f32.mrf.mxu0
    %v258 = vadd.f32 %v171, %v257
    %259 = vmatmul.f32.gmra.mxu0 %v208
    %v260 = vpop.f32.mrf.mxu0
    %v261 = vadd.f32 %v172, %v260
    %262 = vmatmul.f32.gmra.mxu0 %v210
    %v263 = vpop.f32.mrf.mxu0
    %v264 = vadd.f32 %v173, %v263
    %265 = vmatmul.f32.gmra.mxu0 %v212
    %v266 = vpop.f32.mrf.mxu0
    %v267 = vadd.f32 %v174, %v266
    %268 = vmatmul.f32.gmra.mxu0 %v214
    %v269 = vpop.f32.mrf.mxu0
    %v270 = vadd.f32 %v175, %v269
    %271 = vmatmul.f32.gmra.mxu0 %v216
    %v272 = vpop.f32.mrf.mxu0
    %v273 = vadd.f32 %v176, %v272
    %274 = vdwg.mxu0
    %vm275 = vcmask 523264
    %v276 = vsel %vm275, %v252, -inf
    %277 = vmax.xlane.f32.xlu0 %v276
    %v278 = vpop.xlane.xlu0 %277
    %v279 = vsel %vm275, %v255, -inf
    %280 = vmax.xlane.f32.xlu0 %v279
    %v281 = vpop.xlane.xlu0 %280
    %v282 = vsel %vm275, %v258, -inf
    %283 = vmax.xlane.f32.xlu0 %v282
    %v284 = vpop.xlane.xlu0 %283
    %v285 = vsel %vm275, %v261, -inf
    %286 = vmax.xlane.f32.xlu0 %v285
    %v287 = vpop.xlane.xlu0 %286
    %v288 = vsel %vm275, %v264, -inf
    %289 = vmax.xlane.f32.xlu0 %v288
    %v290 = vpop.xlane.xlu0 %289
    %v291 = vsel %vm275, %v267, -inf
    %292 = vmax.xlane.f32.xlu0 %v291
    %v293 = vpop.xlane.xlu0 %292
    %v294 = vsel %vm275, %v270, -inf
    %295 = vmax.xlane.f32.xlu0 %v294
    %v296 = vpop.xlane.xlu0 %295
    %v297 = vsel %vm275, %v273, -inf
    %298 = vmax.xlane.f32.xlu0 %v297
    %v299 = vpop.xlane.xlu0 %298
    %v300 = vsub.f32 %v252, %v278
    %v301 = vsub.f32 %v255, %v281
    %v302 = vsub.f32 %v258, %v284
    %v303 = vsub.f32 %v261, %v287
    %v304 = vsub.f32 %v264, %v290
    %v305 = vsub.f32 %v267, %v293
    %v306 = vsub.f32 %v270, %v296
    %v307 = vsub.f32 %v273, %v299
    %v308 = vmul.f32 %v300, 1.442695
    %v309 = vpow.pop %v308
    %v310 = vmul.f32 %v301, 1.442695
    %v311 = vpow.pop %v310
    %v312 = vmul.f32 %v302, 1.442695
    %v313 = vpow.pop %v312
    %v314 = vmul.f32 %v303, 1.442695
    %v315 = vpow.pop %v314
    %v316 = vmul.f32 %v304, 1.442695
    %v317 = vpow.pop %v316
    %v318 = vmul.f32 %v305, 1.442695
    %v319 = vpow.pop %v318
    %v320 = vmul.f32 %v306, 1.442695
    %v321 = vpow.pop %v320
    %v322 = vmul.f32 %v307, 1.442695
    %v323 = vpow.pop %v322
    %v324 = vsel %vm275, %v309, 0.0
    %325 = vadd.xlane.f32.xlu0 %v324
    %v326 = vpop.xlane.xlu0 %325
    %v327 = vsel %vm275, %v311, 0.0
    %328 = vadd.xlane.f32.xlu0 %v327
    %v329 = vpop.xlane.xlu0 %328
    %v330 = vsel %vm275, %v313, 0.0
    %331 = vadd.xlane.f32.xlu0 %v330
    %v332 = vpop.xlane.xlu0 %331
    %v333 = vsel %vm275, %v315, 0.0
    %334 = vadd.xlane.f32.xlu0 %v333
    %v335 = vpop.xlane.xlu0 %334
    %v336 = vsel %vm275, %v317, 0.0
    %337 = vadd.xlane.f32.xlu0 %v336
    %v338 = vpop.xlane.xlu0 %337
    %v339 = vsel %vm275, %v319, 0.0
    %340 = vadd.xlane.f32.xlu0 %v339
    %v341 = vpop.xlane.xlu0 %340
    %v342 = vsel %vm275, %v321, 0.0
    %343 = vadd.xlane.f32.xlu0 %v342
    %v344 = vpop.xlane.xlu0 %343
    %v345 = vsel %vm275, %v323, 0.0
    %346 = vadd.xlane.f32.xlu0 %v345
    %v347 = vpop.xlane.xlu0 %346
    %v348 = vrcp.pop %v326
    %v349 = vmul.f32 %v326, %v348
    %v350 = vsub.f32 1.0, %v349
    %v351 = vmul.f32 %v348, %v350
    %v352 = vadd.f32 %v348, %v351
    %vm353 = vweird.f32 %v326
    %vm354 = vweird.f32 %v348
    %vm355 = vmor %vm353, %vm354
    %v356 = vsel %vm355, %v348, %v352
    %v357 = vand.u32 2147483647, %v326
    %vm358 = vcmp.eq.f32.partialorder %v357, 8.507059e+37
    %v359 = vand.u32 %v326, 2147483648
    %v360 = vor.u32 1.1754944e-38, %v359
    %v361 = vsel %vm358, %v360, %v356
    %v362 = vrcp.pop %v329
    %v363 = vmul.f32 %v329, %v362
    %v364 = vsub.f32 1.0, %v363
    %v365 = vmul.f32 %v362, %v364
    %v366 = vadd.f32 %v362, %v365
    %vm367 = vweird.f32 %v329
    %vm368 = vweird.f32 %v362
    %vm369 = vmor %vm367, %vm368
    %v370 = vsel %vm369, %v362, %v366
    %v371 = vand.u32 2147483647, %v329
    %vm372 = vcmp.eq.f32.partialorder %v371, 8.507059e+37
    %v373 = vand.u32 %v329, 2147483648
    %v374 = vor.u32 1.1754944e-38, %v373
    %v375 = vsel %vm372, %v374, %v370
    %v376 = vrcp.pop %v332
    %v377 = vmul.f32 %v332, %v376
    %v378 = vsub.f32 1.0, %v377
    %v379 = vmul.f32 %v376, %v378
    %v380 = vadd.f32 %v376, %v379
    %vm381 = vweird.f32 %v332
    %vm382 = vweird.f32 %v376
    %vm383 = vmor %vm381, %vm382
    %v384 = vsel %vm383, %v376, %v380
    %v385 = vand.u32 2147483647, %v332
    %vm386 = vcmp.eq.f32.partialorder %v385, 8.507059e+37
    %v387 = vand.u32 %v332, 2147483648
    %v388 = vor.u32 1.1754944e-38, %v387
    %v389 = vsel %vm386, %v388, %v384
    %v390 = vrcp.pop %v335
    %v391 = vmul.f32 %v335, %v390
    %v392 = vsub.f32 1.0, %v391
    %v393 = vmul.f32 %v390, %v392
    %v394 = vadd.f32 %v390, %v393
    %vm395 = vweird.f32 %v335
    %vm396 = vweird.f32 %v390
    %vm397 = vmor %vm395, %vm396
    %v398 = vsel %vm397, %v390, %v394
    %v399 = vand.u32 2147483647, %v335
    %vm400 = vcmp.eq.f32.partialorder %v399, 8.507059e+37
    %v401 = vand.u32 %v335, 2147483648
    %v402 = vor.u32 1.1754944e-38, %v401
    %v403 = vsel %vm400, %v402, %v398
    %v404 = vrcp.pop %v338
    %v405 = vmul.f32 %v338, %v404
    %v406 = vsub.f32 1.0, %v405
    %v407 = vmul.f32 %v404, %v406
    %v408 = vadd.f32 %v404, %v407
    %vm409 = vweird.f32 %v338
    %vm410 = vweird.f32 %v404
    %vm411 = vmor %vm409, %vm410
    %v412 = vsel %vm411, %v404, %v408
    %v413 = vand.u32 2147483647, %v338
    %vm414 = vcmp.eq.f32.partialorder %v413, 8.507059e+37
    %v415 = vand.u32 %v338, 2147483648
    %v416 = vor.u32 1.1754944e-38, %v415
    %v417 = vsel %vm414, %v416, %v412
    %v418 = vrcp.pop %v341
    %v419 = vmul.f32 %v341, %v418
    %v420 = vsub.f32 1.0, %v419
    %v421 = vmul.f32 %v418, %v420
    %v422 = vadd.f32 %v418, %v421
    %vm423 = vweird.f32 %v341
    %vm424 = vweird.f32 %v418
    %vm425 = vmor %vm423, %vm424
    %v426 = vsel %vm425, %v418, %v422
    %v427 = vand.u32 2147483647, %v341
    %vm428 = vcmp.eq.f32.partialorder %v427, 8.507059e+37
    %v429 = vand.u32 %v341, 2147483648
    %v430 = vor.u32 1.1754944e-38, %v429
    %v431 = vsel %vm428, %v430, %v426
    %v432 = vrcp.pop %v344
    %v433 = vmul.f32 %v344, %v432
    %v434 = vsub.f32 1.0, %v433
    %v435 = vmul.f32 %v432, %v434
    %v436 = vadd.f32 %v432, %v435
    %vm437 = vweird.f32 %v344
    %vm438 = vweird.f32 %v432
    %vm439 = vmor %vm437, %vm438
    %v440 = vsel %vm439, %v432, %v436
    %v441 = vand.u32 2147483647, %v344
    %vm442 = vcmp.eq.f32.partialorder %v441, 8.507059e+37
    %v443 = vand.u32 %v344, 2147483648
    %v444 = vor.u32 1.1754944e-38, %v443
    %v445 = vsel %vm442, %v444, %v440
    %v446 = vrcp.pop %v347
    %v447 = vmul.f32 %v347, %v446
    %v448 = vsub.f32 1.0, %v447
    %v449 = vmul.f32 %v446, %v448
    %v450 = vadd.f32 %v446, %v449
    %vm451 = vweird.f32 %v347
    %vm452 = vweird.f32 %v446
    %vm453 = vmor %vm451, %vm452
    %v454 = vsel %vm453, %v446, %v450
    %v455 = vand.u32 2147483647, %v347
    %vm456 = vcmp.eq.f32.partialorder %v455, 8.507059e+37
    %v457 = vand.u32 %v347, 2147483648
    %v458 = vor.u32 1.1754944e-38, %v457
    %v459 = vsel %vm456, %v458, %v454
    %460 = vrot.lane.b32.xlu0 %v146, 64
    %v461 = vpop.permute.xlu0 %460
    %462 = vrot.lane.b32.xlu0 %v149, 64
    %v463 = vpop.permute.xlu0 %462
    %464 = vrot.lane.b32.xlu0 %v152, 64
    %v465 = vpop.permute.xlu0 %464
    %466 = vrot.lane.b32.xlu0 %v155, 64
    %v467 = vpop.permute.xlu0 %466
    %468 = vrot.lane.b32.xlu0 %v158, 64
    %v469 = vpop.permute.xlu0 %468
    %470 = vrot.lane.b32.xlu0 %v161, 64
    %v471 = vpop.permute.xlu0 %470
    %472 = vrot.lane.b32.xlu0 %v164, 64
    %v473 = vpop.permute.xlu0 %472
    %474 = vrot.lane.b32.xlu0 %v167, 64
    %v475 = vpop.permute.xlu0 %474
    %v485 = vsel %vm275, %v309, 0
    %v488 = vsel %vm275, %v311, 0
    %v491 = vsel %vm275, %v313, 0
    %v494 = vsel %vm275, %v315, 0
    %v497 = vsel %vm275, %v317, 0
    %v500 = vsel %vm275, %v319, 0
    %v503 = vsel %vm275, %v321, 0
    %v506 = vsel %vm275, %v323, 0
    %508 = vmatpush.msra.mxu0 0.0
    %509 = vmatpush.msra.mxu0 0.0
    %510 = vmatpush.msra.mxu0 0.0
    %511 = vmatpush.msra.mxu0 0.0
    %512 = vmatpush.msra.mxu0 0.0
    %513 = vmatpush.msra.mxu0 0.0
    %514 = vmatpush.msra.mxu0 0.0
    %515 = vmatpush.msra.mxu0 0.0
    %516 = vmatpush.msra.mxu0 %v475
    %517 = vmatpush.msra.mxu0 %v473
    %518 = vmatpush.msra.mxu0 %v471
    %519 = vmatpush.msra.mxu0 %v469
    %520 = vmatpush.msra.mxu0 %v467
    %521 = vmatpush.msra.mxu0 %v465
    %522 = vmatpush.msra.mxu0 %v463
    %523 = vmatpush.msra.mxu0 %v461
    %524 = vmatmul.f32.gmra.mxu0 %v485
    %v525 = vpop.f32.mrf.mxu0
    %v526 = vadd.f32 0.0, %v525
    %527 = vmatmul.f32.gmra.mxu0 %v488
    %v528 = vpop.f32.mrf.mxu0
    %v529 = vadd.f32 0.0, %v528
    %530 = vmatmul.f32.gmra.mxu0 %v491
    %v531 = vpop.f32.mrf.mxu0
    %v532 = vadd.f32 0.0, %v531
    %533 = vmatmul.f32.gmra.mxu0 %v494
    %v534 = vpop.f32.mrf.mxu0
    %v535 = vadd.f32 0.0, %v534
    %536 = vmatmul.f32.gmra.mxu0 %v497
    %v537 = vpop.f32.mrf.mxu0
    %v538 = vadd.f32 0.0, %v537
    %539 = vmatmul.f32.gmra.mxu0 %v500
    %v540 = vpop.f32.mrf.mxu0
    %v541 = vadd.f32 0.0, %v540
    %542 = vmatmul.f32.gmra.mxu0 %v503
    %v543 = vpop.f32.mrf.mxu0
    %v544 = vadd.f32 0.0, %v543
    %545 = vmatmul.f32.gmra.mxu0 %v506
    %v546 = vpop.f32.mrf.mxu0
    %v547 = vadd.f32 0.0, %v546
    %548 = vdwg.mxu0
    %v549 = vmul.f32 %v526, %v361
    %v550 = vmul.f32 %v529, %v375
    %v551 = vmul.f32 %v532, %v389
    %v552 = vmul.f32 %v535, %v403
    %v553 = vmul.f32 %v538, %v417
    %v554 = vmul.f32 %v541, %v431
    %v555 = vmul.f32 %v544, %v445
    %v556 = vmul.f32 %v547, %v459
    %557 = vst.msk [vmem:[#allocation2] sm:$0xff] %vm201, %v549
    %558 = vst.msk [vmem:[#allocation2 + $0x8] sm:$0xff] %vm201, %v550
    %559 = vst.msk [vmem:[#allocation2 + $0x10] sm:$0xff] %vm201, %v551
    %560 = vst.msk [vmem:[#allocation2 + $0x18] sm:$0xff] %vm201, %v552
    %561 = vst.msk [vmem:[#allocation2 + $0x20] sm:$0xff] %vm201, %v553
    %562 = vst.msk [vmem:[#allocation2 + $0x28] sm:$0xff] %vm201, %v554
    %563 = vst.msk [vmem:[#allocation2 + $0x30] sm:$0xff] %vm201, %v555
    %564 = vst.msk [vmem:[#allocation2 + $0x38] sm:$0xff] %vm201, %v556
    %565 = vrot.lane.b32.xlu0 %v146, 124
    %v566 = vpop.permute.xlu0 %565
    %567 = vrot.lane.b32.xlu0 %v149, 124
    %v568 = vpop.permute.xlu0 %567
    %569 = vrot.lane.b32.xlu0 %v152, 124
    %v570 = vpop.permute.xlu0 %569
    %571 = vrot.lane.b32.xlu0 %v155, 124
    %v572 = vpop.permute.xlu0 %571
    %573 = vrot.lane.b32.xlu0 %v158, 124
    %v574 = vpop.permute.xlu0 %573
    %575 = vrot.lane.b32.xlu0 %v161, 124
    %v576 = vpop.permute.xlu0 %575
    %577 = vrot.lane.b32.xlu0 %v164, 124
    %v578 = vpop.permute.xlu0 %577
    %579 = vrot.lane.b32.xlu0 %v167, 124
    %v580 = vpop.permute.xlu0 %579
    %581 = vrot.lane.b32.xlu0 %v146, 92
    %v582 = vpop.permute.xlu0 %581
    %583 = vrot.lane.b32.xlu0 %v149, 92
    %v584 = vpop.permute.xlu0 %583
    %585 = vrot.lane.b32.xlu0 %v152, 92
    %v586 = vpop.permute.xlu0 %585
    %587 = vrot.lane.b32.xlu0 %v155, 92
    %v588 = vpop.permute.xlu0 %587
    %589 = vrot.lane.b32.xlu0 %v158, 92
    %v590 = vpop.permute.xlu0 %589
    %591 = vrot.lane.b32.xlu0 %v161, 92
    %v592 = vpop.permute.xlu0 %591
    %593 = vrot.lane.b32.xlu0 %v164, 92
    %v594 = vpop.permute.xlu0 %593
    %595 = vrot.lane.b32.xlu0 %v167, 92
    %v596 = vpop.permute.xlu0 %595
    %v597 = vsel %vm201, %v566, 0
    %v599 = vsel %vm201, %v568, 0
    %v601 = vsel %vm201, %v570, 0
    %v603 = vsel %vm201, %v572, 0
    %v605 = vsel %vm201, %v574, 0
    %v607 = vsel %vm201, %v576, 0
    %v609 = vsel %vm201, %v578, 0
    %v611 = vsel %vm201, %v580, 0
    %v613 = vsel %vm201, %v582, 0
    %v615 = vsel %vm201, %v584, 0
    %v617 = vsel %vm201, %v586, 0
    %v619 = vsel %vm201, %v588, 0
    %v621 = vsel %vm201, %v590, 0
    %v623 = vsel %vm201, %v592, 0
    %v625 = vsel %vm201, %v594, 0
    %v627 = vsel %vm201, %v596, 0
    %629 = vmatpush.xpose.msra.mxu0 0.0
    %630 = vmatpush.xpose.msra.mxu0 0.0
    %631 = vmatpush.xpose.msra.mxu0 0.0
    %632 = vmatpush.xpose.msra.mxu0 0.0
    %633 = vmatpush.xpose.msra.mxu0 0.0
    %634 = vmatpush.xpose.msra.mxu0 0.0
    %635 = vmatpush.xpose.msra.mxu0 0.0
    %636 = vmatpush.xpose.msra.mxu0 0.0
    %637 = vmatpush.xpose.msra.mxu0 %v627
    %638 = vmatpush.xpose.msra.mxu0 %v625
    %639 = vmatpush.xpose.msra.mxu0 %v623
    %640 = vmatpush.xpose.msra.mxu0 %v621
    %641 = vmatpush.xpose.msra.mxu0 %v619
    %642 = vmatpush.xpose.msra.mxu0 %v617
    %643 = vmatpush.xpose.msra.mxu0 %v615
    %644 = vmatpush.xpose.msra.mxu0 %v613
    %645 = vmatmul.f32.gmra.mxu0 %v597
    %v646 = vpop.f32.mrf.mxu0
    %v647 = vadd.f32 %v169, %v646
    %648 = vmatmul.f32.gmra.mxu0 %v599
    %v649 = vpop.f32.mrf.mxu0
    %v650 = vadd.f32 %v170, %v649
    %651 = vmatmul.f32.gmra.mxu0 %v601
    %v652 = vpop.f32.mrf.mxu0
    %v653 = vadd.f32 %v171, %v652
    %654 = vmatmul.f32.gmra.mxu0 %v603
    %v655 = vpop.f32.mrf.mxu0
    %v656 = vadd.f32 %v172, %v655
    %657 = vmatmul.f32.gmra.mxu0 %v605
    %v658 = vpop.f32.mrf.mxu0
    %v659 = vadd.f32 %v173, %v658
    %660 = vmatmul.f32.gmra.mxu0 %v607
    %v661 = vpop.f32.mrf.mxu0
    %v662 = vadd.f32 %v174, %v661
    %663 = vmatmul.f32.gmra.mxu0 %v609
    %v664 = vpop.f32.mrf.mxu0
    %v665 = vadd.f32 %v175, %v664
    %666 = vmatmul.f32.gmra.mxu0 %v611
    %v667 = vpop.f32.mrf.mxu0
    %v668 = vadd.f32 %v176, %v667
    %669 = vdwg.mxu0
    %v670 = vsel %vm275, %v647, -inf
    %671 = vmax.xlane.f32.xlu0 %v670
    %v672 = vpop.xlane.xlu0 %671
    %v673 = vsel %vm275, %v650, -inf
    %674 = vmax.xlane.f32.xlu0 %v673
    %v675 = vpop.xlane.xlu0 %674
    %v676 = vsel %vm275, %v653, -inf
    %677 = vmax.xlane.f32.xlu0 %v676
    %v678 = vpop.xlane.xlu0 %677
    %v679 = vsel %vm275, %v656, -inf
    %680 = vmax.xlane.f32.xlu0 %v679
    %v681 = vpop.xlane.xlu0 %680
    %v682 = vsel %vm275, %v659, -inf
    %683 = vmax.xlane.f32.xlu0 %v682
    %v684 = vpop.xlane.xlu0 %683
    %v685 = vsel %vm275, %v662, -inf
    %686 = vmax.xlane.f32.xlu0 %v685
    %v687 = vpop.xlane.xlu0 %686
    %v688 = vsel %vm275, %v665, -inf
    %689 = vmax.xlane.f32.xlu0 %v688
    %v690 = vpop.xlane.xlu0 %689
    %v691 = vsel %vm275, %v668, -inf
    %692 = vmax.xlane.f32.xlu0 %v691
    %v693 = vpop.xlane.xlu0 %692
    %v694 = vsub.f32 %v647, %v672
    %v695 = vsub.f32 %v650, %v675
    %v696 = vsub.f32 %v653, %v678
    %v697 = vsub.f32 %v656, %v681
    %v698 = vsub.f32 %v659, %v684
    %v699 = vsub.f32 %v662, %v687
    %v700 = vsub.f32 %v665, %v690
    %v701 = vsub.f32 %v668, %v693
    %v702 = vmul.f32 %v694, 1.442695
    %v703 = vpow.pop %v702
    %v704 = vmul.f32 %v695, 1.442695
    %v705 = vpow.pop %v704
    %v706 = vmul.f32 %v696, 1.442695
    %v707 = vpow.pop %v706
    %v708 = vmul.f32 %v697, 1.442695
    %v709 = vpow.pop %v708
    %v710 = vmul.f32 %v698, 1.442695
    %v711 = vpow.pop %v710
    %v712 = vmul.f32 %v699, 1.442695
    %v713 = vpow.pop %v712
    %v714 = vmul.f32 %v700, 1.442695
    %v715 = vpow.pop %v714
    %v716 = vmul.f32 %v701, 1.442695
    %v717 = vpow.pop %v716
    %v718 = vsel %vm275, %v703, 0.0
    %719 = vadd.xlane.f32.xlu0 %v718
    %v720 = vpop.xlane.xlu0 %719
    %v721 = vsel %vm275, %v705, 0.0
    %722 = vadd.xlane.f32.xlu0 %v721
    %v723 = vpop.xlane.xlu0 %722
    %v724 = vsel %vm275, %v707, 0.0
    %725 = vadd.xlane.f32.xlu0 %v724
    %v726 = vpop.xlane.xlu0 %725
    %v727 = vsel %vm275, %v709, 0.0
    %728 = vadd.xlane.f32.xlu0 %v727
    %v729 = vpop.xlane.xlu0 %728
    %v730 = vsel %vm275, %v711, 0.0
    %731 = vadd.xlane.f32.xlu0 %v730
    %v732 = vpop.xlane.xlu0 %731
    %v733 = vsel %vm275, %v713, 0.0
    %734 = vadd.xlane.f32.xlu0 %v733
    %v735 = vpop.xlane.xlu0 %734
    %v736 = vsel %vm275, %v715, 0.0
    %737 = vadd.xlane.f32.xlu0 %v736
    %v738 = vpop.xlane.xlu0 %737
    %v739 = vsel %vm275, %v717, 0.0
    %740 = vadd.xlane.f32.xlu0 %v739
    %v741 = vpop.xlane.xlu0 %740
    %v742 = vrcp.pop %v720
    %v743 = vmul.f32 %v720, %v742
    %v744 = vsub.f32 1.0, %v743
    %v745 = vmul.f32 %v742, %v744
    %v746 = vadd.f32 %v742, %v745
    %vm747 = vweird.f32 %v720
    %vm748 = vweird.f32 %v742
    %vm749 = vmor %vm747, %vm748
    %v750 = vsel %vm749, %v742, %v746
    %v751 = vand.u32 2147483647, %v720
    %vm752 = vcmp.eq.f32.partialorder %v751, 8.507059e+37
    %v753 = vand.u32 %v720, 2147483648
    %v754 = vor.u32 1.1754944e-38, %v753
    %v755 = vsel %vm752, %v754, %v750
    %v756 = vrcp.pop %v723
    %v757 = vmul.f32 %v723, %v756
    %v758 = vsub.f32 1.0, %v757
    %v759 = vmul.f32 %v756, %v758
    %v760 = vadd.f32 %v756, %v759
    %vm761 = vweird.f32 %v723
    %vm762 = vweird.f32 %v756
    %vm763 = vmor %vm761, %vm762
    %v764 = vsel %vm763, %v756, %v760
    %v765 = vand.u32 2147483647, %v723
    %vm766 = vcmp.eq.f32.partialorder %v765, 8.507059e+37
    %v767 = vand.u32 %v723, 2147483648
    %v768 = vor.u32 1.1754944e-38, %v767
    %v769 = vsel %vm766, %v768, %v764
    %v770 = vrcp.pop %v726
    %v771 = vmul.f32 %v726, %v770
    %v772 = vsub.f32 1.0, %v771
    %v773 = vmul.f32 %v770, %v772
    %v774 = vadd.f32 %v770, %v773
    %vm775 = vweird.f32 %v726
    %vm776 = vweird.f32 %v770
    %vm777 = vmor %vm775, %vm776
    %v778 = vsel %vm777, %v770, %v774
    %v779 = vand.u32 2147483647, %v726
    %vm780 = vcmp.eq.f32.partialorder %v779, 8.507059e+37
    %v781 = vand.u32 %v726, 2147483648
    %v782 = vor.u32 1.1754944e-38, %v781
    %v783 = vsel %vm780, %v782, %v778
    %v784 = vrcp.pop %v729
    %v785 = vmul.f32 %v729, %v784
    %v786 = vsub.f32 1.0, %v785
    %v787 = vmul.f32 %v784, %v786
    %v788 = vadd.f32 %v784, %v787
    %vm789 = vweird.f32 %v729
    %vm790 = vweird.f32 %v784
    %vm791 = vmor %vm789, %vm790
    %v792 = vsel %vm791, %v784, %v788
    %v793 = vand.u32 2147483647, %v729
    %vm794 = vcmp.eq.f32.partialorder %v793, 8.507059e+37
    %v795 = vand.u32 %v729, 2147483648
    %v796 = vor.u32 1.1754944e-38, %v795
    %v797 = vsel %vm794, %v796, %v792
    %v798 = vrcp.pop %v732
    %v799 = vmul.f32 %v732, %v798
    %v800 = vsub.f32 1.0, %v799
    %v801 = vmul.f32 %v798, %v800
    %v802 = vadd.f32 %v798, %v801
    %vm803 = vweird.f32 %v732
    %vm804 = vweird.f32 %v798
    %vm805 = vmor %vm803, %vm804
    %v806 = vsel %vm805, %v798, %v802
    %v807 = vand.u32 2147483647, %v732
    %vm808 = vcmp.eq.f32.partialorder %v807, 8.507059e+37
    %v809 = vand.u32 %v732, 2147483648
    %v810 = vor.u32 1.1754944e-38, %v809
    %v811 = vsel %vm808, %v810, %v806
    %v812 = vrcp.pop %v735
    %v813 = vmul.f32 %v735, %v812
    %v814 = vsub.f32 1.0, %v813
    %v815 = vmul.f32 %v812, %v814
    %v816 = vadd.f32 %v812, %v815
    %vm817 = vweird.f32 %v735
    %vm818 = vweird.f32 %v812
    %vm819 = vmor %vm817, %vm818
    %v820 = vsel %vm819, %v812, %v816
    %v821 = vand.u32 2147483647, %v735
    %vm822 = vcmp.eq.f32.partialorder %v821, 8.507059e+37
    %v823 = vand.u32 %v735, 2147483648
    %v824 = vor.u32 1.1754944e-38, %v823
    %v825 = vsel %vm822, %v824, %v820
    %v826 = vrcp.pop %v738
    %v827 = vmul.f32 %v738, %v826
    %v828 = vsub.f32 1.0, %v827
    %v829 = vmul.f32 %v826, %v828
    %v830 = vadd.f32 %v826, %v829
    %vm831 = vweird.f32 %v738
    %vm832 = vweird.f32 %v826
    %vm833 = vmor %vm831, %vm832
    %v834 = vsel %vm833, %v826, %v830
    %v835 = vand.u32 2147483647, %v738
    %vm836 = vcmp.eq.f32.partialorder %v835, 8.507059e+37
    %v837 = vand.u32 %v738, 2147483648
    %v838 = vor.u32 1.1754944e-38, %v837
    %v839 = vsel %vm836, %v838, %v834
    %v840 = vrcp.pop %v741
    %v841 = vmul.f32 %v741, %v840
    %v842 = vsub.f32 1.0, %v841
    %v843 = vmul.f32 %v840, %v842
    %v844 = vadd.f32 %v840, %v843
    %vm845 = vweird.f32 %v741
    %vm846 = vweird.f32 %v840
    %vm847 = vmor %vm845, %vm846
    %v848 = vsel %vm847, %v840, %v844
    %v849 = vand.u32 2147483647, %v741
    %vm850 = vcmp.eq.f32.partialorder %v849, 8.507059e+37
    %v851 = vand.u32 %v741, 2147483648
    %v852 = vor.u32 1.1754944e-38, %v851
    %v853 = vsel %vm850, %v852, %v848
    %854 = vrot.lane.b32.xlu0 %v146, 60
    %v855 = vpop.permute.xlu0 %854
    %856 = vrot.lane.b32.xlu0 %v149, 60
    %v857 = vpop.permute.xlu0 %856
    %858 = vrot.lane.b32.xlu0 %v152, 60
    %v859 = vpop.permute.xlu0 %858
    %860 = vrot.lane.b32.xlu0 %v155, 60
    %v861 = vpop.permute.xlu0 %860
    %862 = vrot.lane.b32.xlu0 %v158, 60
    %v863 = vpop.permute.xlu0 %862
    %864 = vrot.lane.b32.xlu0 %v161, 60
    %v865 = vpop.permute.xlu0 %864
    %866 = vrot.lane.b32.xlu0 %v164, 60
    %v867 = vpop.permute.xlu0 %866
    %868 = vrot.lane.b32.xlu0 %v167, 60
    %v869 = vpop.permute.xlu0 %868
    %v879 = vsel %vm275, %v703, 0
    %v882 = vsel %vm275, %v705, 0
    %v885 = vsel %vm275, %v707, 0
    %v888 = vsel %vm275, %v709, 0
    %v891 = vsel %vm275, %v711, 0
    %v894 = vsel %vm275, %v713, 0
    %v897 = vsel %vm275, %v715, 0
    %v900 = vsel %vm275, %v717, 0
    %902 = vmatpush.msra.mxu0 0.0
    %903 = vmatpush.msra.mxu0 0.0
    %904 = vmatpush.msra.mxu0 0.0
    %905 = vmatpush.msra.mxu0 0.0
    %906 = vmatpush.msra.mxu0 0.0
    %907 = vmatpush.msra.mxu0 0.0
    %908 = vmatpush.msra.mxu0 0.0
    %909 = vmatpush.msra.mxu0 0.0
    %910 = vmatpush.msra.mxu0 %v869
    %911 = vmatpush.msra.mxu0 %v867
    %912 = vmatpush.msra.mxu0 %v865
    %913 = vmatpush.msra.mxu0 %v863
    %914 = vmatpush.msra.mxu0 %v861
    %915 = vmatpush.msra.mxu0 %v859
    %916 = vmatpush.msra.mxu0 %v857
    %917 = vmatpush.msra.mxu0 %v855
    %918 = vmatmul.f32.gmra.mxu0 %v879
    %v919 = vpop.f32.mrf.mxu0
    %v920 = vadd.f32 0.0, %v919
    %921 = vmatmul.f32.gmra.mxu0 %v882
    %v922 = vpop.f32.mrf.mxu0
    %v923 = vadd.f32 0.0, %v922
    %924 = vmatmul.f32.gmra.mxu0 %v885
    %v925 = vpop.f32.mrf.mxu0
    %v926 = vadd.f32 0.0, %v925
    %927 = vmatmul.f32.gmra.mxu0 %v888
    %v928 = vpop.f32.mrf.mxu0
    %v929 = vadd.f32 0.0, %v928
    %930 = vmatmul.f32.gmra.mxu0 %v891
    %v931 = vpop.f32.mrf.mxu0
    %v932 = vadd.f32 0.0, %v931
    %933 = vmatmul.f32.gmra.mxu0 %v894
    %v934 = vpop.f32.mrf.mxu0
    %v935 = vadd.f32 0.0, %v934
    %936 = vmatmul.f32.gmra.mxu0 %v897
    %v937 = vpop.f32.mrf.mxu0
    %v938 = vadd.f32 0.0, %v937
    %939 = vmatmul.f32.gmra.mxu0 %v900
    %v940 = vpop.f32.mrf.mxu0
    %v941 = vadd.f32 0.0, %v940
    %942 = vdwg.mxu0
    %v943 = vmul.f32 %v920, %v755
    %v944 = vmul.f32 %v923, %v769
    %v945 = vmul.f32 %v926, %v783
    %v946 = vmul.f32 %v929, %v797
    %v947 = vmul.f32 %v932, %v811
    %v948 = vmul.f32 %v935, %v825
    %v949 = vmul.f32 %v938, %v839
    %v950 = vmul.f32 %v941, %v853
    %959 = vrot.lane.b32.xlu0 %v943, 4
    %v960 = vpop.permute.xlu0 %959
    %961 = vrot.lane.b32.xlu0 %v944, 4
    %v962 = vpop.permute.xlu0 %961
    %963 = vrot.lane.b32.xlu0 %v945, 4
    %v964 = vpop.permute.xlu0 %963
    %965 = vrot.lane.b32.xlu0 %v946, 4
    %v966 = vpop.permute.xlu0 %965
    %967 = vrot.lane.b32.xlu0 %v947, 4
    %v968 = vpop.permute.xlu0 %967
    %969 = vrot.lane.b32.xlu0 %v948, 4
    %v970 = vpop.permute.xlu0 %969
    %971 = vrot.lane.b32.xlu0 %v949, 4
    %v972 = vpop.permute.xlu0 %971
    %973 = vrot.lane.b32.xlu0 %v950, 4
    %v974 = vpop.permute.xlu0 %973
    %vm983 = vcmask 64544
    %984 = vst.msk [vmem:[#allocation2] sm:$0xff] %vm983, %v960
    %985 = vst.msk [vmem:[#allocation2 + $0x8] sm:$0xff] %vm983, %v962
    %986 = vst.msk [vmem:[#allocation2 + $0x10] sm:$0xff] %vm983, %v964
    %987 = vst.msk [vmem:[#allocation2 + $0x18] sm:$0xff] %vm983, %v966
    %988 = vst.msk [vmem:[#allocation2 + $0x20] sm:$0xff] %vm983, %v968
    %989 = vst.msk [vmem:[#allocation2 + $0x28] sm:$0xff] %vm983, %v970
    %990 = vst.msk [vmem:[#allocation2 + $0x30] sm:$0xff] %vm983, %v972
    %991 = vst.msk [vmem:[#allocation2 + $0x38] sm:$0xff] %vm983, %v974
    %992 = vrot.lane.b32.xlu0 %v146, 120
    %v993 = vpop.permute.xlu0 %992
    %994 = vrot.lane.b32.xlu0 %v149, 120
    %v995 = vpop.permute.xlu0 %994
    %996 = vrot.lane.b32.xlu0 %v152, 120
    %v997 = vpop.permute.xlu0 %996
    %998 = vrot.lane.b32.xlu0 %v155, 120
    %v999 = vpop.permute.xlu0 %998
    %1000 = vrot.lane.b32.xlu0 %v158, 120
    %v1001 = vpop.permute.xlu0 %1000
    %1002 = vrot.lane.b32.xlu0 %v161, 120
    %v1003 = vpop.permute.xlu0 %1002
    %1004 = vrot.lane.b32.xlu0 %v164, 120
    %v1005 = vpop.permute.xlu0 %1004
    %1006 = vrot.lane.b32.xlu0 %v167, 120
    %v1007 = vpop.permute.xlu0 %1006
    %1008 = vrot.lane.b32.xlu0 %v146, 88
    %v1009 = vpop.permute.xlu0 %1008
    %1010 = vrot.lane.b32.xlu0 %v149, 88
    %v1011 = vpop.permute.xlu0 %1010
    %1012 = vrot.lane.b32.xlu0 %v152, 88
    %v1013 = vpop.permute.xlu0 %1012
    %1014 = vrot.lane.b32.xlu0 %v155, 88
    %v1015 = vpop.permute.xlu0 %1014
    %1016 = vrot.lane.b32.xlu0 %v158, 88
    %v1017 = vpop.permute.xlu0 %1016
    %1018 = vrot.lane.b32.xlu0 %v161, 88
    %v1019 = vpop.permute.xlu0 %1018
    %1020 = vrot.lane.b32.xlu0 %v164, 88
    %v1021 = vpop.permute.xlu0 %1020
    %1022 = vrot.lane.b32.xlu0 %v167, 88
    %v1023 = vpop.permute.xlu0 %1022
    %v1024 = vsel %vm201, %v993, 0
    %v1026 = vsel %vm201, %v995, 0
    %v1028 = vsel %vm201, %v997, 0
    %v1030 = vsel %vm201, %v999, 0
    %v1032 = vsel %vm201, %v1001, 0
    %v1034 = vsel %vm201, %v1003, 0
    %v1036 = vsel %vm201, %v1005, 0
    %v1038 = vsel %vm201, %v1007, 0
    %v1040 = vsel %vm201, %v1009, 0
    %v1042 = vsel %vm201, %v1011, 0
    %v1044 = vsel %vm201, %v1013, 0
    %v1046 = vsel %vm201, %v1015, 0
    %v1048 = vsel %vm201, %v1017, 0
    %v1050 = vsel %vm201, %v1019, 0
    %v1052 = vsel %vm201, %v1021, 0
    %v1054 = vsel %vm201, %v1023, 0
    %1056 = vmatpush.xpose.msra.mxu0 0.0
    %1057 = vmatpush.xpose.msra.mxu0 0.0
    %1058 = vmatpush.xpose.msra.mxu0 0.0
    %1059 = vmatpush.xpose.msra.mxu0 0.0
    %1060 = vmatpush.xpose.msra.mxu0 0.0
    %1061 = vmatpush.xpose.msra.mxu0 0.0
    %1062 = vmatpush.xpose.msra.mxu0 0.0
    %1063 = vmatpush.xpose.msra.mxu0 0.0
    %1064 = vmatpush.xpose.msra.mxu0 %v1054
    %1065 = vmatpush.xpose.msra.mxu0 %v1052
    %1066 = vmatpush.xpose.msra.mxu0 %v1050
    %1067 = vmatpush.xpose.msra.mxu0 %v1048
    %1068 = vmatpush.xpose.msra.mxu0 %v1046
    %1069 = vmatpush.xpose.msra.mxu0 %v1044
    %1070 = vmatpush.xpose.msra.mxu0 %v1042
    %1071 = vmatpush.xpose.msra.mxu0 %v1040
    %1072 = vmatmul.f32.gmra.mxu0 %v1024
    %v1073 = vpop.f32.mrf.mxu0
    %v1074 = vadd.f32 %v169, %v1073
    %1075 = vmatmul.f32.gmra.mxu0 %v1026
    %v1076 = vpop.f32.mrf.mxu0
    %v1077 = vadd.f32 %v170, %v1076
    %1078 = vmatmul.f32.gmra.mxu0 %v1028
    %v1079 = vpop.f32.mrf.mxu0
    %v1080 = vadd.f32 %v171, %v1079
    %1081 = vmatmul.f32.gmra.mxu0 %v1030
    %v1082 = vpop.f32.mrf.mxu0
    %v1083 = vadd.f32 %v172, %v1082
    %1084 = vmatmul.f32.gmra.mxu0 %v1032
    %v1085 = vpop.f32.mrf.mxu0
    %v1086 = vadd.f32 %v173, %v1085
    %1087 = vmatmul.f32.gmra.mxu0 %v1034
    %v1088 = vpop.f32.mrf.mxu0
    %v1089 = vadd.f32 %v174, %v1088
    %1090 = vmatmul.f32.gmra.mxu0 %v1036
    %v1091 = vpop.f32.mrf.mxu0
    %v1092 = vadd.f32 %v175, %v1091
    %1093 = vmatmul.f32.gmra.mxu0 %v1038
    %v1094 = vpop.f32.mrf.mxu0
    %v1095 = vadd.f32 %v176, %v1094
    %1096 = vdwg.mxu0
    %v1097 = vsel %vm275, %v1074, -inf
    %1098 = vmax.xlane.f32.xlu0 %v1097
    %v1099 = vpop.xlane.xlu0 %1098
    %v1100 = vsel %vm275, %v1077, -inf
    %1101 = vmax.xlane.f32.xlu0 %v1100
    %v1102 = vpop.xlane.xlu0 %1101
    %v1103 = vsel %vm275, %v1080, -inf
    %1104 = vmax.xlane.f32.xlu0 %v1103
    %v1105 = vpop.xlane.xlu0 %1104
    %v1106 = vsel %vm275, %v1083, -inf
    %1107 = vmax.xlane.f32.xlu0 %v1106
    %v1108 = vpop.xlane.xlu0 %1107
    %v1109 = vsel %vm275, %v1086, -inf
    %1110 = vmax.xlane.f32.xlu0 %v1109
    %v1111 = vpop.xlane.xlu0 %1110
    %v1112 = vsel %vm275, %v1089, -inf
    %1113 = vmax.xlane.f32.xlu0 %v1112
    %v1114 = vpop.xlane.xlu0 %1113
    %v1115 = vsel %vm275, %v1092, -inf
    %1116 = vmax.xlane.f32.xlu0 %v1115
    %v1117 = vpop.xlane.xlu0 %1116
    %v1118 = vsel %vm275, %v1095, -inf
    %1119 = vmax.xlane.f32.xlu0 %v1118
    %v1120 = vpop.xlane.xlu0 %1119
    %v1121 = vsub.f32 %v1074, %v1099
    %v1122 = vsub.f32 %v1077, %v1102
    %v1123 = vsub.f32 %v1080, %v1105
    %v1124 = vsub.f32 %v1083, %v1108
    %v1125 = vsub.f32 %v1086, %v1111
    %v1126 = vsub.f32 %v1089, %v1114
    %v1127 = vsub.f32 %v1092, %v1117
    %v1128 = vsub.f32 %v1095, %v1120
    %v1129 = vmul.f32 %v1121, 1.442695
    %v1130 = vpow.pop %v1129
    %v1131 = vmul.f32 %v1122, 1.442695
    %v1132 = vpow.pop %v1131
    %v1133 = vmul.f32 %v1123, 1.442695
    %v1134 = vpow.pop %v1133
    %v1135 = vmul.f32 %v1124, 1.442695
    %v1136 = vpow.pop %v1135
    %v1137 = vmul.f32 %v1125, 1.442695
    %v1138 = vpow.pop %v1137
    %v1139 = vmul.f32 %v1126, 1.442695
    %v1140 = vpow.pop %v1139
    %v1141 = vmul.f32 %v1127, 1.442695
    %v1142 = vpow.pop %v1141
    %v1143 = vmul.f32 %v1128, 1.442695
    %v1144 = vpow.pop %v1143
    %v1145 = vsel %vm275, %v1130, 0.0
    %1146 = vadd.xlane.f32.xlu0 %v1145
    %v1147 = vpop.xlane.xlu0 %1146
    %v1148 = vsel %vm275, %v1132, 0.0
    %1149 = vadd.xlane.f32.xlu0 %v1148
    %v1150 = vpop.xlane.xlu0 %1149
    %v1151 = vsel %vm275, %v1134, 0.0
    %1152 = vadd.xlane.f32.xlu0 %v1151
    %v1153 = vpop.xlane.xlu0 %1152
    %v1154 = vsel %vm275, %v1136, 0.0
    %1155 = vadd.xlane.f32.xlu0 %v1154
    %v1156 = vpop.xlane.xlu0 %1155
    %v1157 = vsel %vm275, %v1138, 0.0
    %1158 = vadd.xlane.f32.xlu0 %v1157
    %v1159 = vpop.xlane.xlu0 %1158
    %v1160 = vsel %vm275, %v1140, 0.0
    %1161 = vadd.xlane.f32.xlu0 %v1160
    %v1162 = vpop.xlane.xlu0 %1161
    %v1163 = vsel %vm275, %v1142, 0.0
    %1164 = vadd.xlane.f32.xlu0 %v1163
    %v1165 = vpop.xlane.xlu0 %1164
    %v1166 = vsel %vm275, %v1144, 0.0
    %1167 = vadd.xlane.f32.xlu0 %v1166
    %v1168 = vpop.xlane.xlu0 %1167
    %v1169 = vrcp.pop %v1147
    %v1170 = vmul.f32 %v1147, %v1169
    %v1171 = vsub.f32 1.0, %v1170
    %v1172 = vmul.f32 %v1169, %v1171
    %v1173 = vadd.f32 %v1169, %v1172
    %vm1174 = vweird.f32 %v1147
    %vm1175 = vweird.f32 %v1169
    %vm1176 = vmor %vm1174, %vm1175
    %v1177 = vsel %vm1176, %v1169, %v1173
    %v1178 = vand.u32 2147483647, %v1147
    %vm1179 = vcmp.eq.f32.partialorder %v1178, 8.507059e+37
    %v1180 = vand.u32 %v1147, 2147483648
    %v1181 = vor.u32 1.1754944e-38, %v1180
    %v1182 = vsel %vm1179, %v1181, %v1177
    %v1183 = vrcp.pop %v1150
    %v1184 = vmul.f32 %v1150, %v1183
    %v1185 = vsub.f32 1.0, %v1184
    %v1186 = vmul.f32 %v1183, %v1185
    %v1187 = vadd.f32 %v1183, %v1186
    %vm1188 = vweird.f32 %v1150
    %vm1189 = vweird.f32 %v1183
    %vm1190 = vmor %vm1188, %vm1189
    %v1191 = vsel %vm1190, %v1183, %v1187
    %v1192 = vand.u32 2147483647, %v1150
    %vm1193 = vcmp.eq.f32.partialorder %v1192, 8.507059e+37
    %v1194 = vand.u32 %v1150, 2147483648
    %v1195 = vor.u32 1.1754944e-38, %v1194
    %v1196 = vsel %vm1193, %v1195, %v1191
    %v1197 = vrcp.pop %v1153
    %v1198 = vmul.f32 %v1153, %v1197
    %v1199 = vsub.f32 1.0, %v1198
    %v1200 = vmul.f32 %v1197, %v1199
    %v1201 = vadd.f32 %v1197, %v1200
    %vm1202 = vweird.f32 %v1153
    %vm1203 = vweird.f32 %v1197
    %vm1204 = vmor %vm1202, %vm1203
    %v1205 = vsel %vm1204, %v1197, %v1201
    %v1206 = vand.u32 2147483647, %v1153
    %vm1207 = vcmp.eq.f32.partialorder %v1206, 8.507059e+37
    %v1208 = vand.u32 %v1153, 2147483648
    %v1209 = vor.u32 1.1754944e-38, %v1208
    %v1210 = vsel %vm1207, %v1209, %v1205
    %v1211 = vrcp.pop %v1156
    %v1212 = vmul.f32 %v1156, %v1211
    %v1213 = vsub.f32 1.0, %v1212
    %v1214 = vmul.f32 %v1211, %v1213
    %v1215 = vadd.f32 %v1211, %v1214
    %vm1216 = vweird.f32 %v1156
    %vm1217 = vweird.f32 %v1211
    %vm1218 = vmor %vm1216, %vm1217
    %v1219 = vsel %vm1218, %v1211, %v1215
    %v1220 = vand.u32 2147483647, %v1156
    %vm1221 = vcmp.eq.f32.partialorder %v1220, 8.507059e+37
    %v1222 = vand.u32 %v1156, 2147483648
    %v1223 = vor.u32 1.1754944e-38, %v1222
    %v1224 = vsel %vm1221, %v1223, %v1219
    %v1225 = vrcp.pop %v1159
    %v1226 = vmul.f32 %v1159, %v1225
    %v1227 = vsub.f32 1.0, %v1226
    %v1228 = vmul.f32 %v1225, %v1227
    %v1229 = vadd.f32 %v1225, %v1228
    %vm1230 = vweird.f32 %v1159
    %vm1231 = vweird.f32 %v1225
    %vm1232 = vmor %vm1230, %vm1231
    %v1233 = vsel %vm1232, %v1225, %v1229
    %v1234 = vand.u32 2147483647, %v1159
    %vm1235 = vcmp.eq.f32.partialorder %v1234, 8.507059e+37
    %v1236 = vand.u32 %v1159, 2147483648
    %v1237 = vor.u32 1.1754944e-38, %v1236
    %v1238 = vsel %vm1235, %v1237, %v1233
    %v1239 = vrcp.pop %v1162
    %v1240 = vmul.f32 %v1162, %v1239
    %v1241 = vsub.f32 1.0, %v1240
    %v1242 = vmul.f32 %v1239, %v1241
    %v1243 = vadd.f32 %v1239, %v1242
    %vm1244 = vweird.f32 %v1162
    %vm1245 = vweird.f32 %v1239
    %vm1246 = vmor %vm1244, %vm1245
    %v1247 = vsel %vm1246, %v1239, %v1243
    %v1248 = vand.u32 2147483647, %v1162
    %vm1249 = vcmp.eq.f32.partialorder %v1248, 8.507059e+37
    %v1250 = vand.u32 %v1162, 2147483648
    %v1251 = vor.u32 1.1754944e-38, %v1250
    %v1252 = vsel %vm1249, %v1251, %v1247
    %v1253 = vrcp.pop %v1165
    %v1254 = vmul.f32 %v1165, %v1253
    %v1255 = vsub.f32 1.0, %v1254
    %v1256 = vmul.f32 %v1253, %v1255
    %v1257 = vadd.f32 %v1253, %v1256
    %vm1258 = vweird.f32 %v1165
    %vm1259 = vweird.f32 %v1253
    %vm1260 = vmor %vm1258, %vm1259
    %v1261 = vsel %vm1260, %v1253, %v1257
    %v1262 = vand.u32 2147483647, %v1165
    %vm1263 = vcmp.eq.f32.partialorder %v1262, 8.507059e+37
    %v1264 = vand.u32 %v1165, 2147483648
    %v1265 = vor.u32 1.1754944e-38, %v1264
    %v1266 = vsel %vm1263, %v1265, %v1261
    %v1267 = vrcp.pop %v1168
    %v1268 = vmul.f32 %v1168, %v1267
    %v1269 = vsub.f32 1.0, %v1268
    %v1270 = vmul.f32 %v1267, %v1269
    %v1271 = vadd.f32 %v1267, %v1270
    %vm1272 = vweird.f32 %v1168
    %vm1273 = vweird.f32 %v1267
    %vm1274 = vmor %vm1272, %vm1273
    %v1275 = vsel %vm1274, %v1267, %v1271
    %v1276 = vand.u32 2147483647, %v1168
    %vm1277 = vcmp.eq.f32.partialorder %v1276, 8.507059e+37
    %v1278 = vand.u32 %v1168, 2147483648
    %v1279 = vor.u32 1.1754944e-38, %v1278
    %v1280 = vsel %vm1277, %v1279, %v1275
    %1281 = vrot.lane.b32.xlu0 %v146, 56
    %v1282 = vpop.permute.xlu0 %1281
    %1283 = vrot.lane.b32.xlu0 %v149, 56
    %v1284 = vpop.permute.xlu0 %1283
    %1285 = vrot.lane.b32.xlu0 %v152, 56
    %v1286 = vpop.permute.xlu0 %1285
    %1287 = vrot.lane.b32.xlu0 %v155, 56
    %v1288 = vpop.permute.xlu0 %1287
    %1289 = vrot.lane.b32.xlu0 %v158, 56
    %v1290 = vpop.permute.xlu0 %1289
    %1291 = vrot.lane.b32.xlu0 %v161, 56
    %v1292 = vpop.permute.xlu0 %1291
    %1293 = vrot.lane.b32.xlu0 %v164, 56
    %v1294 = vpop.permute.xlu0 %1293
    %1295 = vrot.lane.b32.xlu0 %v167, 56
    %v1296 = vpop.permute.xlu0 %1295
    %v1306 = vsel %vm275, %v1130, 0
    %v1309 = vsel %vm275, %v1132, 0
    %v1312 = vsel %vm275, %v1134, 0
    %v1315 = vsel %vm275, %v1136, 0
    %v1318 = vsel %vm275, %v1138, 0
    %v1321 = vsel %vm275, %v1140, 0
    %v1324 = vsel %vm275, %v1142, 0
    %v1327 = vsel %vm275, %v1144, 0
    %1329 = vmatpush.msra.mxu0 0.0
    %1330 = vmatpush.msra.mxu0 0.0
    %1331 = vmatpush.msra.mxu0 0.0
    %1332 = vmatpush.msra.mxu0 0.0
    %1333 = vmatpush.msra.mxu0 0.0
    %1334 = vmatpush.msra.mxu0 0.0
    %1335 = vmatpush.msra.mxu0 0.0
    %1336 = vmatpush.msra.mxu0 0.0
    %1337 = vmatpush.msra.mxu0 %v1296
    %1338 = vmatpush.msra.mxu0 %v1294
    %1339 = vmatpush.msra.mxu0 %v1292
    %1340 = vmatpush.msra.mxu0 %v1290
    %1341 = vmatpush.msra.mxu0 %v1288
    %1342 = vmatpush.msra.mxu0 %v1286
    %1343 = vmatpush.msra.mxu0 %v1284
    %1344 = vmatpush.msra.mxu0 %v1282
    %1345 = vmatmul.f32.gmra.mxu0 %v1306
    %v1346 = vpop.f32.mrf.mxu0
    %v1347 = vadd.f32 0.0, %v1346
    %1348 = vmatmul.f32.gmra.mxu0 %v1309
    %v1349 = vpop.f32.mrf.mxu0
    %v1350 = vadd.f32 0.0, %v1349
    %1351 = vmatmul.f32.gmra.mxu0 %v1312
    %v1352 = vpop.f32.mrf.mxu0
    %v1353 = vadd.f32 0.0, %v1352
    %1354 = vmatmul.f32.gmra.mxu0 %v1315
    %v1355 = vpop.f32.mrf.mxu0
    %v1356 = vadd.f32 0.0, %v1355
    %1357 = vmatmul.f32.gmra.mxu0 %v1318
    %v1358 = vpop.f32.mrf.mxu0
    %v1359 = vadd.f32 0.0, %v1358
    %1360 = vmatmul.f32.gmra.mxu0 %v1321
    %v1361 = vpop.f32.mrf.mxu0
    %v1362 = vadd.f32 0.0, %v1361
    %1363 = vmatmul.f32.gmra.mxu0 %v1324
    %v1364 = vpop.f32.mrf.mxu0
    %v1365 = vadd.f32 0.0, %v1364
    %1366 = vmatmul.f32.gmra.mxu0 %v1327
    %v1367 = vpop.f32.mrf.mxu0
    %v1368 = vadd.f32 0.0, %v1367
    %1369 = vdwg.mxu0
    %v1370 = vmul.f32 %v1347, %v1182
    %v1371 = vmul.f32 %v1350, %v1196
    %v1372 = vmul.f32 %v1353, %v1210
    %v1373 = vmul.f32 %v1356, %v1224
    %v1374 = vmul.f32 %v1359, %v1238
    %v1375 = vmul.f32 %v1362, %v1252
    %v1376 = vmul.f32 %v1365, %v1266
    %v1377 = vmul.f32 %v1368, %v1280
    %1386 = vrot.lane.b32.xlu0 %v1370, 8
    %v1387 = vpop.permute.xlu0 %1386
    %1388 = vrot.lane.b32.xlu0 %v1371, 8
    %v1389 = vpop.permute.xlu0 %1388
    %1390 = vrot.lane.b32.xlu0 %v1372, 8
    %v1391 = vpop.permute.xlu0 %1390
    %1392 = vrot.lane.b32.xlu0 %v1373, 8
    %v1393 = vpop.permute.xlu0 %1392
    %1394 = vrot.lane.b32.xlu0 %v1374, 8
    %v1395 = vpop.permute.xlu0 %1394
    %1396 = vrot.lane.b32.xlu0 %v1375, 8
    %v1397 = vpop.permute.xlu0 %1396
    %1398 = vrot.lane.b32.xlu0 %v1376, 8
    %v1399 = vpop.permute.xlu0 %1398
    %1400 = vrot.lane.b32.xlu0 %v1377, 8
    %v1401 = vpop.permute.xlu0 %1400
    %vm1410 = vcmask 97344
    %1411 = vst.msk [vmem:[#allocation2] sm:$0xff] %vm1410, %v1387
    %1412 = vst.msk [vmem:[#allocation2 + $0x8] sm:$0xff] %vm1410, %v1389
    %1413 = vst.msk [vmem:[#allocation2 + $0x10] sm:$0xff] %vm1410, %v1391
    %1414 = vst.msk [vmem:[#allocation2 + $0x18] sm:$0xff] %vm1410, %v1393
    %1415 = vst.msk [vmem:[#allocation2 + $0x20] sm:$0xff] %vm1410, %v1395
    %1416 = vst.msk [vmem:[#allocation2 + $0x28] sm:$0xff] %vm1410, %v1397
    %1417 = vst.msk [vmem:[#allocation2 + $0x30] sm:$0xff] %vm1410, %v1399
    %1418 = vst.msk [vmem:[#allocation2 + $0x38] sm:$0xff] %vm1410, %v1401
    %1419 = vrot.lane.b32.xlu0 %v146, 116
    %v1420 = vpop.permute.xlu0 %1419
    %1421 = vrot.lane.b32.xlu0 %v149, 116
    %v1422 = vpop.permute.xlu0 %1421
    %1423 = vrot.lane.b32.xlu0 %v152, 116
    %v1424 = vpop.permute.xlu0 %1423
    %1425 = vrot.lane.b32.xlu0 %v155, 116
    %v1426 = vpop.permute.xlu0 %1425
    %1427 = vrot.lane.b32.xlu0 %v158, 116
    %v1428 = vpop.permute.xlu0 %1427
    %1429 = vrot.lane.b32.xlu0 %v161, 116
    %v1430 = vpop.permute.xlu0 %1429
    %1431 = vrot.lane.b32.xlu0 %v164, 116
    %v1432 = vpop.permute.xlu0 %1431
    %1433 = vrot.lane.b32.xlu0 %v167, 116
    %v1434 = vpop.permute.xlu0 %1433
    %1435 = vrot.lane.b32.xlu0 %v146, 84
    %v1436 = vpop.permute.xlu0 %1435
    %1437 = vrot.lane.b32.xlu0 %v149, 84
    %v1438 = vpop.permute.xlu0 %1437
    %1439 = vrot.lane.b32.xlu0 %v152, 84
    %v1440 = vpop.permute.xlu0 %1439
    %1441 = vrot.lane.b32.xlu0 %v155, 84
    %v1442 = vpop.permute.xlu0 %1441
    %1443 = vrot.lane.b32.xlu0 %v158, 84
    %v1444 = vpop.permute.xlu0 %1443
    %1445 = vrot.lane.b32.xlu0 %v161, 84
    %v1446 = vpop.permute.xlu0 %1445
    %1447 = vrot.lane.b32.xlu0 %v164, 84
    %v1448 = vpop.permute.xlu0 %1447
    %1449 = vrot.lane.b32.xlu0 %v167, 84
    %v1450 = vpop.permute.xlu0 %1449
    %v1451 = vsel %vm201, %v1420, 0
    %v1453 = vsel %vm201, %v1422, 0
    %v1455 = vsel %vm201, %v1424, 0
    %v1457 = vsel %vm201, %v1426, 0
    %v1459 = vsel %vm201, %v1428, 0
    %v1461 = vsel %vm201, %v1430, 0
    %v1463 = vsel %vm201, %v1432, 0
    %v1465 = vsel %vm201, %v1434, 0
    %v1467 = vsel %vm201, %v1436, 0
    %v1469 = vsel %vm201, %v1438, 0
    %v1471 = vsel %vm201, %v1440, 0
    %v1473 = vsel %vm201, %v1442, 0
    %v1475 = vsel %vm201, %v1444, 0
    %v1477 = vsel %vm201, %v1446, 0
    %v1479 = vsel %vm201, %v1448, 0
    %v1481 = vsel %vm201, %v1450, 0
    %1483 = vmatpush.xpose.msra.mxu0 0.0
    %1484 = vmatpush.xpose.msra.mxu0 0.0
    %1485 = vmatpush.xpose.msra.mxu0 0.0
    %1486 = vmatpush.xpose.msra.mxu0 0.0
    %1487 = vmatpush.xpose.msra.mxu0 0.0
    %1488 = vmatpush.xpose.msra.mxu0 0.0
    %1489 = vmatpush.xpose.msra.mxu0 0.0
    %1490 = vmatpush.xpose.msra.mxu0 0.0
    %1491 = vmatpush.xpose.msra.mxu0 %v1481
    %1492 = vmatpush.xpose.msra.mxu0 %v1479
    %1493 = vmatpush.xpose.msra.mxu0 %v1477
    %1494 = vmatpush.xpose.msra.mxu0 %v1475
    %1495 = vmatpush.xpose.msra.mxu0 %v1473
    %1496 = vmatpush.xpose.msra.mxu0 %v1471
    %1497 = vmatpush.xpose.msra.mxu0 %v1469
    %1498 = vmatpush.xpose.msra.mxu0 %v1467
    %1499 = vmatmul.f32.gmra.mxu0 %v1451
    %v1500 = vpop.f32.mrf.mxu0
    %v1501 = vadd.f32 %v169, %v1500
    %1502 = vmatmul.f32.gmra.mxu0 %v1453
    %v1503 = vpop.f32.mrf.mxu0
    %v1504 = vadd.f32 %v170, %v1503
    %1505 = vmatmul.f32.gmra.mxu0 %v1455
    %v1506 = vpop.f32.mrf.mxu0
    %v1507 = vadd.f32 %v171, %v1506
    %1508 = vmatmul.f32.gmra.mxu0 %v1457
    %v1509 = vpop.f32.mrf.mxu0
    %v1510 = vadd.f32 %v172, %v1509
    %1511 = vmatmul.f32.gmra.mxu0 %v1459
    %v1512 = vpop.f32.mrf.mxu0
    %v1513 = vadd.f32 %v173, %v1512
    %1514 = vmatmul.f32.gmra.mxu0 %v1461
    %v1515 = vpop.f32.mrf.mxu0
    %v1516 = vadd.f32 %v174, %v1515
    %1517 = vmatmul.f32.gmra.mxu0 %v1463
    %v1518 = vpop.f32.mrf.mxu0
    %v1519 = vadd.f32 %v175, %v1518
    %1520 = vmatmul.f32.gmra.mxu0 %v1465
    %v1521 = vpop.f32.mrf.mxu0
    %v1522 = vadd.f32 %v176, %v1521
    %1523 = vdwg.mxu0
    %v1524 = vsel %vm275, %v1501, -inf
    %1525 = vmax.xlane.f32.xlu0 %v1524
    %v1526 = vpop.xlane.xlu0 %1525
    %v1527 = vsel %vm275, %v1504, -inf
    %1528 = vmax.xlane.f32.xlu0 %v1527
    %v1529 = vpop.xlane.xlu0 %1528
    %v1530 = vsel %vm275, %v1507, -inf
    %1531 = vmax.xlane.f32.xlu0 %v1530
    %v1532 = vpop.xlane.xlu0 %1531
    %v1533 = vsel %vm275, %v1510, -inf
    %1534 = vmax.xlane.f32.xlu0 %v1533
    %v1535 = vpop.xlane.xlu0 %1534
    %v1536 = vsel %vm275, %v1513, -inf
    %1537 = vmax.xlane.f32.xlu0 %v1536
    %v1538 = vpop.xlane.xlu0 %1537
    %v1539 = vsel %vm275, %v1516, -inf
    %1540 = vmax.xlane.f32.xlu0 %v1539
    %v1541 = vpop.xlane.xlu0 %1540
    %v1542 = vsel %vm275, %v1519, -inf
    %1543 = vmax.xlane.f32.xlu0 %v1542
    %v1544 = vpop.xlane.xlu0 %1543
    %v1545 = vsel %vm275, %v1522, -inf
    %1546 = vmax.xlane.f32.xlu0 %v1545
    %v1547 = vpop.xlane.xlu0 %1546
    %v1548 = vsub.f32 %v1501, %v1526
    %v1549 = vsub.f32 %v1504, %v1529
    %v1550 = vsub.f32 %v1507, %v1532
    %v1551 = vsub.f32 %v1510, %v1535
    %v1552 = vsub.f32 %v1513, %v1538
    %v1553 = vsub.f32 %v1516, %v1541
    %v1554 = vsub.f32 %v1519, %v1544
    %v1555 = vsub.f32 %v1522, %v1547
    %v1556 = vmul.f32 %v1548, 1.442695
    %v1557 = vpow.pop %v1556
    %v1558 = vmul.f32 %v1549, 1.442695
    %v1559 = vpow.pop %v1558
    %v1560 = vmul.f32 %v1550, 1.442695
    %v1561 = vpow.pop %v1560
    %v1562 = vmul.f32 %v1551, 1.442695
    %v1563 = vpow.pop %v1562
    %v1564 = vmul.f32 %v1552, 1.442695
    %v1565 = vpow.pop %v1564
    %v1566 = vmul.f32 %v1553, 1.442695
    %v1567 = vpow.pop %v1566
    %v1568 = vmul.f32 %v1554, 1.442695
    %v1569 = vpow.pop %v1568
    %v1570 = vmul.f32 %v1555, 1.442695
    %v1571 = vpow.pop %v1570
    %v1572 = vsel %vm275, %v1557, 0.0
    %1573 = vadd.xlane.f32.xlu0 %v1572
    %v1574 = vpop.xlane.xlu0 %1573
    %v1575 = vsel %vm275, %v1559, 0.0
    %1576 = vadd.xlane.f32.xlu0 %v1575
    %v1577 = vpop.xlane.xlu0 %1576
    %v1578 = vsel %vm275, %v1561, 0.0
    %1579 = vadd.xlane.f32.xlu0 %v1578
    %v1580 = vpop.xlane.xlu0 %1579
    %v1581 = vsel %vm275, %v1563, 0.0
    %1582 = vadd.xlane.f32.xlu0 %v1581
    %v1583 = vpop.xlane.xlu0 %1582
    %v1584 = vsel %vm275, %v1565, 0.0
    %1585 = vadd.xlane.f32.xlu0 %v1584
    %v1586 = vpop.xlane.xlu0 %1585
    %v1587 = vsel %vm275, %v1567, 0.0
    %1588 = vadd.xlane.f32.xlu0 %v1587
    %v1589 = vpop.xlane.xlu0 %1588
    %v1590 = vsel %vm275, %v1569, 0.0
    %1591 = vadd.xlane.f32.xlu0 %v1590
    %v1592 = vpop.xlane.xlu0 %1591
    %v1593 = vsel %vm275, %v1571, 0.0
    %1594 = vadd.xlane.f32.xlu0 %v1593
    %v1595 = vpop.xlane.xlu0 %1594
    %v1596 = vrcp.pop %v1574
    %v1597 = vmul.f32 %v1574, %v1596
    %v1598 = vsub.f32 1.0, %v1597
    %v1599 = vmul.f32 %v1596, %v1598
    %v1600 = vadd.f32 %v1596, %v1599
    %vm1601 = vweird.f32 %v1574
    %vm1602 = vweird.f32 %v1596
    %vm1603 = vmor %vm1601, %vm1602
    %v1604 = vsel %vm1603, %v1596, %v1600
    %v1605 = vand.u32 2147483647, %v1574
    %vm1606 = vcmp.eq.f32.partialorder %v1605, 8.507059e+37
    %v1607 = vand.u32 %v1574, 2147483648
    %v1608 = vor.u32 1.1754944e-38, %v1607
    %v1609 = vsel %vm1606, %v1608, %v1604
    %v1610 = vrcp.pop %v1577
    %v1611 = vmul.f32 %v1577, %v1610
    %v1612 = vsub.f32 1.0, %v1611
    %v1613 = vmul.f32 %v1610, %v1612
    %v1614 = vadd.f32 %v1610, %v1613
    %vm1615 = vweird.f32 %v1577
    %vm1616 = vweird.f32 %v1610
    %vm1617 = vmor %vm1615, %vm1616
    %v1618 = vsel %vm1617, %v1610, %v1614
    %v1619 = vand.u32 2147483647, %v1577
    %vm1620 = vcmp.eq.f32.partialorder %v1619, 8.507059e+37
    %v1621 = vand.u32 %v1577, 2147483648
    %v1622 = vor.u32 1.1754944e-38, %v1621
    %v1623 = vsel %vm1620, %v1622, %v1618
    %v1624 = vrcp.pop %v1580
    %v1625 = vmul.f32 %v1580, %v1624
    %v1626 = vsub.f32 1.0, %v1625
    %v1627 = vmul.f32 %v1624, %v1626
    %v1628 = vadd.f32 %v1624, %v1627
    %vm1629 = vweird.f32 %v1580
    %vm1630 = vweird.f32 %v1624
    %vm1631 = vmor %vm1629, %vm1630
    %v1632 = vsel %vm1631, %v1624, %v1628
    %v1633 = vand.u32 2147483647, %v1580
    %vm1634 = vcmp.eq.f32.partialorder %v1633, 8.507059e+37
    %v1635 = vand.u32 %v1580, 2147483648
    %v1636 = vor.u32 1.1754944e-38, %v1635
    %v1637 = vsel %vm1634, %v1636, %v1632
    %v1638 = vrcp.pop %v1583
    %v1639 = vmul.f32 %v1583, %v1638
    %v1640 = vsub.f32 1.0, %v1639
    %v1641 = vmul.f32 %v1638, %v1640
    %v1642 = vadd.f32 %v1638, %v1641
    %vm1643 = vweird.f32 %v1583
    %vm1644 = vweird.f32 %v1638
    %vm1645 = vmor %vm1643, %vm1644
    %v1646 = vsel %vm1645, %v1638, %v1642
    %v1647 = vand.u32 2147483647, %v1583
    %vm1648 = vcmp.eq.f32.partialorder %v1647, 8.507059e+37
    %v1649 = vand.u32 %v1583, 2147483648
    %v1650 = vor.u32 1.1754944e-38, %v1649
    %v1651 = vsel %vm1648, %v1650, %v1646
    %v1652 = vrcp.pop %v1586
    %v1653 = vmul.f32 %v1586, %v1652
    %v1654 = vsub.f32 1.0, %v1653
    %v1655 = vmul.f32 %v1652, %v1654
    %v1656 = vadd.f32 %v1652, %v1655
    %vm1657 = vweird.f32 %v1586
    %vm1658 = vweird.f32 %v1652
    %vm1659 = vmor %vm1657, %vm1658
    %v1660 = vsel %vm1659, %v1652, %v1656
    %v1661 = vand.u32 2147483647, %v1586
    %vm1662 = vcmp.eq.f32.partialorder %v1661, 8.507059e+37
    %v1663 = vand.u32 %v1586, 2147483648
    %v1664 = vor.u32 1.1754944e-38, %v1663
    %v1665 = vsel %vm1662, %v1664, %v1660
    %v1666 = vrcp.pop %v1589
    %v1667 = vmul.f32 %v1589, %v1666
    %v1668 = vsub.f32 1.0, %v1667
    %v1669 = vmul.f32 %v1666, %v1668
    %v1670 = vadd.f32 %v1666, %v1669
    %vm1671 = vweird.f32 %v1589
    %vm1672 = vweird.f32 %v1666
    %vm1673 = vmor %vm1671, %vm1672
    %v1674 = vsel %vm1673, %v1666, %v1670
    %v1675 = vand.u32 2147483647, %v1589
    %vm1676 = vcmp.eq.f32.partialorder %v1675, 8.507059e+37
    %v1677 = vand.u32 %v1589, 2147483648
    %v1678 = vor.u32 1.1754944e-38, %v1677
    %v1679 = vsel %vm1676, %v1678, %v1674
    %v1680 = vrcp.pop %v1592
    %v1681 = vmul.f32 %v1592, %v1680
    %v1682 = vsub.f32 1.0, %v1681
    %v1683 = vmul.f32 %v1680, %v1682
    %v1684 = vadd.f32 %v1680, %v1683
    %vm1685 = vweird.f32 %v1592
    %vm1686 = vweird.f32 %v1680
    %vm1687 = vmor %vm1685, %vm1686
    %v1688 = vsel %vm1687, %v1680, %v1684
    %v1689 = vand.u32 2147483647, %v1592
    %vm1690 = vcmp.eq.f32.partialorder %v1689, 8.507059e+37
    %v1691 = vand.u32 %v1592, 2147483648
    %v1692 = vor.u32 1.1754944e-38, %v1691
    %v1693 = vsel %vm1690, %v1692, %v1688
    %v1694 = vrcp.pop %v1595
    %v1695 = vmul.f32 %v1595, %v1694
    %v1696 = vsub.f32 1.0, %v1695
    %v1697 = vmul.f32 %v1694, %v1696
    %v1698 = vadd.f32 %v1694, %v1697
    %vm1699 = vweird.f32 %v1595
    %vm1700 = vweird.f32 %v1694
    %vm1701 = vmor %vm1699, %vm1700
    %v1702 = vsel %vm1701, %v1694, %v1698
    %v1703 = vand.u32 2147483647, %v1595
    %vm1704 = vcmp.eq.f32.partialorder %v1703, 8.507059e+37
    %v1705 = vand.u32 %v1595, 2147483648
    %v1706 = vor.u32 1.1754944e-38, %v1705
    %v1707 = vsel %vm1704, %v1706, %v1702
    %1708 = vrot.lane.b32.xlu0 %v146, 52
    %v1709 = vpop.permute.xlu0 %1708
    %1710 = vrot.lane.b32.xlu0 %v149, 52
    %v1711 = vpop.permute.xlu0 %1710
    %1712 = vrot.lane.b32.xlu0 %v152, 52
    %v1713 = vpop.permute.xlu0 %1712
    %1714 = vrot.lane.b32.xlu0 %v155, 52
    %v1715 = vpop.permute.xlu0 %1714
    %1716 = vrot.lane.b32.xlu0 %v158, 52
    %v1717 = vpop.permute.xlu0 %1716
    %1718 = vrot.lane.b32.xlu0 %v161, 52
    %v1719 = vpop.permute.xlu0 %1718
    %1720 = vrot.lane.b32.xlu0 %v164, 52
    %v1721 = vpop.permute.xlu0 %1720
    %1722 = vrot.lane.b32.xlu0 %v167, 52
    %v1723 = vpop.permute.xlu0 %1722
    %v1733 = vsel %vm275, %v1557, 0
    %v1736 = vsel %vm275, %v1559, 0
    %v1739 = vsel %vm275, %v1561, 0
    %v1742 = vsel %vm275, %v1563, 0
    %v1745 = vsel %vm275, %v1565, 0
    %v1748 = vsel %vm275, %v1567, 0
    %v1751 = vsel %vm275, %v1569, 0
    %v1754 = vsel %vm275, %v1571, 0
    %1756 = vmatpush.msra.mxu0 0.0
    %1757 = vmatpush.msra.mxu0 0.0
    %1758 = vmatpush.msra.mxu0 0.0
    %1759 = vmatpush.msra.mxu0 0.0
    %1760 = vmatpush.msra.mxu0 0.0
    %1761 = vmatpush.msra.mxu0 0.0
    %1762 = vmatpush.msra.mxu0 0.0
    %1763 = vmatpush.msra.mxu0 0.0
    %1764 = vmatpush.msra.mxu0 %v1723
    %1765 = vmatpush.msra.mxu0 %v1721
    %1766 = vmatpush.msra.mxu0 %v1719
    %1767 = vmatpush.msra.mxu0 %v1717
    %1768 = vmatpush.msra.mxu0 %v1715
    %1769 = vmatpush.msra.mxu0 %v1713
    %1770 = vmatpush.msra.mxu0 %v1711
    %1771 = vmatpush.msra.mxu0 %v1709
    %1772 = vmatmul.f32.gmra.mxu0 %v1733
    %v1773 = vpop.f32.mrf.mxu0
    %v1774 = vadd.f32 0.0, %v1773
    %1775 = vmatmul.f32.gmra.mxu0 %v1736
    %v1776 = vpop.f32.mrf.mxu0
    %v1777 = vadd.f32 0.0, %v1776
    %1778 = vmatmul.f32.gmra.mxu0 %v1739
    %v1779 = vpop.f32.mrf.mxu0
    %v1780 = vadd.f32 0.0, %v1779
    %1781 = vmatmul.f32.gmra.mxu0 %v1742
    %v1782 = vpop.f32.mrf.mxu0
    %v1783 = vadd.f32 0.0, %v1782
    %1784 = vmatmul.f32.gmra.mxu0 %v1745
    %v1785 = vpop.f32.mrf.mxu0
    %v1786 = vadd.f32 0.0, %v1785
    %1787 = vmatmul.f32.gmra.mxu0 %v1748
    %v1788 = vpop.f32.mrf.mxu0
    %v1789 = vadd.f32 0.0, %v1788
    %1790 = vmatmul.f32.gmra.mxu0 %v1751
    %v1791 = vpop.f32.mrf.mxu0
    %v1792 = vadd.f32 0.0, %v1791
    %1793 = vmatmul.f32.gmra.mxu0 %v1754
    %v1794 = vpop.f32.mrf.mxu0
    %v1795 = vadd.f32 0.0, %v1794
    %1796 = vdwg.mxu0
    %v1797 = vmul.f32 %v1774, %v1609
    %v1798 = vmul.f32 %v1777, %v1623
    %v1799 = vmul.f32 %v1780, %v1637
    %v1800 = vmul.f32 %v1783, %v1651
    %v1801 = vmul.f32 %v1786, %v1665
    %v1802 = vmul.f32 %v1789, %v1679
    %v1803 = vmul.f32 %v1792, %v1693
    %v1804 = vmul.f32 %v1795, %v1707
    %1813 = vrot.lane.b32.xlu0 %v1797, 12
    %v1814 = vpop.permute.xlu0 %1813
    %1815 = vrot.lane.b32.xlu0 %v1798, 12
    %v1816 = vpop.permute.xlu0 %1815
    %1817 = vrot.lane.b32.xlu0 %v1799, 12
    %v1818 = vpop.permute.xlu0 %1817
    %1819 = vrot.lane.b32.xlu0 %v1800, 12
    %v1820 = vpop.permute.xlu0 %1819
    %1821 = vrot.lane.b32.xlu0 %v1801, 12
    %v1822 = vpop.permute.xlu0 %1821
    %1823 = vrot.lane.b32.xlu0 %v1802, 12
    %v1824 = vpop.permute.xlu0 %1823
    %1825 = vrot.lane.b32.xlu0 %v1803, 12
    %v1826 = vpop.permute.xlu0 %1825
    %1827 = vrot.lane.b32.xlu0 %v1804, 12
    %v1828 = vpop.permute.xlu0 %1827
    %vm1837 = vcmask 130144
    %1838 = vst.msk [vmem:[#allocation2] sm:$0xff] %vm1837, %v1814
    %1839 = vst.msk [vmem:[#allocation2 + $0x8] sm:$0xff] %vm1837, %v1816
    %1840 = vst.msk [vmem:[#allocation2 + $0x10] sm:$0xff] %vm1837, %v1818
    %1841 = vst.msk [vmem:[#allocation2 + $0x18] sm:$0xff] %vm1837, %v1820
    %1842 = vst.msk [vmem:[#allocation2 + $0x20] sm:$0xff] %vm1837, %v1822
    %1843 = vst.msk [vmem:[#allocation2 + $0x28] sm:$0xff] %vm1837, %v1824
    %1844 = vst.msk [vmem:[#allocation2 + $0x30] sm:$0xff] %vm1837, %v1826
    %1845 = vst.msk [vmem:[#allocation2 + $0x38] sm:$0xff] %vm1837, %v1828
    %1846 = vrot.lane.b32.xlu0 %v146, 112
    %v1847 = vpop.permute.xlu0 %1846
    %1848 = vrot.lane.b32.xlu0 %v149, 112
    %v1849 = vpop.permute.xlu0 %1848
    %1850 = vrot.lane.b32.xlu0 %v152, 112
    %v1851 = vpop.permute.xlu0 %1850
    %1852 = vrot.lane.b32.xlu0 %v155, 112
    %v1853 = vpop.permute.xlu0 %1852
    %1854 = vrot.lane.b32.xlu0 %v158, 112
    %v1855 = vpop.permute.xlu0 %1854
    %1856 = vrot.lane.b32.xlu0 %v161, 112
    %v1857 = vpop.permute.xlu0 %1856
    %1858 = vrot.lane.b32.xlu0 %v164, 112
    %v1859 = vpop.permute.xlu0 %1858
    %1860 = vrot.lane.b32.xlu0 %v167, 112
    %v1861 = vpop.permute.xlu0 %1860
    %1862 = vrot.lane.b32.xlu0 %v146, 80
    %v1863 = vpop.permute.xlu0 %1862
    %1864 = vrot.lane.b32.xlu0 %v149, 80
    %v1865 = vpop.permute.xlu0 %1864
    %1866 = vrot.lane.b32.xlu0 %v152, 80
    %v1867 = vpop.permute.xlu0 %1866
    %1868 = vrot.lane.b32.xlu0 %v155, 80
    %v1869 = vpop.permute.xlu0 %1868
    %1870 = vrot.lane.b32.xlu0 %v158, 80
    %v1871 = vpop.permute.xlu0 %1870
    %1872 = vrot.lane.b32.xlu0 %v161, 80
    %v1873 = vpop.permute.xlu0 %1872
    %1874 = vrot.lane.b32.xlu0 %v164, 80
    %v1875 = vpop.permute.xlu0 %1874
    %1876 = vrot.lane.b32.xlu0 %v167, 80
    %v1877 = vpop.permute.xlu0 %1876
    %v1878 = vsel %vm201, %v1847, 0
    %v1880 = vsel %vm201, %v1849, 0
    %v1882 = vsel %vm201, %v1851, 0
    %v1884 = vsel %vm201, %v1853, 0
    %v1886 = vsel %vm201, %v1855, 0
    %v1888 = vsel %vm201, %v1857, 0
    %v1890 = vsel %vm201, %v1859, 0
    %v1892 = vsel %vm201, %v1861, 0
    %v1894 = vsel %vm201, %v1863, 0
    %v1896 = vsel %vm201, %v1865, 0
    %v1898 = vsel %vm201, %v1867, 0
    %v1900 = vsel %vm201, %v1869, 0
    %v1902 = vsel %vm201, %v1871, 0
    %v1904 = vsel %vm201, %v1873, 0
    %v1906 = vsel %vm201, %v1875, 0
    %v1908 = vsel %vm201, %v1877, 0
    %1910 = vmatpush.xpose.msra.mxu0 0.0
    %1911 = vmatpush.xpose.msra.mxu0 0.0
    %1912 = vmatpush.xpose.msra.mxu0 0.0
    %1913 = vmatpush.xpose.msra.mxu0 0.0
    %1914 = vmatpush.xpose.msra.mxu0 0.0
    %1915 = vmatpush.xpose.msra.mxu0 0.0
    %1916 = vmatpush.xpose.msra.mxu0 0.0
    %1917 = vmatpush.xpose.msra.mxu0 0.0
    %1918 = vmatpush.xpose.msra.mxu0 %v1908
    %1919 = vmatpush.xpose.msra.mxu0 %v1906
    %1920 = vmatpush.xpose.msra.mxu0 %v1904
    %1921 = vmatpush.xpose.msra.mxu0 %v1902
    %1922 = vmatpush.xpose.msra.mxu0 %v1900
    %1923 = vmatpush.xpose.msra.mxu0 %v1898
    %1924 = vmatpush.xpose.msra.mxu0 %v1896
    %1925 = vmatpush.xpose.msra.mxu0 %v1894
    %1926 = vmatmul.f32.gmra.mxu0 %v1878
    %v1927 = vpop.f32.mrf.mxu0
    %v1928 = vadd.f32 %v169, %v1927
    %1929 = vmatmul.f32.gmra.mxu0 %v1880
    %v1930 = vpop.f32.mrf.mxu0
    %v1931 = vadd.f32 %v170, %v1930
    %1932 = vmatmul.f32.gmra.mxu0 %v1882
    %v1933 = vpop.f32.mrf.mxu0
    %v1934 = vadd.f32 %v171, %v1933
    %1935 = vmatmul.f32.gmra.mxu0 %v1884
    %v1936 = vpop.f32.mrf.mxu0
    %v1937 = vadd.f32 %v172, %v1936
    %1938 = vmatmul.f32.gmra.mxu0 %v1886
    %v1939 = vpop.f32.mrf.mxu0
    %v1940 = vadd.f32 %v173, %v1939
    %1941 = vmatmul.f32.gmra.mxu0 %v1888
    %v1942 = vpop.f32.mrf.mxu0
    %v1943 = vadd.f32 %v174, %v1942
    %1944 = vmatmul.f32.gmra.mxu0 %v1890
    %v1945 = vpop.f32.mrf.mxu0
    %v1946 = vadd.f32 %v175, %v1945
    %1947 = vmatmul.f32.gmra.mxu0 %v1892
    %v1948 = vpop.f32.mrf.mxu0
    %v1949 = vadd.f32 %v176, %v1948
    %1950 = vdwg.mxu0
    %v1951 = vsel %vm275, %v1928, -inf
    %1952 = vmax.xlane.f32.xlu0 %v1951
    %v1953 = vpop.xlane.xlu0 %1952
    %v1954 = vsel %vm275, %v1931, -inf
    %1955 = vmax.xlane.f32.xlu0 %v1954
    %v1956 = vpop.xlane.xlu0 %1955
    %v1957 = vsel %vm275, %v1934, -inf
    %1958 = vmax.xlane.f32.xlu0 %v1957
    %v1959 = vpop.xlane.xlu0 %1958
    %v1960 = vsel %vm275, %v1937, -inf
    %1961 = vmax.xlane.f32.xlu0 %v1960
    %v1962 = vpop.xlane.xlu0 %1961
    %v1963 = vsel %vm275, %v1940, -inf
    %1964 = vmax.xlane.f32.xlu0 %v1963
    %v1965 = vpop.xlane.xlu0 %1964
    %v1966 = vsel %vm275, %v1943, -inf
    %1967 = vmax.xlane.f32.xlu0 %v1966
    %v1968 = vpop.xlane.xlu0 %1967
    %v1969 = vsel %vm275, %v1946, -inf
    %1970 = vmax.xlane.f32.xlu0 %v1969
    %v1971 = vpop.xlane.xlu0 %1970
    %v1972 = vsel %vm275, %v1949, -inf
    %1973 = vmax.xlane.f32.xlu0 %v1972
    %v1974 = vpop.xlane.xlu0 %1973
    %v1975 = vsub.f32 %v1928, %v1953
    %v1976 = vsub.f32 %v1931, %v1956
    %v1977 = vsub.f32 %v1934, %v1959
    %v1978 = vsub.f32 %v1937, %v1962
    %v1979 = vsub.f32 %v1940, %v1965
    %v1980 = vsub.f32 %v1943, %v1968
    %v1981 = vsub.f32 %v1946, %v1971
    %v1982 = vsub.f32 %v1949, %v1974
    %v1983 = vmul.f32 %v1975, 1.442695
    %v1984 = vpow.pop %v1983
    %v1985 = vmul.f32 %v1976, 1.442695
    %v1986 = vpow.pop %v1985
    %v1987 = vmul.f32 %v1977, 1.442695
    %v1988 = vpow.pop %v1987
    %v1989 = vmul.f32 %v1978, 1.442695
    %v1990 = vpow.pop %v1989
    %v1991 = vmul.f32 %v1979, 1.442695
    %v1992 = vpow.pop %v1991
    %v1993 = vmul.f32 %v1980, 1.442695
    %v1994 = vpow.pop %v1993
    %v1995 = vmul.f32 %v1981, 1.442695
    %v1996 = vpow.pop %v1995
    %v1997 = vmul.f32 %v1982, 1.442695
    %v1998 = vpow.pop %v1997
    %v1999 = vsel %vm275, %v1984, 0.0
    %2000 = vadd.xlane.f32.xlu0 %v1999
    %v2001 = vpop.xlane.xlu0 %2000
    %v2002 = vsel %vm275, %v1986, 0.0
    %2003 = vadd.xlane.f32.xlu0 %v2002
    %v2004 = vpop.xlane.xlu0 %2003
    %v2005 = vsel %vm275, %v1988, 0.0
    %2006 = vadd.xlane.f32.xlu0 %v2005
    %v2007 = vpop.xlane.xlu0 %2006
    %v2008 = vsel %vm275, %v1990, 0.0
    %2009 = vadd.xlane.f32.xlu0 %v2008
    %v2010 = vpop.xlane.xlu0 %2009
    %v2011 = vsel %vm275, %v1992, 0.0
    %2012 = vadd.xlane.f32.xlu0 %v2011
    %v2013 = vpop.xlane.xlu0 %2012
    %v2014 = vsel %vm275, %v1994, 0.0
    %2015 = vadd.xlane.f32.xlu0 %v2014
    %v2016 = vpop.xlane.xlu0 %2015
    %v2017 = vsel %vm275, %v1996, 0.0
    %2018 = vadd.xlane.f32.xlu0 %v2017
    %v2019 = vpop.xlane.xlu0 %2018
    %v2020 = vsel %vm275, %v1998, 0.0
    %2021 = vadd.xlane.f32.xlu0 %v2020
    %v2022 = vpop.xlane.xlu0 %2021
    %v2023 = vrcp.pop %v2001
    %v2024 = vmul.f32 %v2001, %v2023
    %v2025 = vsub.f32 1.0, %v2024
    %v2026 = vmul.f32 %v2023, %v2025
    %v2027 = vadd.f32 %v2023, %v2026
    %vm2028 = vweird.f32 %v2001
    %vm2029 = vweird.f32 %v2023
    %vm2030 = vmor %vm2028, %vm2029
    %v2031 = vsel %vm2030, %v2023, %v2027
    %v2032 = vand.u32 2147483647, %v2001
    %vm2033 = vcmp.eq.f32.partialorder %v2032, 8.507059e+37
    %v2034 = vand.u32 %v2001, 2147483648
    %v2035 = vor.u32 1.1754944e-38, %v2034
    %v2036 = vsel %vm2033, %v2035, %v2031
    %v2037 = vrcp.pop %v2004
    %v2038 = vmul.f32 %v2004, %v2037
    %v2039 = vsub.f32 1.0, %v2038
    %v2040 = vmul.f32 %v2037, %v2039
    %v2041 = vadd.f32 %v2037, %v2040
    %vm2042 = vweird.f32 %v2004
    %vm2043 = vweird.f32 %v2037
    %vm2044 = vmor %vm2042, %vm2043
    %v2045 = vsel %vm2044, %v2037, %v2041
    %v2046 = vand.u32 2147483647, %v2004
    %vm2047 = vcmp.eq.f32.partialorder %v2046, 8.507059e+37
    %v2048 = vand.u32 %v2004, 2147483648
    %v2049 = vor.u32 1.1754944e-38, %v2048
    %v2050 = vsel %vm2047, %v2049, %v2045
    %v2051 = vrcp.pop %v2007
    %v2052 = vmul.f32 %v2007, %v2051
    %v2053 = vsub.f32 1.0, %v2052
    %v2054 = vmul.f32 %v2051, %v2053
    %v2055 = vadd.f32 %v2051, %v2054
    %vm2056 = vweird.f32 %v2007
    %vm2057 = vweird.f32 %v2051
    %vm2058 = vmor %vm2056, %vm2057
    %v2059 = vsel %vm2058, %v2051, %v2055
    %v2060 = vand.u32 2147483647, %v2007
    %vm2061 = vcmp.eq.f32.partialorder %v2060, 8.507059e+37
    %v2062 = vand.u32 %v2007, 2147483648
    %v2063 = vor.u32 1.1754944e-38, %v2062
    %v2064 = vsel %vm2061, %v2063, %v2059
    %v2065 = vrcp.pop %v2010
    %v2066 = vmul.f32 %v2010, %v2065
    %v2067 = vsub.f32 1.0, %v2066
    %v2068 = vmul.f32 %v2065, %v2067
    %v2069 = vadd.f32 %v2065, %v2068
    %vm2070 = vweird.f32 %v2010
    %vm2071 = vweird.f32 %v2065
    %vm2072 = vmor %vm2070, %vm2071
    %v2073 = vsel %vm2072, %v2065, %v2069
    %v2074 = vand.u32 2147483647, %v2010
    %vm2075 = vcmp.eq.f32.partialorder %v2074, 8.507059e+37
    %v2076 = vand.u32 %v2010, 2147483648
    %v2077 = vor.u32 1.1754944e-38, %v2076
    %v2078 = vsel %vm2075, %v2077, %v2073
    %v2079 = vrcp.pop %v2013
    %v2080 = vmul.f32 %v2013, %v2079
    %v2081 = vsub.f32 1.0, %v2080
    %v2082 = vmul.f32 %v2079, %v2081
    %v2083 = vadd.f32 %v2079, %v2082
    %vm2084 = vweird.f32 %v2013
    %vm2085 = vweird.f32 %v2079
    %vm2086 = vmor %vm2084, %vm2085
    %v2087 = vsel %vm2086, %v2079, %v2083
    %v2088 = vand.u32 2147483647, %v2013
    %vm2089 = vcmp.eq.f32.partialorder %v2088, 8.507059e+37
    %v2090 = vand.u32 %v2013, 2147483648
    %v2091 = vor.u32 1.1754944e-38, %v2090
    %v2092 = vsel %vm2089, %v2091, %v2087
    %v2093 = vrcp.pop %v2016
    %v2094 = vmul.f32 %v2016, %v2093
    %v2095 = vsub.f32 1.0, %v2094
    %v2096 = vmul.f32 %v2093, %v2095
    %v2097 = vadd.f32 %v2093, %v2096
    %vm2098 = vweird.f32 %v2016
    %vm2099 = vweird.f32 %v2093
    %vm2100 = vmor %vm2098, %vm2099
    %v2101 = vsel %vm2100, %v2093, %v2097
    %v2102 = vand.u32 2147483647, %v2016
    %vm2103 = vcmp.eq.f32.partialorder %v2102, 8.507059e+37
    %v2104 = vand.u32 %v2016, 2147483648
    %v2105 = vor.u32 1.1754944e-38, %v2104
    %v2106 = vsel %vm2103, %v2105, %v2101
    %v2107 = vrcp.pop %v2019
    %v2108 = vmul.f32 %v2019, %v2107
    %v2109 = vsub.f32 1.0, %v2108
    %v2110 = vmul.f32 %v2107, %v2109
    %v2111 = vadd.f32 %v2107, %v2110
    %vm2112 = vweird.f32 %v2019
    %vm2113 = vweird.f32 %v2107
    %vm2114 = vmor %vm2112, %vm2113
    %v2115 = vsel %vm2114, %v2107, %v2111
    %v2116 = vand.u32 2147483647, %v2019
    %vm2117 = vcmp.eq.f32.partialorder %v2116, 8.507059e+37
    %v2118 = vand.u32 %v2019, 2147483648
    %v2119 = vor.u32 1.1754944e-38, %v2118
    %v2120 = vsel %vm2117, %v2119, %v2115
    %v2121 = vrcp.pop %v2022
    %v2122 = vmul.f32 %v2022, %v2121
    %v2123 = vsub.f32 1.0, %v2122
    %v2124 = vmul.f32 %v2121, %v2123
    %v2125 = vadd.f32 %v2121, %v2124
    %vm2126 = vweird.f32 %v2022
    %vm2127 = vweird.f32 %v2121
    %vm2128 = vmor %vm2126, %vm2127
    %v2129 = vsel %vm2128, %v2121, %v2125
    %v2130 = vand.u32 2147483647, %v2022
    %vm2131 = vcmp.eq.f32.partialorder %v2130, 8.507059e+37
    %v2132 = vand.u32 %v2022, 2147483648
    %v2133 = vor.u32 1.1754944e-38, %v2132
    %v2134 = vsel %vm2131, %v2133, %v2129
    %2135 = vrot.lane.b32.xlu0 %v146, 48
    %v2136 = vpop.permute.xlu0 %2135
    %2137 = vrot.lane.b32.xlu0 %v149, 48
    %v2138 = vpop.permute.xlu0 %2137
    %2139 = vrot.lane.b32.xlu0 %v152, 48
    %v2140 = vpop.permute.xlu0 %2139
    %2141 = vrot.lane.b32.xlu0 %v155, 48
    %v2142 = vpop.permute.xlu0 %2141
    %2143 = vrot.lane.b32.xlu0 %v158, 48
    %v2144 = vpop.permute.xlu0 %2143
    %2145 = vrot.lane.b32.xlu0 %v161, 48
    %v2146 = vpop.permute.xlu0 %2145
    %2147 = vrot.lane.b32.xlu0 %v164, 48
    %v2148 = vpop.permute.xlu0 %2147
    %2149 = vrot.lane.b32.xlu0 %v167, 48
    %v2150 = vpop.permute.xlu0 %2149
    %v2160 = vsel %vm275, %v1984, 0
    %v2163 = vsel %vm275, %v1986, 0
    %v2166 = vsel %vm275, %v1988, 0
    %v2169 = vsel %vm275, %v1990, 0
    %v2172 = vsel %vm275, %v1992, 0
    %v2175 = vsel %vm275, %v1994, 0
    %v2178 = vsel %vm275, %v1996, 0
    %v2181 = vsel %vm275, %v1998, 0
    %2183 = vmatpush.msra.mxu0 0.0
    %2184 = vmatpush.msra.mxu0 0.0
    %2185 = vmatpush.msra.mxu0 0.0
    %2186 = vmatpush.msra.mxu0 0.0
    %2187 = vmatpush.msra.mxu0 0.0
    %2188 = vmatpush.msra.mxu0 0.0
    %2189 = vmatpush.msra.mxu0 0.0
    %2190 = vmatpush.msra.mxu0 0.0
    %2191 = vmatpush.msra.mxu0 %v2150
    %2192 = vmatpush.msra.mxu0 %v2148
    %2193 = vmatpush.msra.mxu0 %v2146
    %2194 = vmatpush.msra.mxu0 %v2144
    %2195 = vmatpush.msra.mxu0 %v2142
    %2196 = vmatpush.msra.mxu0 %v2140
    %2197 = vmatpush.msra.mxu0 %v2138
    %2198 = vmatpush.msra.mxu0 %v2136
    %2199 = vmatmul.f32.gmra.mxu0 %v2160
    %v2200 = vpop.f32.mrf.mxu0
    %v2201 = vadd.f32 0.0, %v2200
    %2202 = vmatmul.f32.gmra.mxu0 %v2163
    %v2203 = vpop.f32.mrf.mxu0
    %v2204 = vadd.f32 0.0, %v2203
    %2205 = vmatmul.f32.gmra.mxu0 %v2166
    %v2206 = vpop.f32.mrf.mxu0
    %v2207 = vadd.f32 0.0, %v2206
    %2208 = vmatmul.f32.gmra.mxu0 %v2169
    %v2209 = vpop.f32.mrf.mxu0
    %v2210 = vadd.f32 0.0, %v2209
    %2211 = vmatmul.f32.gmra.mxu0 %v2172
    %v2212 = vpop.f32.mrf.mxu0
    %v2213 = vadd.f32 0.0, %v2212
    %2214 = vmatmul.f32.gmra.mxu0 %v2175
    %v2215 = vpop.f32.mrf.mxu0
    %v2216 = vadd.f32 0.0, %v2215
    %2217 = vmatmul.f32.gmra.mxu0 %v2178
    %v2218 = vpop.f32.mrf.mxu0
    %v2219 = vadd.f32 0.0, %v2218
    %2220 = vmatmul.f32.gmra.mxu0 %v2181
    %v2221 = vpop.f32.mrf.mxu0
    %v2222 = vadd.f32 0.0, %v2221
    %2223 = vdwg.mxu0
    %v2224 = vmul.f32 %v2201, %v2036
    %v2225 = vmul.f32 %v2204, %v2050
    %v2226 = vmul.f32 %v2207, %v2064
    %v2227 = vmul.f32 %v2210, %v2078
    %v2228 = vmul.f32 %v2213, %v2092
    %v2229 = vmul.f32 %v2216, %v2106
    %v2230 = vmul.f32 %v2219, %v2120
    %v2231 = vmul.f32 %v2222, %v2134
    %2240 = vrot.lane.b32.xlu0 %v2224, 16
    %v2241 = vpop.permute.xlu0 %2240
    %2242 = vrot.lane.b32.xlu0 %v2225, 16
    %v2243 = vpop.permute.xlu0 %2242
    %2244 = vrot.lane.b32.xlu0 %v2226, 16
    %v2245 = vpop.permute.xlu0 %2244
    %2246 = vrot.lane.b32.xlu0 %v2227, 16
    %v2247 = vpop.permute.xlu0 %2246
    %2248 = vrot.lane.b32.xlu0 %v2228, 16
    %v2249 = vpop.permute.xlu0 %2248
    %2250 = vrot.lane.b32.xlu0 %v2229, 16
    %v2251 = vpop.permute.xlu0 %2250
    %2252 = vrot.lane.b32.xlu0 %v2230, 16
    %v2253 = vpop.permute.xlu0 %2252
    %2254 = vrot.lane.b32.xlu0 %v2231, 16
    %v2255 = vpop.permute.xlu0 %2254
    %vm2264 = vcmask 162944
    %2265 = vst.msk [vmem:[#allocation2] sm:$0xff] %vm2264, %v2241
    %2266 = vst.msk [vmem:[#allocation2 + $0x8] sm:$0xff] %vm2264, %v2243
    %2267 = vst.msk [vmem:[#allocation2 + $0x10] sm:$0xff] %vm2264, %v2245
    %2268 = vst.msk [vmem:[#allocation2 + $0x18] sm:$0xff] %vm2264, %v2247
    %2269 = vst.msk [vmem:[#allocation2 + $0x20] sm:$0xff] %vm2264, %v2249
    %2270 = vst.msk [vmem:[#allocation2 + $0x28] sm:$0xff] %vm2264, %v2251
    %2271 = vst.msk [vmem:[#allocation2 + $0x30] sm:$0xff] %vm2264, %v2253
    %2272 = vst.msk [vmem:[#allocation2 + $0x38] sm:$0xff] %vm2264, %v2255
    %2273 = vrot.lane.b32.xlu0 %v146, 108
    %v2274 = vpop.permute.xlu0 %2273
    %2275 = vrot.lane.b32.xlu0 %v149, 108
    %v2276 = vpop.permute.xlu0 %2275
    %2277 = vrot.lane.b32.xlu0 %v152, 108
    %v2278 = vpop.permute.xlu0 %2277
    %2279 = vrot.lane.b32.xlu0 %v155, 108
    %v2280 = vpop.permute.xlu0 %2279
    %2281 = vrot.lane.b32.xlu0 %v158, 108
    %v2282 = vpop.permute.xlu0 %2281
    %2283 = vrot.lane.b32.xlu0 %v161, 108
    %v2284 = vpop.permute.xlu0 %2283
    %2285 = vrot.lane.b32.xlu0 %v164, 108
    %v2286 = vpop.permute.xlu0 %2285
    %2287 = vrot.lane.b32.xlu0 %v167, 108
    %v2288 = vpop.permute.xlu0 %2287
    %2289 = vrot.lane.b32.xlu0 %v146, 76
    %v2290 = vpop.permute.xlu0 %2289
    %2291 = vrot.lane.b32.xlu0 %v149, 76
    %v2292 = vpop.permute.xlu0 %2291
    %2293 = vrot.lane.b32.xlu0 %v152, 76
    %v2294 = vpop.permute.xlu0 %2293
    %2295 = vrot.lane.b32.xlu0 %v155, 76
    %v2296 = vpop.permute.xlu0 %2295
    %2297 = vrot.lane.b32.xlu0 %v158, 76
    %v2298 = vpop.permute.xlu0 %2297
    %2299 = vrot.lane.b32.xlu0 %v161, 76
    %v2300 = vpop.permute.xlu0 %2299
    %2301 = vrot.lane.b32.xlu0 %v164, 76
    %v2302 = vpop.permute.xlu0 %2301
    %2303 = vrot.lane.b32.xlu0 %v167, 76
    %v2304 = vpop.permute.xlu0 %2303
    %v2305 = vsel %vm201, %v2274, 0
    %v2307 = vsel %vm201, %v2276, 0
    %v2309 = vsel %vm201, %v2278, 0
    %v2311 = vsel %vm201, %v2280, 0
    %v2313 = vsel %vm201, %v2282, 0
    %v2315 = vsel %vm201, %v2284, 0
    %v2317 = vsel %vm201, %v2286, 0
    %v2319 = vsel %vm201, %v2288, 0
    %v2321 = vsel %vm201, %v2290, 0
    %v2323 = vsel %vm201, %v2292, 0
    %v2325 = vsel %vm201, %v2294, 0
    %v2327 = vsel %vm201, %v2296, 0
    %v2329 = vsel %vm201, %v2298, 0
    %v2331 = vsel %vm201, %v2300, 0
    %v2333 = vsel %vm201, %v2302, 0
    %v2335 = vsel %vm201, %v2304, 0
    %2337 = vmatpush.xpose.msra.mxu0 0.0
    %2338 = vmatpush.xpose.msra.mxu0 0.0
    %2339 = vmatpush.xpose.msra.mxu0 0.0
    %2340 = vmatpush.xpose.msra.mxu0 0.0
    %2341 = vmatpush.xpose.msra.mxu0 0.0
    %2342 = vmatpush.xpose.msra.mxu0 0.0
    %2343 = vmatpush.xpose.msra.mxu0 0.0
    %2344 = vmatpush.xpose.msra.mxu0 0.0
    %2345 = vmatpush.xpose.msra.mxu0 %v2335
    %2346 = vmatpush.xpose.msra.mxu0 %v2333
    %2347 = vmatpush.xpose.msra.mxu0 %v2331
    %2348 = vmatpush.xpose.msra.mxu0 %v2329
    %2349 = vmatpush.xpose.msra.mxu0 %v2327
    %2350 = vmatpush.xpose.msra.mxu0 %v2325
    %2351 = vmatpush.xpose.msra.mxu0 %v2323
    %2352 = vmatpush.xpose.msra.mxu0 %v2321
    %2353 = vmatmul.f32.gmra.mxu0 %v2305
    %v2354 = vpop.f32.mrf.mxu0
    %v2355 = vadd.f32 %v169, %v2354
    %2356 = vmatmul.f32.gmra.mxu0 %v2307
    %v2357 = vpop.f32.mrf.mxu0
    %v2358 = vadd.f32 %v170, %v2357
    %2359 = vmatmul.f32.gmra.mxu0 %v2309
    %v2360 = vpop.f32.mrf.mxu0
    %v2361 = vadd.f32 %v171, %v2360
    %2362 = vmatmul.f32.gmra.mxu0 %v2311
    %v2363 = vpop.f32.mrf.mxu0
    %v2364 = vadd.f32 %v172, %v2363
    %2365 = vmatmul.f32.gmra.mxu0 %v2313
    %v2366 = vpop.f32.mrf.mxu0
    %v2367 = vadd.f32 %v173, %v2366
    %2368 = vmatmul.f32.gmra.mxu0 %v2315
    %v2369 = vpop.f32.mrf.mxu0
    %v2370 = vadd.f32 %v174, %v2369
    %2371 = vmatmul.f32.gmra.mxu0 %v2317
    %v2372 = vpop.f32.mrf.mxu0
    %v2373 = vadd.f32 %v175, %v2372
    %2374 = vmatmul.f32.gmra.mxu0 %v2319
    %v2375 = vpop.f32.mrf.mxu0
    %v2376 = vadd.f32 %v176, %v2375
    %2377 = vdwg.mxu0
    %v2378 = vsel %vm275, %v2355, -inf
    %2379 = vmax.xlane.f32.xlu0 %v2378
    %v2380 = vpop.xlane.xlu0 %2379
    %v2381 = vsel %vm275, %v2358, -inf
    %2382 = vmax.xlane.f32.xlu0 %v2381
    %v2383 = vpop.xlane.xlu0 %2382
    %v2384 = vsel %vm275, %v2361, -inf
    %2385 = vmax.xlane.f32.xlu0 %v2384
    %v2386 = vpop.xlane.xlu0 %2385
    %v2387 = vsel %vm275, %v2364, -inf
    %2388 = vmax.xlane.f32.xlu0 %v2387
    %v2389 = vpop.xlane.xlu0 %2388
    %v2390 = vsel %vm275, %v2367, -inf
    %2391 = vmax.xlane.f32.xlu0 %v2390
    %v2392 = vpop.xlane.xlu0 %2391
    %v2393 = vsel %vm275, %v2370, -inf
    %2394 = vmax.xlane.f32.xlu0 %v2393
    %v2395 = vpop.xlane.xlu0 %2394
    %v2396 = vsel %vm275, %v2373, -inf
    %2397 = vmax.xlane.f32.xlu0 %v2396
    %v2398 = vpop.xlane.xlu0 %2397
    %v2399 = vsel %vm275, %v2376, -inf
    %2400 = vmax.xlane.f32.xlu0 %v2399
    %v2401 = vpop.xlane.xlu0 %2400
    %v2402 = vsub.f32 %v2355, %v2380
    %v2403 = vsub.f32 %v2358, %v2383
    %v2404 = vsub.f32 %v2361, %v2386
    %v2405 = vsub.f32 %v2364, %v2389
    %v2406 = vsub.f32 %v2367, %v2392
    %v2407 = vsub.f32 %v2370, %v2395
    %v2408 = vsub.f32 %v2373, %v2398
    %v2409 = vsub.f32 %v2376, %v2401
    %v2410 = vmul.f32 %v2402, 1.442695
    %v2411 = vpow.pop %v2410
    %v2412 = vmul.f32 %v2403, 1.442695
    %v2413 = vpow.pop %v2412
    %v2414 = vmul.f32 %v2404, 1.442695
    %v2415 = vpow.pop %v2414
    %v2416 = vmul.f32 %v2405, 1.442695
    %v2417 = vpow.pop %v2416
    %v2418 = vmul.f32 %v2406, 1.442695
    %v2419 = vpow.pop %v2418
    %v2420 = vmul.f32 %v2407, 1.442695
    %v2421 = vpow.pop %v2420
    %v2422 = vmul.f32 %v2408, 1.442695
    %v2423 = vpow.pop %v2422
    %v2424 = vmul.f32 %v2409, 1.442695
    %v2425 = vpow.pop %v2424
    %v2426 = vsel %vm275, %v2411, 0.0
    %2427 = vadd.xlane.f32.xlu0 %v2426
    %v2428 = vpop.xlane.xlu0 %2427
    %v2429 = vsel %vm275, %v2413, 0.0
    %2430 = vadd.xlane.f32.xlu0 %v2429
    %v2431 = vpop.xlane.xlu0 %2430
    %v2432 = vsel %vm275, %v2415, 0.0
    %2433 = vadd.xlane.f32.xlu0 %v2432
    %v2434 = vpop.xlane.xlu0 %2433
    %v2435 = vsel %vm275, %v2417, 0.0
    %2436 = vadd.xlane.f32.xlu0 %v2435
    %v2437 = vpop.xlane.xlu0 %2436
    %v2438 = vsel %vm275, %v2419, 0.0
    %2439 = vadd.xlane.f32.xlu0 %v2438
    %v2440 = vpop.xlane.xlu0 %2439
    %v2441 = vsel %vm275, %v2421, 0.0
    %2442 = vadd.xlane.f32.xlu0 %v2441
    %v2443 = vpop.xlane.xlu0 %2442
    %v2444 = vsel %vm275, %v2423, 0.0
    %2445 = vadd.xlane.f32.xlu0 %v2444
    %v2446 = vpop.xlane.xlu0 %2445
    %v2447 = vsel %vm275, %v2425, 0.0
    %2448 = vadd.xlane.f32.xlu0 %v2447
    %v2449 = vpop.xlane.xlu0 %2448
    %v2450 = vrcp.pop %v2428
    %v2451 = vmul.f32 %v2428, %v2450
    %v2452 = vsub.f32 1.0, %v2451
    %v2453 = vmul.f32 %v2450, %v2452
    %v2454 = vadd.f32 %v2450, %v2453
    %vm2455 = vweird.f32 %v2428
    %vm2456 = vweird.f32 %v2450
    %vm2457 = vmor %vm2455, %vm2456
    %v2458 = vsel %vm2457, %v2450, %v2454
    %v2459 = vand.u32 2147483647, %v2428
    %vm2460 = vcmp.eq.f32.partialorder %v2459, 8.507059e+37
    %v2461 = vand.u32 %v2428, 2147483648
    %v2462 = vor.u32 1.1754944e-38, %v2461
    %v2463 = vsel %vm2460, %v2462, %v2458
    %v2464 = vrcp.pop %v2431
    %v2465 = vmul.f32 %v2431, %v2464
    %v2466 = vsub.f32 1.0, %v2465
    %v2467 = vmul.f32 %v2464, %v2466
    %v2468 = vadd.f32 %v2464, %v2467
    %vm2469 = vweird.f32 %v2431
    %vm2470 = vweird.f32 %v2464
    %vm2471 = vmor %vm2469, %vm2470
    %v2472 = vsel %vm2471, %v2464, %v2468
    %v2473 = vand.u32 2147483647, %v2431
    %vm2474 = vcmp.eq.f32.partialorder %v2473, 8.507059e+37
    %v2475 = vand.u32 %v2431, 2147483648
    %v2476 = vor.u32 1.1754944e-38, %v2475
    %v2477 = vsel %vm2474, %v2476, %v2472
    %v2478 = vrcp.pop %v2434
    %v2479 = vmul.f32 %v2434, %v2478
    %v2480 = vsub.f32 1.0, %v2479
    %v2481 = vmul.f32 %v2478, %v2480
    %v2482 = vadd.f32 %v2478, %v2481
    %vm2483 = vweird.f32 %v2434
    %vm2484 = vweird.f32 %v2478
    %vm2485 = vmor %vm2483, %vm2484
    %v2486 = vsel %vm2485, %v2478, %v2482
    %v2487 = vand.u32 2147483647, %v2434
    %vm2488 = vcmp.eq.f32.partialorder %v2487, 8.507059e+37
    %v2489 = vand.u32 %v2434, 2147483648
    %v2490 = vor.u32 1.1754944e-38, %v2489
    %v2491 = vsel %vm2488, %v2490, %v2486
    %v2492 = vrcp.pop %v2437
    %v2493 = vmul.f32 %v2437, %v2492
    %v2494 = vsub.f32 1.0, %v2493
    %v2495 = vmul.f32 %v2492, %v2494
    %v2496 = vadd.f32 %v2492, %v2495
    %vm2497 = vweird.f32 %v2437
    %vm2498 = vweird.f32 %v2492
    %vm2499 = vmor %vm2497, %vm2498
    %v2500 = vsel %vm2499, %v2492, %v2496
    %v2501 = vand.u32 2147483647, %v2437
    %vm2502 = vcmp.eq.f32.partialorder %v2501, 8.507059e+37
    %v2503 = vand.u32 %v2437, 2147483648
    %v2504 = vor.u32 1.1754944e-38, %v2503
    %v2505 = vsel %vm2502, %v2504, %v2500
    %v2506 = vrcp.pop %v2440
    %v2507 = vmul.f32 %v2440, %v2506
    %v2508 = vsub.f32 1.0, %v2507
    %v2509 = vmul.f32 %v2506, %v2508
    %v2510 = vadd.f32 %v2506, %v2509
    %vm2511 = vweird.f32 %v2440
    %vm2512 = vweird.f32 %v2506
    %vm2513 = vmor %vm2511, %vm2512
    %v2514 = vsel %vm2513, %v2506, %v2510
    %v2515 = vand.u32 2147483647, %v2440
    %vm2516 = vcmp.eq.f32.partialorder %v2515, 8.507059e+37
    %v2517 = vand.u32 %v2440, 2147483648
    %v2518 = vor.u32 1.1754944e-38, %v2517
    %v2519 = vsel %vm2516, %v2518, %v2514
    %v2520 = vrcp.pop %v2443
    %v2521 = vmul.f32 %v2443, %v2520
    %v2522 = vsub.f32 1.0, %v2521
    %v2523 = vmul.f32 %v2520, %v2522
    %v2524 = vadd.f32 %v2520, %v2523
    %vm2525 = vweird.f32 %v2443
    %vm2526 = vweird.f32 %v2520
    %vm2527 = vmor %vm2525, %vm2526
    %v2528 = vsel %vm2527, %v2520, %v2524
    %v2529 = vand.u32 2147483647, %v2443
    %vm2530 = vcmp.eq.f32.partialorder %v2529, 8.507059e+37
    %v2531 = vand.u32 %v2443, 2147483648
    %v2532 = vor.u32 1.1754944e-38, %v2531
    %v2533 = vsel %vm2530, %v2532, %v2528
    %v2534 = vrcp.pop %v2446
    %v2535 = vmul.f32 %v2446, %v2534
    %v2536 = vsub.f32 1.0, %v2535
    %v2537 = vmul.f32 %v2534, %v2536
    %v2538 = vadd.f32 %v2534, %v2537
    %vm2539 = vweird.f32 %v2446
    %vm2540 = vweird.f32 %v2534
    %vm2541 = vmor %vm2539, %vm2540
    %v2542 = vsel %vm2541, %v2534, %v2538
    %v2543 = vand.u32 2147483647, %v2446
    %vm2544 = vcmp.eq.f32.partialorder %v2543, 8.507059e+37
    %v2545 = vand.u32 %v2446, 2147483648
    %v2546 = vor.u32 1.1754944e-38, %v2545
    %v2547 = vsel %vm2544, %v2546, %v2542
    %v2548 = vrcp.pop %v2449
    %v2549 = vmul.f32 %v2449, %v2548
    %v2550 = vsub.f32 1.0, %v2549
    %v2551 = vmul.f32 %v2548, %v2550
    %v2552 = vadd.f32 %v2548, %v2551
    %vm2553 = vweird.f32 %v2449
    %vm2554 = vweird.f32 %v2548
    %vm2555 = vmor %vm2553, %vm2554
    %v2556 = vsel %vm2555, %v2548, %v2552
    %v2557 = vand.u32 2147483647, %v2449
    %vm2558 = vcmp.eq.f32.partialorder %v2557, 8.507059e+37
    %v2559 = vand.u32 %v2449, 2147483648
    %v2560 = vor.u32 1.1754944e-38, %v2559
    %v2561 = vsel %vm2558, %v2560, %v2556
    %2562 = vrot.lane.b32.xlu0 %v146, 44
    %v2563 = vpop.permute.xlu0 %2562
    %2564 = vrot.lane.b32.xlu0 %v149, 44
    %v2565 = vpop.permute.xlu0 %2564
    %2566 = vrot.lane.b32.xlu0 %v152, 44
    %v2567 = vpop.permute.xlu0 %2566
    %2568 = vrot.lane.b32.xlu0 %v155, 44
    %v2569 = vpop.permute.xlu0 %2568
    %2570 = vrot.lane.b32.xlu0 %v158, 44
    %v2571 = vpop.permute.xlu0 %2570
    %2572 = vrot.lane.b32.xlu0 %v161, 44
    %v2573 = vpop.permute.xlu0 %2572
    %2574 = vrot.lane.b32.xlu0 %v164, 44
    %v2575 = vpop.permute.xlu0 %2574
    %2576 = vrot.lane.b32.xlu0 %v167, 44
    %v2577 = vpop.permute.xlu0 %2576
    %v2587 = vsel %vm275, %v2411, 0
    %v2590 = vsel %vm275, %v2413, 0
    %v2593 = vsel %vm275, %v2415, 0
    %v2596 = vsel %vm275, %v2417, 0
    %v2599 = vsel %vm275, %v2419, 0
    %v2602 = vsel %vm275, %v2421, 0
    %v2605 = vsel %vm275, %v2423, 0
    %v2608 = vsel %vm275, %v2425, 0
    %2610 = vmatpush.msra.mxu0 0.0
    %2611 = vmatpush.msra.mxu0 0.0
    %2612 = vmatpush.msra.mxu0 0.0
    %2613 = vmatpush.msra.mxu0 0.0
    %2614 = vmatpush.msra.mxu0 0.0
    %2615 = vmatpush.msra.mxu0 0.0
    %2616 = vmatpush.msra.mxu0 0.0
    %2617 = vmatpush.msra.mxu0 0.0
    %2618 = vmatpush.msra.mxu0 %v2577
    %2619 = vmatpush.msra.mxu0 %v2575
    %2620 = vmatpush.msra.mxu0 %v2573
    %2621 = vmatpush.msra.mxu0 %v2571
    %2622 = vmatpush.msra.mxu0 %v2569
    %2623 = vmatpush.msra.mxu0 %v2567
    %2624 = vmatpush.msra.mxu0 %v2565
    %2625 = vmatpush.msra.mxu0 %v2563
    %2626 = vmatmul.f32.gmra.mxu0 %v2587
    %v2627 = vpop.f32.mrf.mxu0
    %v2628 = vadd.f32 0.0, %v2627
    %2629 = vmatmul.f32.gmra.mxu0 %v2590
    %v2630 = vpop.f32.mrf.mxu0
    %v2631 = vadd.f32 0.0, %v2630
    %2632 = vmatmul.f32.gmra.mxu0 %v2593
    %v2633 = vpop.f32.mrf.mxu0
    %v2634 = vadd.f32 0.0, %v2633
    %2635 = vmatmul.f32.gmra.mxu0 %v2596
    %v2636 = vpop.f32.mrf.mxu0
    %v2637 = vadd.f32 0.0, %v2636
    %2638 = vmatmul.f32.gmra.mxu0 %v2599
    %v2639 = vpop.f32.mrf.mxu0
    %v2640 = vadd.f32 0.0, %v2639
    %2641 = vmatmul.f32.gmra.mxu0 %v2602
    %v2642 = vpop.f32.mrf.mxu0
    %v2643 = vadd.f32 0.0, %v2642
    %2644 = vmatmul.f32.gmra.mxu0 %v2605
    %v2645 = vpop.f32.mrf.mxu0
    %v2646 = vadd.f32 0.0, %v2645
    %2647 = vmatmul.f32.gmra.mxu0 %v2608
    %v2648 = vpop.f32.mrf.mxu0
    %v2649 = vadd.f32 0.0, %v2648
    %2650 = vdwg.mxu0
    %v2651 = vmul.f32 %v2628, %v2463
    %v2652 = vmul.f32 %v2631, %v2477
    %v2653 = vmul.f32 %v2634, %v2491
    %v2654 = vmul.f32 %v2637, %v2505
    %v2655 = vmul.f32 %v2640, %v2519
    %v2656 = vmul.f32 %v2643, %v2533
    %v2657 = vmul.f32 %v2646, %v2547
    %v2658 = vmul.f32 %v2649, %v2561
    %2667 = vrot.lane.b32.xlu0 %v2651, 20
    %v2668 = vpop.permute.xlu0 %2667
    %2669 = vrot.lane.b32.xlu0 %v2652, 20
    %v2670 = vpop.permute.xlu0 %2669
    %2671 = vrot.lane.b32.xlu0 %v2653, 20
    %v2672 = vpop.permute.xlu0 %2671
    %2673 = vrot.lane.b32.xlu0 %v2654, 20
    %v2674 = vpop.permute.xlu0 %2673
    %2675 = vrot.lane.b32.xlu0 %v2655, 20
    %v2676 = vpop.permute.xlu0 %2675
    %2677 = vrot.lane.b32.xlu0 %v2656, 20
    %v2678 = vpop.permute.xlu0 %2677
    %2679 = vrot.lane.b32.xlu0 %v2657, 20
    %v2680 = vpop.permute.xlu0 %2679
    %2681 = vrot.lane.b32.xlu0 %v2658, 20
    %v2682 = vpop.permute.xlu0 %2681
    %vm2691 = vcmask 195744
    %2692 = vst.msk [vmem:[#allocation2] sm:$0xff] %vm2691, %v2668
    %2693 = vst.msk [vmem:[#allocation2 + $0x8] sm:$0xff] %vm2691, %v2670
    %2694 = vst.msk [vmem:[#allocation2 + $0x10] sm:$0xff] %vm2691, %v2672
    %2695 = vst.msk [vmem:[#allocation2 + $0x18] sm:$0xff] %vm2691, %v2674
    %2696 = vst.msk [vmem:[#allocation2 + $0x20] sm:$0xff] %vm2691, %v2676
    %2697 = vst.msk [vmem:[#allocation2 + $0x28] sm:$0xff] %vm2691, %v2678
    %2698 = vst.msk [vmem:[#allocation2 + $0x30] sm:$0xff] %vm2691, %v2680
    %2699 = vst.msk [vmem:[#allocation2 + $0x38] sm:$0xff] %vm2691, %v2682
    %2700 = vrot.lane.b32.xlu0 %v146, 104
    %v2701 = vpop.permute.xlu0 %2700
    %2702 = vrot.lane.b32.xlu0 %v149, 104
    %v2703 = vpop.permute.xlu0 %2702
    %2704 = vrot.lane.b32.xlu0 %v152, 104
    %v2705 = vpop.permute.xlu0 %2704
    %2706 = vrot.lane.b32.xlu0 %v155, 104
    %v2707 = vpop.permute.xlu0 %2706
    %2708 = vrot.lane.b32.xlu0 %v158, 104
    %v2709 = vpop.permute.xlu0 %2708
    %2710 = vrot.lane.b32.xlu0 %v161, 104
    %v2711 = vpop.permute.xlu0 %2710
    %2712 = vrot.lane.b32.xlu0 %v164, 104
    %v2713 = vpop.permute.xlu0 %2712
    %2714 = vrot.lane.b32.xlu0 %v167, 104
    %v2715 = vpop.permute.xlu0 %2714
    %2716 = vrot.lane.b32.xlu0 %v146, 72
    %v2717 = vpop.permute.xlu0 %2716
    %2718 = vrot.lane.b32.xlu0 %v149, 72
    %v2719 = vpop.permute.xlu0 %2718
    %2720 = vrot.lane.b32.xlu0 %v152, 72
    %v2721 = vpop.permute.xlu0 %2720
    %2722 = vrot.lane.b32.xlu0 %v155, 72
    %v2723 = vpop.permute.xlu0 %2722
    %2724 = vrot.lane.b32.xlu0 %v158, 72
    %v2725 = vpop.permute.xlu0 %2724
    %2726 = vrot.lane.b32.xlu0 %v161, 72
    %v2727 = vpop.permute.xlu0 %2726
    %2728 = vrot.lane.b32.xlu0 %v164, 72
    %v2729 = vpop.permute.xlu0 %2728
    %2730 = vrot.lane.b32.xlu0 %v167, 72
    %v2731 = vpop.permute.xlu0 %2730
    %v2732 = vsel %vm201, %v2701, 0
    %v2734 = vsel %vm201, %v2703, 0
    %v2736 = vsel %vm201, %v2705, 0
    %v2738 = vsel %vm201, %v2707, 0
    %v2740 = vsel %vm201, %v2709, 0
    %v2742 = vsel %vm201, %v2711, 0
    %v2744 = vsel %vm201, %v2713, 0
    %v2746 = vsel %vm201, %v2715, 0
    %v2748 = vsel %vm201, %v2717, 0
    %v2750 = vsel %vm201, %v2719, 0
    %v2752 = vsel %vm201, %v2721, 0
    %v2754 = vsel %vm201, %v2723, 0
    %v2756 = vsel %vm201, %v2725, 0
    %v2758 = vsel %vm201, %v2727, 0
    %v2760 = vsel %vm201, %v2729, 0
    %v2762 = vsel %vm201, %v2731, 0
    %2764 = vmatpush.xpose.msra.mxu0 0.0
    %2765 = vmatpush.xpose.msra.mxu0 0.0
    %2766 = vmatpush.xpose.msra.mxu0 0.0
    %2767 = vmatpush.xpose.msra.mxu0 0.0
    %2768 = vmatpush.xpose.msra.mxu0 0.0
    %2769 = vmatpush.xpose.msra.mxu0 0.0
    %2770 = vmatpush.xpose.msra.mxu0 0.0
    %2771 = vmatpush.xpose.msra.mxu0 0.0
    %2772 = vmatpush.xpose.msra.mxu0 %v2762
    %2773 = vmatpush.xpose.msra.mxu0 %v2760
    %2774 = vmatpush.xpose.msra.mxu0 %v2758
    %2775 = vmatpush.xpose.msra.mxu0 %v2756
    %2776 = vmatpush.xpose.msra.mxu0 %v2754
    %2777 = vmatpush.xpose.msra.mxu0 %v2752
    %2778 = vmatpush.xpose.msra.mxu0 %v2750
    %2779 = vmatpush.xpose.msra.mxu0 %v2748
    %2780 = vmatmul.f32.gmra.mxu0 %v2732
    %v2781 = vpop.f32.mrf.mxu0
    %v2782 = vadd.f32 %v169, %v2781
    %2783 = vmatmul.f32.gmra.mxu0 %v2734
    %v2784 = vpop.f32.mrf.mxu0
    %v2785 = vadd.f32 %v170, %v2784
    %2786 = vmatmul.f32.gmra.mxu0 %v2736
    %v2787 = vpop.f32.mrf.mxu0
    %v2788 = vadd.f32 %v171, %v2787
    %2789 = vmatmul.f32.gmra.mxu0 %v2738
    %v2790 = vpop.f32.mrf.mxu0
    %v2791 = vadd.f32 %v172, %v2790
    %2792 = vmatmul.f32.gmra.mxu0 %v2740
    %v2793 = vpop.f32.mrf.mxu0
    %v2794 = vadd.f32 %v173, %v2793
    %2795 = vmatmul.f32.gmra.mxu0 %v2742
    %v2796 = vpop.f32.mrf.mxu0
    %v2797 = vadd.f32 %v174, %v2796
    %2798 = vmatmul.f32.gmra.mxu0 %v2744
    %v2799 = vpop.f32.mrf.mxu0
    %v2800 = vadd.f32 %v175, %v2799
    %2801 = vmatmul.f32.gmra.mxu0 %v2746
    %v2802 = vpop.f32.mrf.mxu0
    %v2803 = vadd.f32 %v176, %v2802
    %2804 = vdwg.mxu0
    %v2805 = vsel %vm275, %v2782, -inf
    %2806 = vmax.xlane.f32.xlu0 %v2805
    %v2807 = vpop.xlane.xlu0 %2806
    %v2808 = vsel %vm275, %v2785, -inf
    %2809 = vmax.xlane.f32.xlu0 %v2808
    %v2810 = vpop.xlane.xlu0 %2809
    %v2811 = vsel %vm275, %v2788, -inf
    %2812 = vmax.xlane.f32.xlu0 %v2811
    %v2813 = vpop.xlane.xlu0 %2812
    %v2814 = vsel %vm275, %v2791, -inf
    %2815 = vmax.xlane.f32.xlu0 %v2814
    %v2816 = vpop.xlane.xlu0 %2815
    %v2817 = vsel %vm275, %v2794, -inf
    %2818 = vmax.xlane.f32.xlu0 %v2817
    %v2819 = vpop.xlane.xlu0 %2818
    %v2820 = vsel %vm275, %v2797, -inf
    %2821 = vmax.xlane.f32.xlu0 %v2820
    %v2822 = vpop.xlane.xlu0 %2821
    %v2823 = vsel %vm275, %v2800, -inf
    %2824 = vmax.xlane.f32.xlu0 %v2823
    %v2825 = vpop.xlane.xlu0 %2824
    %v2826 = vsel %vm275, %v2803, -inf
    %2827 = vmax.xlane.f32.xlu0 %v2826
    %v2828 = vpop.xlane.xlu0 %2827
    %v2829 = vsub.f32 %v2782, %v2807
    %v2830 = vsub.f32 %v2785, %v2810
    %v2831 = vsub.f32 %v2788, %v2813
    %v2832 = vsub.f32 %v2791, %v2816
    %v2833 = vsub.f32 %v2794, %v2819
    %v2834 = vsub.f32 %v2797, %v2822
    %v2835 = vsub.f32 %v2800, %v2825
    %v2836 = vsub.f32 %v2803, %v2828
    %v2837 = vmul.f32 %v2829, 1.442695
    %v2838 = vpow.pop %v2837
    %v2839 = vmul.f32 %v2830, 1.442695
    %v2840 = vpow.pop %v2839
    %v2841 = vmul.f32 %v2831, 1.442695
    %v2842 = vpow.pop %v2841
    %v2843 = vmul.f32 %v2832, 1.442695
    %v2844 = vpow.pop %v2843
    %v2845 = vmul.f32 %v2833, 1.442695
    %v2846 = vpow.pop %v2845
    %v2847 = vmul.f32 %v2834, 1.442695
    %v2848 = vpow.pop %v2847
    %v2849 = vmul.f32 %v2835, 1.442695
    %v2850 = vpow.pop %v2849
    %v2851 = vmul.f32 %v2836, 1.442695
    %v2852 = vpow.pop %v2851
    %v2853 = vsel %vm275, %v2838, 0.0
    %2854 = vadd.xlane.f32.xlu0 %v2853
    %v2855 = vpop.xlane.xlu0 %2854
    %v2856 = vsel %vm275, %v2840, 0.0
    %2857 = vadd.xlane.f32.xlu0 %v2856
    %v2858 = vpop.xlane.xlu0 %2857
    %v2859 = vsel %vm275, %v2842, 0.0
    %2860 = vadd.xlane.f32.xlu0 %v2859
    %v2861 = vpop.xlane.xlu0 %2860
    %v2862 = vsel %vm275, %v2844, 0.0
    %2863 = vadd.xlane.f32.xlu0 %v2862
    %v2864 = vpop.xlane.xlu0 %2863
    %v2865 = vsel %vm275, %v2846, 0.0
    %2866 = vadd.xlane.f32.xlu0 %v2865
    %v2867 = vpop.xlane.xlu0 %2866
    %v2868 = vsel %vm275, %v2848, 0.0
    %2869 = vadd.xlane.f32.xlu0 %v2868
    %v2870 = vpop.xlane.xlu0 %2869
    %v2871 = vsel %vm275, %v2850, 0.0
    %2872 = vadd.xlane.f32.xlu0 %v2871
    %v2873 = vpop.xlane.xlu0 %2872
    %v2874 = vsel %vm275, %v2852, 0.0
    %2875 = vadd.xlane.f32.xlu0 %v2874
    %v2876 = vpop.xlane.xlu0 %2875
    %v2877 = vrcp.pop %v2855
    %v2878 = vmul.f32 %v2855, %v2877
    %v2879 = vsub.f32 1.0, %v2878
    %v2880 = vmul.f32 %v2877, %v2879
    %v2881 = vadd.f32 %v2877, %v2880
    %vm2882 = vweird.f32 %v2855
    %vm2883 = vweird.f32 %v2877
    %vm2884 = vmor %vm2882, %vm2883
    %v2885 = vsel %vm2884, %v2877, %v2881
    %v2886 = vand.u32 2147483647, %v2855
    %vm2887 = vcmp.eq.f32.partialorder %v2886, 8.507059e+37
    %v2888 = vand.u32 %v2855, 2147483648
    %v2889 = vor.u32 1.1754944e-38, %v2888
    %v2890 = vsel %vm2887, %v2889, %v2885
    %v2891 = vrcp.pop %v2858
    %v2892 = vmul.f32 %v2858, %v2891
    %v2893 = vsub.f32 1.0, %v2892
    %v2894 = vmul.f32 %v2891, %v2893
    %v2895 = vadd.f32 %v2891, %v2894
    %vm2896 = vweird.f32 %v2858
    %vm2897 = vweird.f32 %v2891
    %vm2898 = vmor %vm2896, %vm2897
    %v2899 = vsel %vm2898, %v2891, %v2895
    %v2900 = vand.u32 2147483647, %v2858
    %vm2901 = vcmp.eq.f32.partialorder %v2900, 8.507059e+37
    %v2902 = vand.u32 %v2858, 2147483648
    %v2903 = vor.u32 1.1754944e-38, %v2902
    %v2904 = vsel %vm2901, %v2903, %v2899
    %v2905 = vrcp.pop %v2861
    %v2906 = vmul.f32 %v2861, %v2905
    %v2907 = vsub.f32 1.0, %v2906
    %v2908 = vmul.f32 %v2905, %v2907
    %v2909 = vadd.f32 %v2905, %v2908
    %vm2910 = vweird.f32 %v2861
    %vm2911 = vweird.f32 %v2905
    %vm2912 = vmor %vm2910, %vm2911
    %v2913 = vsel %vm2912, %v2905, %v2909
    %v2914 = vand.u32 2147483647, %v2861
    %vm2915 = vcmp.eq.f32.partialorder %v2914, 8.507059e+37
    %v2916 = vand.u32 %v2861, 2147483648
    %v2917 = vor.u32 1.1754944e-38, %v2916
    %v2918 = vsel %vm2915, %v2917, %v2913
    %v2919 = vrcp.pop %v2864
    %v2920 = vmul.f32 %v2864, %v2919
    %v2921 = vsub.f32 1.0, %v2920
    %v2922 = vmul.f32 %v2919, %v2921
    %v2923 = vadd.f32 %v2919, %v2922
    %vm2924 = vweird.f32 %v2864
    %vm2925 = vweird.f32 %v2919
    %vm2926 = vmor %vm2924, %vm2925
    %v2927 = vsel %vm2926, %v2919, %v2923
    %v2928 = vand.u32 2147483647, %v2864
    %vm2929 = vcmp.eq.f32.partialorder %v2928, 8.507059e+37
    %v2930 = vand.u32 %v2864, 2147483648
    %v2931 = vor.u32 1.1754944e-38, %v2930
    %v2932 = vsel %vm2929, %v2931, %v2927
    %v2933 = vrcp.pop %v2867
    %v2934 = vmul.f32 %v2867, %v2933
    %v2935 = vsub.f32 1.0, %v2934
    %v2936 = vmul.f32 %v2933, %v2935
    %v2937 = vadd.f32 %v2933, %v2936
    %vm2938 = vweird.f32 %v2867
    %vm2939 = vweird.f32 %v2933
    %vm2940 = vmor %vm2938, %vm2939
    %v2941 = vsel %vm2940, %v2933, %v2937
    %v2942 = vand.u32 2147483647, %v2867
    %vm2943 = vcmp.eq.f32.partialorder %v2942, 8.507059e+37
    %v2944 = vand.u32 %v2867, 2147483648
    %v2945 = vor.u32 1.1754944e-38, %v2944
    %v2946 = vsel %vm2943, %v2945, %v2941
    %v2947 = vrcp.pop %v2870
    %v2948 = vmul.f32 %v2870, %v2947
    %v2949 = vsub.f32 1.0, %v2948
    %v2950 = vmul.f32 %v2947, %v2949
    %v2951 = vadd.f32 %v2947, %v2950
    %vm2952 = vweird.f32 %v2870
    %vm2953 = vweird.f32 %v2947
    %vm2954 = vmor %vm2952, %vm2953
    %v2955 = vsel %vm2954, %v2947, %v2951
    %v2956 = vand.u32 2147483647, %v2870
    %vm2957 = vcmp.eq.f32.partialorder %v2956, 8.507059e+37
    %v2958 = vand.u32 %v2870, 2147483648
    %v2959 = vor.u32 1.1754944e-38, %v2958
    %v2960 = vsel %vm2957, %v2959, %v2955
    %v2961 = vrcp.pop %v2873
    %v2962 = vmul.f32 %v2873, %v2961
    %v2963 = vsub.f32 1.0, %v2962
    %v2964 = vmul.f32 %v2961, %v2963
    %v2965 = vadd.f32 %v2961, %v2964
    %vm2966 = vweird.f32 %v2873
    %vm2967 = vweird.f32 %v2961
    %vm2968 = vmor %vm2966, %vm2967
    %v2969 = vsel %vm2968, %v2961, %v2965
    %v2970 = vand.u32 2147483647, %v2873
    %vm2971 = vcmp.eq.f32.partialorder %v2970, 8.507059e+37
    %v2972 = vand.u32 %v2873, 2147483648
    %v2973 = vor.u32 1.1754944e-38, %v2972
    %v2974 = vsel %vm2971, %v2973, %v2969
    %v2975 = vrcp.pop %v2876
    %v2976 = vmul.f32 %v2876, %v2975
    %v2977 = vsub.f32 1.0, %v2976
    %v2978 = vmul.f32 %v2975, %v2977
    %v2979 = vadd.f32 %v2975, %v2978
    %vm2980 = vweird.f32 %v2876
    %vm2981 = vweird.f32 %v2975
    %vm2982 = vmor %vm2980, %vm2981
    %v2983 = vsel %vm2982, %v2975, %v2979
    %v2984 = vand.u32 2147483647, %v2876
    %vm2985 = vcmp.eq.f32.partialorder %v2984, 8.507059e+37
    %v2986 = vand.u32 %v2876, 2147483648
    %v2987 = vor.u32 1.1754944e-38, %v2986
    %v2988 = vsel %vm2985, %v2987, %v2983
    %2989 = vrot.lane.b32.xlu0 %v146, 40
    %v2990 = vpop.permute.xlu0 %2989
    %2991 = vrot.lane.b32.xlu0 %v149, 40
    %v2992 = vpop.permute.xlu0 %2991
    %2993 = vrot.lane.b32.xlu0 %v152, 40
    %v2994 = vpop.permute.xlu0 %2993
    %2995 = vrot.lane.b32.xlu0 %v155, 40
    %v2996 = vpop.permute.xlu0 %2995
    %2997 = vrot.lane.b32.xlu0 %v158, 40
    %v2998 = vpop.permute.xlu0 %2997
    %2999 = vrot.lane.b32.xlu0 %v161, 40
    %v3000 = vpop.permute.xlu0 %2999
    %3001 = vrot.lane.b32.xlu0 %v164, 40
    %v3002 = vpop.permute.xlu0 %3001
    %3003 = vrot.lane.b32.xlu0 %v167, 40
    %v3004 = vpop.permute.xlu0 %3003
    %v3014 = vsel %vm275, %v2838, 0
    %v3017 = vsel %vm275, %v2840, 0
    %v3020 = vsel %vm275, %v2842, 0
    %v3023 = vsel %vm275, %v2844, 0
    %v3026 = vsel %vm275, %v2846, 0
    %v3029 = vsel %vm275, %v2848, 0
    %v3032 = vsel %vm275, %v2850, 0
    %v3035 = vsel %vm275, %v2852, 0
    %3037 = vmatpush.msra.mxu0 0.0
    %3038 = vmatpush.msra.mxu0 0.0
    %3039 = vmatpush.msra.mxu0 0.0
    %3040 = vmatpush.msra.mxu0 0.0
    %3041 = vmatpush.msra.mxu0 0.0
    %3042 = vmatpush.msra.mxu0 0.0
    %3043 = vmatpush.msra.mxu0 0.0
    %3044 = vmatpush.msra.mxu0 0.0
    %3045 = vmatpush.msra.mxu0 %v3004
    %3046 = vmatpush.msra.mxu0 %v3002
    %3047 = vmatpush.msra.mxu0 %v3000
    %3048 = vmatpush.msra.mxu0 %v2998
    %3049 = vmatpush.msra.mxu0 %v2996
    %3050 = vmatpush.msra.mxu0 %v2994
    %3051 = vmatpush.msra.mxu0 %v2992
    %3052 = vmatpush.msra.mxu0 %v2990
    %3053 = vmatmul.f32.gmra.mxu0 %v3014
    %v3054 = vpop.f32.mrf.mxu0
    %v3055 = vadd.f32 0.0, %v3054
    %3056 = vmatmul.f32.gmra.mxu0 %v3017
    %v3057 = vpop.f32.mrf.mxu0
    %v3058 = vadd.f32 0.0, %v3057
    %3059 = vmatmul.f32.gmra.mxu0 %v3020
    %v3060 = vpop.f32.mrf.mxu0
    %v3061 = vadd.f32 0.0, %v3060
    %3062 = vmatmul.f32.gmra.mxu0 %v3023
    %v3063 = vpop.f32.mrf.mxu0
    %v3064 = vadd.f32 0.0, %v3063
    %3065 = vmatmul.f32.gmra.mxu0 %v3026
    %v3066 = vpop.f32.mrf.mxu0
    %v3067 = vadd.f32 0.0, %v3066
    %3068 = vmatmul.f32.gmra.mxu0 %v3029
    %v3069 = vpop.f32.mrf.mxu0
    %v3070 = vadd.f32 0.0, %v3069
    %3071 = vmatmul.f32.gmra.mxu0 %v3032
    %v3072 = vpop.f32.mrf.mxu0
    %v3073 = vadd.f32 0.0, %v3072
    %3074 = vmatmul.f32.gmra.mxu0 %v3035
    %v3075 = vpop.f32.mrf.mxu0
    %v3076 = vadd.f32 0.0, %v3075
    %3077 = vdwg.mxu0
    %v3078 = vmul.f32 %v3055, %v2890
    %v3079 = vmul.f32 %v3058, %v2904
    %v3080 = vmul.f32 %v3061, %v2918
    %v3081 = vmul.f32 %v3064, %v2932
    %v3082 = vmul.f32 %v3067, %v2946
    %v3083 = vmul.f32 %v3070, %v2960
    %v3084 = vmul.f32 %v3073, %v2974
    %v3085 = vmul.f32 %v3076, %v2988
    %3094 = vrot.lane.b32.xlu0 %v3078, 24
    %v3095 = vpop.permute.xlu0 %3094
    %3096 = vrot.lane.b32.xlu0 %v3079, 24
    %v3097 = vpop.permute.xlu0 %3096
    %3098 = vrot.lane.b32.xlu0 %v3080, 24
    %v3099 = vpop.permute.xlu0 %3098
    %3100 = vrot.lane.b32.xlu0 %v3081, 24
    %v3101 = vpop.permute.xlu0 %3100
    %3102 = vrot.lane.b32.xlu0 %v3082, 24
    %v3103 = vpop.permute.xlu0 %3102
    %3104 = vrot.lane.b32.xlu0 %v3083, 24
    %v3105 = vpop.permute.xlu0 %3104
    %3106 = vrot.lane.b32.xlu0 %v3084, 24
    %v3107 = vpop.permute.xlu0 %3106
    %3108 = vrot.lane.b32.xlu0 %v3085, 24
    %v3109 = vpop.permute.xlu0 %3108
    %vm3118 = vcmask 228544
    %3119 = vst.msk [vmem:[#allocation2] sm:$0xff] %vm3118, %v3095
    %3120 = vst.msk [vmem:[#allocation2 + $0x8] sm:$0xff] %vm3118, %v3097
    %3121 = vst.msk [vmem:[#allocation2 + $0x10] sm:$0xff] %vm3118, %v3099
    %3122 = vst.msk [vmem:[#allocation2 + $0x18] sm:$0xff] %vm3118, %v3101
    %3123 = vst.msk [vmem:[#allocation2 + $0x20] sm:$0xff] %vm3118, %v3103
    %3124 = vst.msk [vmem:[#allocation2 + $0x28] sm:$0xff] %vm3118, %v3105
    %3125 = vst.msk [vmem:[#allocation2 + $0x30] sm:$0xff] %vm3118, %v3107
    %3126 = vst.msk [vmem:[#allocation2 + $0x38] sm:$0xff] %vm3118, %v3109
    %3127 = vrot.lane.b32.xlu0 %v146, 100
    %v3128 = vpop.permute.xlu0 %3127
    %3129 = vrot.lane.b32.xlu0 %v149, 100
    %v3130 = vpop.permute.xlu0 %3129
    %3131 = vrot.lane.b32.xlu0 %v152, 100
    %v3132 = vpop.permute.xlu0 %3131
    %3133 = vrot.lane.b32.xlu0 %v155, 100
    %v3134 = vpop.permute.xlu0 %3133
    %3135 = vrot.lane.b32.xlu0 %v158, 100
    %v3136 = vpop.permute.xlu0 %3135
    %3137 = vrot.lane.b32.xlu0 %v161, 100
    %v3138 = vpop.permute.xlu0 %3137
    %3139 = vrot.lane.b32.xlu0 %v164, 100
    %v3140 = vpop.permute.xlu0 %3139
    %3141 = vrot.lane.b32.xlu0 %v167, 100
    %v3142 = vpop.permute.xlu0 %3141
    %3143 = vrot.lane.b32.xlu0 %v146, 68
    %v3144 = vpop.permute.xlu0 %3143
    %3145 = vrot.lane.b32.xlu0 %v149, 68
    %v3146 = vpop.permute.xlu0 %3145
    %3147 = vrot.lane.b32.xlu0 %v152, 68
    %v3148 = vpop.permute.xlu0 %3147
    %3149 = vrot.lane.b32.xlu0 %v155, 68
    %v3150 = vpop.permute.xlu0 %3149
    %3151 = vrot.lane.b32.xlu0 %v158, 68
    %v3152 = vpop.permute.xlu0 %3151
    %3153 = vrot.lane.b32.xlu0 %v161, 68
    %v3154 = vpop.permute.xlu0 %3153
    %3155 = vrot.lane.b32.xlu0 %v164, 68
    %v3156 = vpop.permute.xlu0 %3155
    %3157 = vrot.lane.b32.xlu0 %v167, 68
    %v3158 = vpop.permute.xlu0 %3157
    %v3159 = vsel %vm201, %v3128, 0
    %v3161 = vsel %vm201, %v3130, 0
    %v3163 = vsel %vm201, %v3132, 0
    %v3165 = vsel %vm201, %v3134, 0
    %v3167 = vsel %vm201, %v3136, 0
    %v3169 = vsel %vm201, %v3138, 0
    %v3171 = vsel %vm201, %v3140, 0
    %v3173 = vsel %vm201, %v3142, 0
    %v3175 = vsel %vm201, %v3144, 0
    %v3177 = vsel %vm201, %v3146, 0
    %v3179 = vsel %vm201, %v3148, 0
    %v3181 = vsel %vm201, %v3150, 0
    %v3183 = vsel %vm201, %v3152, 0
    %v3185 = vsel %vm201, %v3154, 0
    %v3187 = vsel %vm201, %v3156, 0
    %v3189 = vsel %vm201, %v3158, 0
    %3191 = vmatpush.xpose.msra.mxu0 0.0
    %3192 = vmatpush.xpose.msra.mxu0 0.0
    %3193 = vmatpush.xpose.msra.mxu0 0.0
    %3194 = vmatpush.xpose.msra.mxu0 0.0
    %3195 = vmatpush.xpose.msra.mxu0 0.0
    %3196 = vmatpush.xpose.msra.mxu0 0.0
    %3197 = vmatpush.xpose.msra.mxu0 0.0
    %3198 = vmatpush.xpose.msra.mxu0 0.0
    %3199 = vmatpush.xpose.msra.mxu0 %v3189
    %3200 = vmatpush.xpose.msra.mxu0 %v3187
    %3201 = vmatpush.xpose.msra.mxu0 %v3185
    %3202 = vmatpush.xpose.msra.mxu0 %v3183
    %3203 = vmatpush.xpose.msra.mxu0 %v3181
    %3204 = vmatpush.xpose.msra.mxu0 %v3179
    %3205 = vmatpush.xpose.msra.mxu0 %v3177
    %3206 = vmatpush.xpose.msra.mxu0 %v3175
    %3207 = vmatmul.f32.gmra.mxu0 %v3159
    %v3208 = vpop.f32.mrf.mxu0
    %v3209 = vadd.f32 %v169, %v3208
    %3210 = vmatmul.f32.gmra.mxu0 %v3161
    %v3211 = vpop.f32.mrf.mxu0
    %v3212 = vadd.f32 %v170, %v3211
    %3213 = vmatmul.f32.gmra.mxu0 %v3163
    %v3214 = vpop.f32.mrf.mxu0
    %v3215 = vadd.f32 %v171, %v3214
    %3216 = vmatmul.f32.gmra.mxu0 %v3165
    %v3217 = vpop.f32.mrf.mxu0
    %v3218 = vadd.f32 %v172, %v3217
    %3219 = vmatmul.f32.gmra.mxu0 %v3167
    %v3220 = vpop.f32.mrf.mxu0
    %v3221 = vadd.f32 %v173, %v3220
    %3222 = vmatmul.f32.gmra.mxu0 %v3169
    %v3223 = vpop.f32.mrf.mxu0
    %v3224 = vadd.f32 %v174, %v3223
    %3225 = vmatmul.f32.gmra.mxu0 %v3171
    %v3226 = vpop.f32.mrf.mxu0
    %v3227 = vadd.f32 %v175, %v3226
    %3228 = vmatmul.f32.gmra.mxu0 %v3173
    %v3229 = vpop.f32.mrf.mxu0
    %v3230 = vadd.f32 %v176, %v3229
    %3231 = vdwg.mxu0
    %v3232 = vsel %vm275, %v3209, -inf
    %3233 = vmax.xlane.f32.xlu0 %v3232
    %v3234 = vpop.xlane.xlu0 %3233
    %v3235 = vsel %vm275, %v3212, -inf
    %3236 = vmax.xlane.f32.xlu0 %v3235
    %v3237 = vpop.xlane.xlu0 %3236
    %v3238 = vsel %vm275, %v3215, -inf
    %3239 = vmax.xlane.f32.xlu0 %v3238
    %v3240 = vpop.xlane.xlu0 %3239
    %v3241 = vsel %vm275, %v3218, -inf
    %3242 = vmax.xlane.f32.xlu0 %v3241
    %v3243 = vpop.xlane.xlu0 %3242
    %v3244 = vsel %vm275, %v3221, -inf
    %3245 = vmax.xlane.f32.xlu0 %v3244
    %v3246 = vpop.xlane.xlu0 %3245
    %v3247 = vsel %vm275, %v3224, -inf
    %3248 = vmax.xlane.f32.xlu0 %v3247
    %v3249 = vpop.xlane.xlu0 %3248
    %v3250 = vsel %vm275, %v3227, -inf
    %3251 = vmax.xlane.f32.xlu0 %v3250
    %v3252 = vpop.xlane.xlu0 %3251
    %v3253 = vsel %vm275, %v3230, -inf
    %3254 = vmax.xlane.f32.xlu0 %v3253
    %v3255 = vpop.xlane.xlu0 %3254
    %v3256 = vsub.f32 %v3209, %v3234
    %v3257 = vsub.f32 %v3212, %v3237
    %v3258 = vsub.f32 %v3215, %v3240
    %v3259 = vsub.f32 %v3218, %v3243
    %v3260 = vsub.f32 %v3221, %v3246
    %v3261 = vsub.f32 %v3224, %v3249
    %v3262 = vsub.f32 %v3227, %v3252
    %v3263 = vsub.f32 %v3230, %v3255
    %v3264 = vmul.f32 %v3256, 1.442695
    %v3265 = vpow.pop %v3264
    %v3266 = vmul.f32 %v3257, 1.442695
    %v3267 = vpow.pop %v3266
    %v3268 = vmul.f32 %v3258, 1.442695
    %v3269 = vpow.pop %v3268
    %v3270 = vmul.f32 %v3259, 1.442695
    %v3271 = vpow.pop %v3270
    %v3272 = vmul.f32 %v3260, 1.442695
    %v3273 = vpow.pop %v3272
    %v3274 = vmul.f32 %v3261, 1.442695
    %v3275 = vpow.pop %v3274
    %v3276 = vmul.f32 %v3262, 1.442695
    %v3277 = vpow.pop %v3276
    %v3278 = vmul.f32 %v3263, 1.442695
    %v3279 = vpow.pop %v3278
    %v3280 = vsel %vm275, %v3265, 0.0
    %3281 = vadd.xlane.f32.xlu0 %v3280
    %v3282 = vpop.xlane.xlu0 %3281
    %v3283 = vsel %vm275, %v3267, 0.0
    %3284 = vadd.xlane.f32.xlu0 %v3283
    %v3285 = vpop.xlane.xlu0 %3284
    %v3286 = vsel %vm275, %v3269, 0.0
    %3287 = vadd.xlane.f32.xlu0 %v3286
    %v3288 = vpop.xlane.xlu0 %3287
    %v3289 = vsel %vm275, %v3271, 0.0
    %3290 = vadd.xlane.f32.xlu0 %v3289
    %v3291 = vpop.xlane.xlu0 %3290
    %v3292 = vsel %vm275, %v3273, 0.0
    %3293 = vadd.xlane.f32.xlu0 %v3292
    %v3294 = vpop.xlane.xlu0 %3293
    %v3295 = vsel %vm275, %v3275, 0.0
    %3296 = vadd.xlane.f32.xlu0 %v3295
    %v3297 = vpop.xlane.xlu0 %3296
    %v3298 = vsel %vm275, %v3277, 0.0
    %3299 = vadd.xlane.f32.xlu0 %v3298
    %v3300 = vpop.xlane.xlu0 %3299
    %v3301 = vsel %vm275, %v3279, 0.0
    %3302 = vadd.xlane.f32.xlu0 %v3301
    %v3303 = vpop.xlane.xlu0 %3302
    %v3304 = vrcp.pop %v3282
    %v3305 = vmul.f32 %v3282, %v3304
    %v3306 = vsub.f32 1.0, %v3305
    %v3307 = vmul.f32 %v3304, %v3306
    %v3308 = vadd.f32 %v3304, %v3307
    %vm3309 = vweird.f32 %v3282
    %vm3310 = vweird.f32 %v3304
    %vm3311 = vmor %vm3309, %vm3310
    %v3312 = vsel %vm3311, %v3304, %v3308
    %v3313 = vand.u32 2147483647, %v3282
    %vm3314 = vcmp.eq.f32.partialorder %v3313, 8.507059e+37
    %v3315 = vand.u32 %v3282, 2147483648
    %v3316 = vor.u32 1.1754944e-38, %v3315
    %v3317 = vsel %vm3314, %v3316, %v3312
    %v3318 = vrcp.pop %v3285
    %v3319 = vmul.f32 %v3285, %v3318
    %v3320 = vsub.f32 1.0, %v3319
    %v3321 = vmul.f32 %v3318, %v3320
    %v3322 = vadd.f32 %v3318, %v3321
    %vm3323 = vweird.f32 %v3285
    %vm3324 = vweird.f32 %v3318
    %vm3325 = vmor %vm3323, %vm3324
    %v3326 = vsel %vm3325, %v3318, %v3322
    %v3327 = vand.u32 2147483647, %v3285
    %vm3328 = vcmp.eq.f32.partialorder %v3327, 8.507059e+37
    %v3329 = vand.u32 %v3285, 2147483648
    %v3330 = vor.u32 1.1754944e-38, %v3329
    %v3331 = vsel %vm3328, %v3330, %v3326
    %v3332 = vrcp.pop %v3288
    %v3333 = vmul.f32 %v3288, %v3332
    %v3334 = vsub.f32 1.0, %v3333
    %v3335 = vmul.f32 %v3332, %v3334
    %v3336 = vadd.f32 %v3332, %v3335
    %vm3337 = vweird.f32 %v3288
    %vm3338 = vweird.f32 %v3332
    %vm3339 = vmor %vm3337, %vm3338
    %v3340 = vsel %vm3339, %v3332, %v3336
    %v3341 = vand.u32 2147483647, %v3288
    %vm3342 = vcmp.eq.f32.partialorder %v3341, 8.507059e+37
    %v3343 = vand.u32 %v3288, 2147483648
    %v3344 = vor.u32 1.1754944e-38, %v3343
    %v3345 = vsel %vm3342, %v3344, %v3340
    %v3346 = vrcp.pop %v3291
    %v3347 = vmul.f32 %v3291, %v3346
    %v3348 = vsub.f32 1.0, %v3347
    %v3349 = vmul.f32 %v3346, %v3348
    %v3350 = vadd.f32 %v3346, %v3349
    %vm3351 = vweird.f32 %v3291
    %vm3352 = vweird.f32 %v3346
    %vm3353 = vmor %vm3351, %vm3352
    %v3354 = vsel %vm3353, %v3346, %v3350
    %v3355 = vand.u32 2147483647, %v3291
    %vm3356 = vcmp.eq.f32.partialorder %v3355, 8.507059e+37
    %v3357 = vand.u32 %v3291, 2147483648
    %v3358 = vor.u32 1.1754944e-38, %v3357
    %v3359 = vsel %vm3356, %v3358, %v3354
    %v3360 = vrcp.pop %v3294
    %v3361 = vmul.f32 %v3294, %v3360
    %v3362 = vsub.f32 1.0, %v3361
    %v3363 = vmul.f32 %v3360, %v3362
    %v3364 = vadd.f32 %v3360, %v3363
    %vm3365 = vweird.f32 %v3294
    %vm3366 = vweird.f32 %v3360
    %vm3367 = vmor %vm3365, %vm3366
    %v3368 = vsel %vm3367, %v3360, %v3364
    %v3369 = vand.u32 2147483647, %v3294
    %vm3370 = vcmp.eq.f32.partialorder %v3369, 8.507059e+37
    %v3371 = vand.u32 %v3294, 2147483648
    %v3372 = vor.u32 1.1754944e-38, %v3371
    %v3373 = vsel %vm3370, %v3372, %v3368
    %v3374 = vrcp.pop %v3297
    %v3375 = vmul.f32 %v3297, %v3374
    %v3376 = vsub.f32 1.0, %v3375
    %v3377 = vmul.f32 %v3374, %v3376
    %v3378 = vadd.f32 %v3374, %v3377
    %vm3379 = vweird.f32 %v3297
    %vm3380 = vweird.f32 %v3374
    %vm3381 = vmor %vm3379, %vm3380
    %v3382 = vsel %vm3381, %v3374, %v3378
    %v3383 = vand.u32 2147483647, %v3297
    %vm3384 = vcmp.eq.f32.partialorder %v3383, 8.507059e+37
    %v3385 = vand.u32 %v3297, 2147483648
    %v3386 = vor.u32 1.1754944e-38, %v3385
    %v3387 = vsel %vm3384, %v3386, %v3382
    %v3388 = vrcp.pop %v3300
    %v3389 = vmul.f32 %v3300, %v3388
    %v3390 = vsub.f32 1.0, %v3389
    %v3391 = vmul.f32 %v3388, %v3390
    %v3392 = vadd.f32 %v3388, %v3391
    %vm3393 = vweird.f32 %v3300
    %vm3394 = vweird.f32 %v3388
    %vm3395 = vmor %vm3393, %vm3394
    %v3396 = vsel %vm3395, %v3388, %v3392
    %v3397 = vand.u32 2147483647, %v3300
    %vm3398 = vcmp.eq.f32.partialorder %v3397, 8.507059e+37
    %v3399 = vand.u32 %v3300, 2147483648
    %v3400 = vor.u32 1.1754944e-38, %v3399
    %v3401 = vsel %vm3398, %v3400, %v3396
    %v3402 = vrcp.pop %v3303
    %v3403 = vmul.f32 %v3303, %v3402
    %v3404 = vsub.f32 1.0, %v3403
    %v3405 = vmul.f32 %v3402, %v3404
    %v3406 = vadd.f32 %v3402, %v3405
    %vm3407 = vweird.f32 %v3303
    %vm3408 = vweird.f32 %v3402
    %vm3409 = vmor %vm3407, %vm3408
    %v3410 = vsel %vm3409, %v3402, %v3406
    %v3411 = vand.u32 2147483647, %v3303
    %vm3412 = vcmp.eq.f32.partialorder %v3411, 8.507059e+37
    %v3413 = vand.u32 %v3303, 2147483648
    %v3414 = vor.u32 1.1754944e-38, %v3413
    %v3415 = vsel %vm3412, %v3414, %v3410
    %3416 = vrot.lane.b32.xlu0 %v146, 36
    %v3417 = vpop.permute.xlu0 %3416
    %3418 = vrot.lane.b32.xlu0 %v149, 36
    %v3419 = vpop.permute.xlu0 %3418
    %3420 = vrot.lane.b32.xlu0 %v152, 36
    %v3421 = vpop.permute.xlu0 %3420
    %3422 = vrot.lane.b32.xlu0 %v155, 36
    %v3423 = vpop.permute.xlu0 %3422
    %3424 = vrot.lane.b32.xlu0 %v158, 36
    %v3425 = vpop.permute.xlu0 %3424
    %3426 = vrot.lane.b32.xlu0 %v161, 36
    %v3427 = vpop.permute.xlu0 %3426
    %3428 = vrot.lane.b32.xlu0 %v164, 36
    %v3429 = vpop.permute.xlu0 %3428
    %3430 = vrot.lane.b32.xlu0 %v167, 36
    %v3431 = vpop.permute.xlu0 %3430
    %v3441 = vsel %vm275, %v3265, 0
    %v3444 = vsel %vm275, %v3267, 0
    %v3447 = vsel %vm275, %v3269, 0
    %v3450 = vsel %vm275, %v3271, 0
    %v3453 = vsel %vm275, %v3273, 0
    %v3456 = vsel %vm275, %v3275, 0
    %v3459 = vsel %vm275, %v3277, 0
    %v3462 = vsel %vm275, %v3279, 0
    %3464 = vmatpush.msra.mxu0 0.0
    %3465 = vmatpush.msra.mxu0 0.0
    %3466 = vmatpush.msra.mxu0 0.0
    %3467 = vmatpush.msra.mxu0 0.0
    %3468 = vmatpush.msra.mxu0 0.0
    %3469 = vmatpush.msra.mxu0 0.0
    %3470 = vmatpush.msra.mxu0 0.0
    %3471 = vmatpush.msra.mxu0 0.0
    %3472 = vmatpush.msra.mxu0 %v3431
    %3473 = vmatpush.msra.mxu0 %v3429
    %3474 = vmatpush.msra.mxu0 %v3427
    %3475 = vmatpush.msra.mxu0 %v3425
    %3476 = vmatpush.msra.mxu0 %v3423
    %3477 = vmatpush.msra.mxu0 %v3421
    %3478 = vmatpush.msra.mxu0 %v3419
    %3479 = vmatpush.msra.mxu0 %v3417
    %3480 = vmatmul.f32.gmra.mxu0 %v3441
    %v3481 = vpop.f32.mrf.mxu0
    %v3482 = vadd.f32 0.0, %v3481
    %3483 = vmatmul.f32.gmra.mxu0 %v3444
    %v3484 = vpop.f32.mrf.mxu0
    %v3485 = vadd.f32 0.0, %v3484
    %3486 = vmatmul.f32.gmra.mxu0 %v3447
    %v3487 = vpop.f32.mrf.mxu0
    %v3488 = vadd.f32 0.0, %v3487
    %3489 = vmatmul.f32.gmra.mxu0 %v3450
    %v3490 = vpop.f32.mrf.mxu0
    %v3491 = vadd.f32 0.0, %v3490
    %3492 = vmatmul.f32.gmra.mxu0 %v3453
    %v3493 = vpop.f32.mrf.mxu0
    %v3494 = vadd.f32 0.0, %v3493
    %3495 = vmatmul.f32.gmra.mxu0 %v3456
    %v3496 = vpop.f32.mrf.mxu0
    %v3497 = vadd.f32 0.0, %v3496
    %3498 = vmatmul.f32.gmra.mxu0 %v3459
    %v3499 = vpop.f32.mrf.mxu0
    %v3500 = vadd.f32 0.0, %v3499
    %3501 = vmatmul.f32.gmra.mxu0 %v3462
    %v3502 = vpop.f32.mrf.mxu0
    %v3503 = vadd.f32 0.0, %v3502
    %3504 = vdwg.mxu0
    %v3505 = vmul.f32 %v3482, %v3317
    %v3506 = vmul.f32 %v3485, %v3331
    %v3507 = vmul.f32 %v3488, %v3345
    %v3508 = vmul.f32 %v3491, %v3359
    %v3509 = vmul.f32 %v3494, %v3373
    %v3510 = vmul.f32 %v3497, %v3387
    %v3511 = vmul.f32 %v3500, %v3401
    %v3512 = vmul.f32 %v3503, %v3415
    %3521 = vrot.lane.b32.xlu0 %v3505, 28
    %v3522 = vpop.permute.xlu0 %3521
    %3523 = vrot.lane.b32.xlu0 %v3506, 28
    %v3524 = vpop.permute.xlu0 %3523
    %3525 = vrot.lane.b32.xlu0 %v3507, 28
    %v3526 = vpop.permute.xlu0 %3525
    %3527 = vrot.lane.b32.xlu0 %v3508, 28
    %v3528 = vpop.permute.xlu0 %3527
    %3529 = vrot.lane.b32.xlu0 %v3509, 28
    %v3530 = vpop.permute.xlu0 %3529
    %3531 = vrot.lane.b32.xlu0 %v3510, 28
    %v3532 = vpop.permute.xlu0 %3531
    %3533 = vrot.lane.b32.xlu0 %v3511, 28
    %v3534 = vpop.permute.xlu0 %3533
    %3535 = vrot.lane.b32.xlu0 %v3512, 28
    %v3536 = vpop.permute.xlu0 %3535
    %vm3545 = vcmask 261344
    %3546 = vst.msk [vmem:[#allocation2] sm:$0xff] %vm3545, %v3522
    %3547 = vst.msk [vmem:[#allocation2 + $0x8] sm:$0xff] %vm3545, %v3524
    %3548 = vst.msk [vmem:[#allocation2 + $0x10] sm:$0xff] %vm3545, %v3526
    %3549 = vst.msk [vmem:[#allocation2 + $0x18] sm:$0xff] %vm3545, %v3528
    %3550 = vst.msk [vmem:[#allocation2 + $0x20] sm:$0xff] %vm3545, %v3530
    %3551 = vst.msk [vmem:[#allocation2 + $0x28] sm:$0xff] %vm3545, %v3532
    %3552 = vst.msk [vmem:[#allocation2 + $0x30] sm:$0xff] %vm3545, %v3534
    %3553 = vst.msk [vmem:[#allocation2 + $0x38] sm:$0xff] %vm3545, %v3536
    %v3554 = vld [vmem:[#allocation2] sm:$0xff]
    %v3555 = vld [vmem:[#allocation2 + $0x8] sm:$0xff]
    %v3556 = vld [vmem:[#allocation2 + $0x10] sm:$0xff]
    %v3557 = vld [vmem:[#allocation2 + $0x18] sm:$0xff]
    %v3558 = vld [vmem:[#allocation2 + $0x20] sm:$0xff]
    %v3559 = vld [vmem:[#allocation2 + $0x28] sm:$0xff]
    %v3560 = vld [vmem:[#allocation2 + $0x30] sm:$0xff]
    %v3561 = vld [vmem:[#allocation2 + $0x38] sm:$0xff]
    %v3562 = vld [vmem:[#allocation8] sm:$0xff]
    %v3563 = vld [vmem:[#allocation8 + $0x8] sm:$0xff]
    %v3564 = vld [vmem:[#allocation8 + $0x10] sm:$0xff]
    %v3565 = vld [vmem:[#allocation8 + $0x18] sm:$0xff]
    %v3566 = vld [vmem:[%s4] sm:$0x1]
    %v3568 = vperm.slane %v3566, 0
    %v3571 = vsel %vm103, %v3554, 0
    %v3574 = vsel %vm103, %v3555, 0
    %v3577 = vsel %vm103, %v3556, 0
    %v3580 = vsel %vm103, %v3557, 0
    %v3583 = vsel %vm103, %v3558, 0
    %v3586 = vsel %vm103, %v3559, 0
    %v3589 = vsel %vm103, %v3560, 0
    %v3592 = vsel %vm103, %v3561, 0
    %3594 = vmatpush.msra.mxu0 0.0
    %3595 = vmatpush.msra.mxu0 0.0
    %3596 = vmatpush.msra.mxu0 0.0
    %3597 = vmatpush.msra.mxu0 0.0
    %3598 = vmatpush.msra.mxu0 0.0
    %3599 = vmatpush.msra.mxu0 0.0
    %3600 = vmatpush.msra.mxu0 0.0
    %3601 = vmatpush.msra.mxu0 0.0
    %3602 = vmatpush.msra.mxu0 0.0
    %3603 = vmatpush.msra.mxu0 0.0
    %3604 = vmatpush.msra.mxu0 0.0
    %3605 = vmatpush.msra.mxu0 0.0
    %3606 = vmatpush.msra.mxu0 %v3565
    %3607 = vmatpush.msra.mxu0 %v3564
    %3608 = vmatpush.msra.mxu0 %v3563
    %3609 = vmatpush.msra.mxu0 %v3562
    %3610 = vmatmul.f32.gmra.mxu0 %v3571
    %v3611 = vpop.f32.mrf.mxu0
    %v3612 = vadd.f32 %v3568, %v3611
    %3613 = vmatmul.f32.gmra.mxu0 %v3574
    %v3614 = vpop.f32.mrf.mxu0
    %v3615 = vadd.f32 %v3568, %v3614
    %3616 = vmatmul.f32.gmra.mxu0 %v3577
    %v3617 = vpop.f32.mrf.mxu0
    %v3618 = vadd.f32 %v3568, %v3617
    %3619 = vmatmul.f32.gmra.mxu0 %v3580
    %v3620 = vpop.f32.mrf.mxu0
    %v3621 = vadd.f32 %v3568, %v3620
    %3622 = vmatmul.f32.gmra.mxu0 %v3583
    %v3623 = vpop.f32.mrf.mxu0
    %v3624 = vadd.f32 %v3568, %v3623
    %3625 = vmatmul.f32.gmra.mxu0 %v3586
    %v3626 = vpop.f32.mrf.mxu0
    %v3627 = vadd.f32 %v3568, %v3626
    %3628 = vmatmul.f32.gmra.mxu0 %v3589
    %v3629 = vpop.f32.mrf.mxu0
    %v3630 = vadd.f32 %v3568, %v3629
    %3631 = vmatmul.f32.gmra.mxu0 %v3592
    %v3632 = vpop.f32.mrf.mxu0
    %v3633 = vadd.f32 %v3568, %v3632
    %3634 = vdwg.mxu0
    %3635 = vst.msk [vmem:[#allocation11] sm:$0xff] %vm103, %v3612
    %3636 = vst.msk [vmem:[#allocation11 + $0x8] sm:$0xff] %vm103, %v3615
    %3637 = vst.msk [vmem:[#allocation11 + $0x10] sm:$0xff] %vm103, %v3618
    %3638 = vst.msk [vmem:[#allocation11 + $0x18] sm:$0xff] %vm103, %v3621
    %3639 = vst.msk [vmem:[#allocation11 + $0x20] sm:$0xff] %vm103, %v3624
    %3640 = vst.msk [vmem:[#allocation11 + $0x28] sm:$0xff] %vm103, %v3627
    %3641 = vst.msk [vmem:[#allocation11 + $0x30] sm:$0xff] %vm103, %v3630
    %3642 = vst.msk [vmem:[#allocation11 + $0x38] sm:$0xff] %vm103, %v3633
    // Predicated region
    $region42: #{tpu_custom_call.1} parent=1 // pred_check
      _
    $region43: #{tpu_custom_call.1} parent=1 // pred_check_branch
      %3644 = sbr.rel (0) target = $region45
    $region44: #{tpu_custom_call.1} parent=1 // pred_region
      %3646 = vsyncadd [#allocation5], 0
      %s3647 = sshll.u32 [#allocation11], 4
      %s3648 = int_to_ptr.vmem [resolvable:$true] %s3647
      %s3649 = sshll.u32 %s6, 4
      %s3650 = int_to_ptr.hbm [resolvable:$true] %s3649
      %3655 = dma.vmem_to_hbm [thread:$0]  %s3648, 1024, %s3650, [#allocation5], 128, 128, 8
    $region45: #{tpu_custom_call.1} parent=1 // pred_fallthru
      _
    // Predicated region
    $region46: #{tpu_custom_call.1} parent=1 // pred_check
      _
    $region47: #{tpu_custom_call.1} parent=1 // pred_check_branch
      %3657 = sbr.rel (0) target = $region49
    $region48: #{tpu_custom_call.1} parent=1 // pred_region
      %3659 = dma.done [#allocation5], 1024
    $region49: #{tpu_custom_call.1} parent=1 // pred_fallthru
      _
    %3660 = vsyncpa [#allocation4], 1
    %3661 = vsyncpa [#allocation7], 1
    %3662 = vsyncpa [#allocation10], 1
    %3663 = vsyncpa [#allocation5], 1

</llo_original>
